<compile_context>
chip_gen: v5e
topology: v5e:2x2
jax: 0.10.0
libtpu: 0.0.40
codegen_flags: <defaults>
</compile_context>

<pallas_src>
import functools
import math

import jax
import jax.numpy as jnp
import numpy as np
from jax.experimental import pallas as pl
from jax.experimental.pallas import tpu as pltpu


def _default_vmem_limit():
    cap = 64 * 1024 * 1024
    try:
        cap = int(getattr(pltpu.get_tpu_info(), "vmem_capacity_bytes", cap))
    except Exception:
        pass
    # ~80% of physical VMEM (headroom for compiler scratch / double-buffering),
    # capped at 100 MiB on the 128 MiB generations.
    return int(min(cap * 4 // 5, 100 * 1024 * 1024))


_VMEM_LIMIT = _default_vmem_limit()


def _cparams(semantics):
    return pltpu.CompilerParams(dimension_semantics=semantics,
                                vmem_limit_bytes=_VMEM_LIMIT)


def _pick_tile(dim, pref, aligns=(128,)):
    """Largest tile <= pref that divides `dim` and is a multiple of one of
    `aligns` (tried in order); falls back to the full dim (always legal)."""
    if dim <= pref:
        return dim
    for align in aligns:
        t = (min(pref, dim) // align) * align
        while t >= align:
            if dim % t == 0:
                return t
            t -= align
    return dim


# ----------------------------------------------------------------------------
# Kernel 1: tiled linear  y = x @ w + b  (optional fused ReLU)
# ----------------------------------------------------------------------------
def _matmul_kernel(x_ref, w_ref, b_ref, o_ref, acc_ref, *, activation):
    @pl.when(pl.program_id(2) == 0)
    def _():
        acc_ref[...] = jnp.zeros_like(acc_ref)

    acc_ref[...] += jnp.dot(x_ref[...].astype(jnp.bfloat16), w_ref[...],
                            preferred_element_type=jnp.float32)

    @pl.when(pl.program_id(2) == pl.num_programs(2) - 1)
    def _():
        y = acc_ref[...] + b_ref[...]
        if activation == "relu":
            y = jnp.maximum(y, 0.0)
        o_ref[...] = y.astype(o_ref.dtype)


def pallas_linear(x, w, b, activation=None):
    """x: (..., K) any float dtype, w: (K, N) bf16, b: (N,) f32 -> (..., N)."""
    lead = x.shape[:-1]
    K = x.shape[-1]
    M = int(np.prod(lead)) if lead else 1
    N = w.shape[1]
    x2 = x.reshape(M, K)
    tm = _pick_tile(M, 512, (256, 8))
    tn = _pick_tile(N, 512, (256, 128))
    tk = _pick_tile(K, 1024, (256, 128))
    grid = (M // tm, N // tn, K // tk)
    out = pl.pallas_call(
        functools.partial(_matmul_kernel, activation=activation),
        out_shape=jax.ShapeDtypeStruct((M, N), x.dtype),
        grid=grid,
        in_specs=[
            pl.BlockSpec((tm, tk), lambda i, j, k: (i, k)),
            pl.BlockSpec((tk, tn), lambda i, j, k: (k, j)),
            pl.BlockSpec((1, tn), lambda i, j, k: (0, j)),
        ],
        out_specs=pl.BlockSpec((tm, tn), lambda i, j, k: (i, j)),
        scratch_shapes=[pltpu.VMEM((tm, tn), jnp.float32)],
        compiler_params=_cparams(("parallel", "parallel", "arbitrary")),
    )(x2, w, b.reshape(1, N))
    return out.reshape(lead + (N,))


# ----------------------------------------------------------------------------
# Kernel 2: fused LayerNorm + adaLN modulation + linear (optional ReLU)
#   y = (LN(x) * (1 + scale_b) + shift_b) @ w + b
# LN/modulation is computed once per (b, s-tile) into a bf16 VMEM scratch
# (innermost grid axis == output tiles / heads) and reused.
# ----------------------------------------------------------------------------
def _ln_mod_linear_kernel(x_ref, lnw_ref, lnb_ref, sc_ref, sh_ref, w_ref, b_ref,
                          o_ref, y_scr, *, activation):
    @pl.when(pl.program_id(2) == 0)
    def _():
        x = x_ref[0].astype(jnp.float32)                 # (ts, E)
        mean = jnp.mean(x, axis=-1, keepdims=True)
        var = jnp.mean(jnp.square(x - mean), axis=-1, keepdims=True)
        y = (x - mean) * jax.lax.rsqrt(var + 1e-5)
        y = y * lnw_ref[0] + lnb_ref[0]                  # LN affine
        y = y * (1.0 + sc_ref[0]) + sh_ref[0]            # adaLN modulation
        y_scr[...] = y.astype(jnp.bfloat16)

    w = w_ref[...].reshape(w_ref.shape[-2], w_ref.shape[-1])      # (E, tn) bf16
    bvec = b_ref[...].reshape(1, b_ref.shape[-1])                 # (1, tn) f32
    out = jnp.dot(y_scr[...], w, preferred_element_type=jnp.float32) + bvec
    if activation == "relu":
        out = jnp.maximum(out, 0.0)
    o_ref[...] = out.reshape(o_ref.shape).astype(o_ref.dtype)


def pallas_ln_mod_linear(x, ln_w, ln_b, scale, shift, w, b, activation=None,
                         out_dtype=None):
    B, S, E = x.shape
    N = w.shape[1]
    out_dtype = out_dtype or x.dtype
    ts = _pick_tile(S, 256, (8,))
    tn = _pick_tile(N, 512, (256, 128))
    grid = (B, S // ts, N // tn)
    return pl.pallas_call(
        functools.partial(_ln_mod_linear_kernel, activation=activation),
        out_shape=jax.ShapeDtypeStruct((B, S, N), out_dtype),
        grid=grid,
        in_specs=[
            pl.BlockSpec((1, ts, E), lambda bb, s, n: (bb, s, 0)),
            pl.BlockSpec((1, 1, E), lambda bb, s, n: (0, 0, 0)),
            pl.BlockSpec((1, 1, E), lambda bb, s, n: (0, 0, 0)),
            pl.BlockSpec((1, 1, E), lambda bb, s, n: (bb, 0, 0)),
            pl.BlockSpec((1, 1, E), lambda bb, s, n: (bb, 0, 0)),
            pl.BlockSpec((E, tn), lambda bb, s, n: (0, n)),
            pl.BlockSpec((1, tn), lambda bb, s, n: (0, n)),
        ],
        out_specs=pl.BlockSpec((1, ts, tn), lambda bb, s, n: (bb, s, n)),
        scratch_shapes=[pltpu.VMEM((ts, E), jnp.bfloat16)],
        compiler_params=_cparams(("parallel", "parallel", "arbitrary")),
    )(x, ln_w.reshape(1, 1, E), ln_b.reshape(1, 1, E),
      scale.reshape(B, 1, E), shift.reshape(B, 1, E), w, b.reshape(1, N))


def pallas_ln_mod_qkv(x, ln_w, ln_b, scale, shift, w, b, *, heads):
    """QKV projection with head-major output layout (B, H, S, 3*hd) in bf16.
    w: (H, E, 3*hd) bf16 (q columns pre-scaled by 1/sqrt(hd)); b: (H, 1, 3*hd)."""
    B, S, E = x.shape
    three_hd = w.shape[-1]
    ts = _pick_tile(S, 256, (8,))
    grid = (B, S // ts, heads)
    return pl.pallas_call(
        functools.partial(_ln_mod_linear_kernel, activation=None),
        out_shape=jax.ShapeDtypeStruct((B, heads, S, three_hd), jnp.bfloat16),
        grid=grid,
        in_specs=[
            pl.BlockSpec((1, ts, E), lambda bb, s, h: (bb, s, 0)),
            pl.BlockSpec((1, 1, E), lambda bb, s, h: (0, 0, 0)),
            pl.BlockSpec((1, 1, E), lambda bb, s, h: (0, 0, 0)),
            pl.BlockSpec((1, 1, E), lambda bb, s, h: (bb, 0, 0)),
            pl.BlockSpec((1, 1, E), lambda bb, s, h: (bb, 0, 0)),
            pl.BlockSpec((1, E, three_hd), lambda bb, s, h: (h, 0, 0)),
            pl.BlockSpec((1, 1, three_hd), lambda bb, s, h: (h, 0, 0)),
        ],
        out_specs=pl.BlockSpec((1, 1, ts, three_hd), lambda bb, s, h: (bb, h, s, 0)),
        scratch_shapes=[pltpu.VMEM((ts, E), jnp.bfloat16)],
        compiler_params=_cparams(("parallel", "parallel", "arbitrary")),
    )(x, ln_w.reshape(1, 1, E), ln_b.reshape(1, 1, E),
      scale.reshape(B, 1, E), shift.reshape(B, 1, E), w, b)


# ----------------------------------------------------------------------------
# Kernel 3: attention + output projection + residual * alpha1
#   grid (B, H); per step one head's (S, 3*hd) q/k/v block, per-head output
#   projection accumulated into an (S, E) f32 scratch; epilogue at last head.
#   1/sqrt(hd) is already folded into the q projection weights.
# ----------------------------------------------------------------------------
def _attn_out_res_kernel(qkv_ref, lvw_ref, lvb_ref, x_ref, a1_ref, o_ref,
                         acc_ref, *, hd):
    h = pl.program_id(1)

    @pl.when(h == 0)
    def _():
        acc_ref[...] = jnp.zeros_like(acc_ref)

    qkv = qkv_ref[0, 0]                                   # (S, 3*hd) bf16
    q = qkv[:, :hd]
    k = qkv[:, hd:2 * hd]
    v = qkv[:, 2 * hd:3 * hd]
    s = jax.lax.dot_general(q, k, (((1,), (1,)), ((), ())),
                            preferred_element_type=jnp.float32)      # (S, S) f32
    s = s - jnp.max(s, axis=-1, keepdims=True)
    p = jnp.exp(s)
    p = p * pl.reciprocal(jnp.sum(p, axis=-1, keepdims=True), approx=True)
    head_out = jnp.dot(p.astype(jnp.bfloat16), v,
                       preferred_element_type=jnp.float32)           # (S, hd)
    acc_ref[...] += jnp.dot(head_out.astype(jnp.bfloat16), lvw_ref[...],
                            preferred_element_type=jnp.float32)      # (S, E)

    @pl.when(h == pl.num_programs(1) - 1)
    def _():
        o = acc_ref[...] + lvb_ref[...]
        o_ref[0] = (x_ref[0] + o * a1_ref[0]).astype(o_ref.dtype)


def pallas_attn_out_res(qkv, lv_w, lv_b, xres, a1, *, hd):
    B, H, S, _ = qkv.shape
    E = lv_w.shape[1]
    return pl.pallas_call(
        functools.partial(_attn_out_res_kernel, hd=hd),
        out_shape=jax.ShapeDtypeStruct((B, S, E), xres.dtype),
        grid=(B, H),
        in_specs=[
            pl.BlockSpec((1, 1, S, 3 * hd), lambda bb, h: (bb, h, 0, 0)),
            pl.BlockSpec((hd, E), lambda bb, h: (h, 0)),
            pl.BlockSpec((1, E), lambda bb, h: (0, 0)),
            pl.BlockSpec((1, S, E), lambda bb, h: (bb, 0, 0)),
            pl.BlockSpec((1, 1, E), lambda bb, h: (bb, 0, 0)),
        ],
        out_specs=pl.BlockSpec((1, S, E), lambda bb, h: (bb, 0, 0)),
        scratch_shapes=[pltpu.VMEM((S, E), jnp.float32)],
        compiler_params=_cparams(("parallel", "arbitrary")),
    )(qkv, lv_w, lv_b.reshape(1, E), xres, a1.reshape(B, 1, E))


# ----------------------------------------------------------------------------
# Kernel 4: K-tiled linear + residual + gate   out = res + (z @ w + b) * gate
# ----------------------------------------------------------------------------
def _linear_res_gate_kernel(z_ref, w_ref, b_ref, r_ref, g_ref, o_ref, acc_ref):
    @pl.when(pl.program_id(2) == 0)
    def _():
        acc_ref[...] = jnp.zeros_like(acc_ref)

    acc_ref[...] += jnp.dot(z_ref[0].astype(jnp.bfloat16), w_ref[...],
                            preferred_element_type=jnp.float32)

    @pl.when(pl.program_id(2) == pl.num_programs(2) - 1)
    def _():
        y = acc_ref[...] + b_ref[...]
        o_ref[0] = (r_ref[0] + y * g_ref[0]).astype(o_ref.dtype)


def pallas_linear_res_gate(z, w, b, res, gate):
    B, S, K = z.shape
    E = w.shape[1]
    ts = _pick_tile(S, 256, (8,))
    tk = _pick_tile(K, 1024, (256, 128))
    grid = (B, S // ts, K // tk)
    return pl.pallas_call(
        _linear_res_gate_kernel,
        out_shape=jax.ShapeDtypeStruct((B, S, E), res.dtype),
        grid=grid,
        in_specs=[
            pl.BlockSpec((1, ts, tk), lambda bb, s, k: (bb, s, k)),
            pl.BlockSpec((tk, E), lambda bb, s, k: (k, 0)),
            pl.BlockSpec((1, E), lambda bb, s, k: (0, 0)),
            pl.BlockSpec((1, ts, E), lambda bb, s, k: (bb, s, 0)),
            pl.BlockSpec((1, 1, E), lambda bb, s, k: (bb, 0, 0)),
        ],
        out_specs=pl.BlockSpec((1, ts, E), lambda bb, s, k: (bb, s, 0)),
        scratch_shapes=[pltpu.VMEM((ts, E), jnp.float32)],
        compiler_params=_cparams(("parallel", "parallel", "arbitrary")),
    )(z, w, b.reshape(1, E), res, gate.reshape(B, 1, E))


# ----------------------------------------------------------------------------
# Pure-JAX references with identical math (bf16 MXU operands, f32 accumulate)
# ----------------------------------------------------------------------------
def ref_linear(x, w, b, activation=None):
    y = jnp.dot(x.astype(jnp.bfloat16), w, preferred_element_type=jnp.float32) + b
    if activation == "relu":
        y = jnp.maximum(y, 0.0)
    return y.astype(x.dtype)


def _ref_ln_mod(x, ln_w, ln_b, scale, shift):
    xf = x.astype(jnp.float32)
    mean = jnp.mean(xf, axis=-1, keepdims=True)
    var = jnp.mean(jnp.square(xf - mean), axis=-1, keepdims=True)
    y = (xf - mean) * jax.lax.rsqrt(var + 1e-5) * ln_w + ln_b
    y = y * (1.0 + scale[:, None, :]) + shift[:, None, :]
    return y.astype(jnp.bfloat16)


def ref_ln_mod_linear(x, ln_w, ln_b, scale, shift, w, b, activation=None,
                      out_dtype=None):
    out_dtype = out_dtype or x.dtype
    y = _ref_ln_mod(x, ln_w, ln_b, scale, shift)
    out = jnp.einsum("bse,en->bsn", y, w, preferred_element_type=jnp.float32) + b
    if activation == "relu":
        out = jnp.maximum(out, 0.0)
    return out.astype(out_dtype)


def ref_ln_mod_qkv(x, ln_w, ln_b, scale, shift, w, b, *, heads):
    del heads  # layout is carried by w's shape (H, E, 3*hd)
    y = _ref_ln_mod(x, ln_w, ln_b, scale, shift)
    out = jnp.einsum("bse,hef->bhsf", y, w,
                     preferred_element_type=jnp.float32) + b[None]
    return out.astype(jnp.bfloat16)


def ref_attn_out_res(qkv, lv_w, lv_b, xres, a1, *, hd):
    B, H, S, _ = qkv.shape
    q = qkv[..., :hd]
    k = qkv[..., hd:2 * hd]
    v = qkv[..., 2 * hd:3 * hd]
    s = jnp.einsum("bhqd,bhkd->bhqk", q, k, preferred_element_type=jnp.float32)
    s = s - jnp.max(s, axis=-1, keepdims=True)
    p = jnp.exp(s)
    p = p / jnp.sum(p, axis=-1, keepdims=True)
    ho = jnp.einsum("bhqk,bhkd->bhqd", p.astype(jnp.bfloat16), v,
                    preferred_element_type=jnp.float32)
    ho = ho.transpose(0, 2, 1, 3).reshape(B, S, H * hd)
    o = jnp.einsum("bsk,ke->bse", ho.astype(jnp.bfloat16), lv_w,
                   preferred_element_type=jnp.float32) + lv_b
    return (xres.astype(jnp.float32) + o * a1[:, None, :]).astype(xres.dtype)


def ref_linear_res_gate(z, w, b, res, gate):
    y = jnp.einsum("bsk,ke->bse", z.astype(jnp.bfloat16), w,
                   preferred_element_type=jnp.float32) + b
    return (res.astype(jnp.float32) + y * gate[:, None, :]).astype(res.dtype)


PALLAS_OPS = dict(linear=pallas_linear, ln_mod_linear=pallas_ln_mod_linear,
                  ln_mod_qkv=pallas_ln_mod_qkv, attn_out_res=pallas_attn_out_res,
                  linear_res_gate=pallas_linear_res_gate)
REF_OPS = dict(linear=ref_linear, ln_mod_linear=ref_ln_mod_linear,
               ln_mod_qkv=ref_ln_mod_qkv, attn_out_res=ref_attn_out_res,
               linear_res_gate=ref_linear_res_gate)


# ----------------------------------------------------------------------------
# Parameters (PyTorch-default-style init, bf16 weight storage, fused layouts)
# ----------------------------------------------------------------------------
def _dense(key, in_f, out_f):
    kw, kb = jax.random.split(key)
    bound = 1.0 / math.sqrt(in_f)
    w = jax.random.uniform(kw, (in_f, out_f), jnp.float32, -bound, bound)
    b = jax.random.uniform(kb, (out_f,), jnp.float32, -bound, bound)
    return {"w": w.astype(jnp.bfloat16), "b": b}


def _qkv_dense(key, E, heads, hd):
    """Per-head-grouped QKV weight (H, E, 3*hd); 1/sqrt(hd) folded into q."""
    kw, kb = jax.random.split(key)
    bound = 1.0 / math.sqrt(E)
    w = jax.random.uniform(kw, (heads, E, 3 * hd), jnp.float32, -bound, bound)
    b = jax.random.uniform(kb, (heads, 1, 3 * hd), jnp.float32, -bound, bound)
    sc = jnp.concatenate([jnp.full((hd,), 1.0 / math.sqrt(hd), jnp.float32),
                          jnp.ones((2 * hd,), jnp.float32)])
    return {"w": (w * sc).astype(jnp.bfloat16), "b": (b * sc)}


def init_params(key, *, img_size, channel, emb_size, heads, numm, patch_size, labels):
    # The original module's patch_emb Linear(P*P -> E) only matches the conv
    # output feature count when channel == 1 (same quirk as dit.py).
    assert channel == 1, "patch_emb path assumes channel == 1 (as in dit.py)"
    F = img_size // patch_size
    P, C, E, H = patch_size, channel, emb_size, heads
    hd = E  # tutorial DiT convention: head_dim == emb_size
    keys = jax.random.split(key, 8 + numm)
    params = {
        # Conv2d(C, C*P*P, kernel=P, stride=P) stored as an im2col matmul weight.
        "conv": _dense(keys[0], C * P * P, C * P * P),
        "patch_emb": _dense(keys[1], P * P, E),
        "pos": jax.random.uniform(keys[2], (1, F * F, E), jnp.float32),
        "label_emb": jax.random.normal(keys[3], (labels, E), jnp.float32),
        "time1": _dense(keys[4], E, E),
        "time2": _dense(keys[5], E, E),
        "ln_w": jnp.ones((E,), jnp.float32),
        "ln_b": jnp.zeros((E,), jnp.float32),
        "out": _dense(keys[6], E, P * P * C),
        "blocks": [],
    }
    for i in range(numm):
        bk = jax.random.split(keys[8 + i], 5)
        params["blocks"].append({
            # fused adaLN projection: [gamma1|beta1|alpha1|gamma2|beta2|alpha2]
            "adaln": _dense(bk[0], E, 6 * E),
            "ln1_w": jnp.ones((E,), jnp.float32), "ln1_b": jnp.zeros((E,), jnp.float32),
            "ln2_w": jnp.ones((E,), jnp.float32), "ln2_b": jnp.zeros((E,), jnp.float32),
            "qkv": _qkv_dense(bk[1], E, H, hd),
            "lv": _dense(bk[2], H * hd, E),
            "ff1": _dense(bk[3], E, 4 * E),
            "ff2": _dense(bk[4], 4 * E, E),
        })
    return params


# ----------------------------------------------------------------------------
# Forward pass (shared between Pallas and reference via the `ops` table)
# ----------------------------------------------------------------------------
def _dense_apply(x, w, b, activation=None):
    """Plain-XLA linear for tiny (M == batch) conditioning projections."""
    y = jnp.dot(x.astype(jnp.bfloat16), w, preferred_element_type=jnp.float32) + b
    if activation == "relu":
        y = jnp.maximum(y, 0.0)
    return y


def time_embedding(t, emb_size):
    half = emb_size // 2
    freqs = jnp.exp(jnp.arange(half, dtype=jnp.float32)
                    * (-math.log(10000.0) / (half - 1)))
    args = t.reshape(-1, 1).astype(jnp.float32) * freqs[None, :]
    return jnp.concatenate([jnp.sin(args), jnp.cos(args)], axis=-1)


def dit_block_forward(x, cond, p, *, heads, hd, ops):
    B, S, E = x.shape
    # One fused (E, 6E) conditioning matmul (tiny M=B rows -> plain XLA).
    cond6 = _dense_apply(cond, p["adaln"]["w"], p["adaln"]["b"])          # (B, 6E)
    g1, b1, a1, g2, b2, a2 = [cond6[:, i * E:(i + 1) * E] for i in range(6)]

    # LN1 + modulation fused into the head-major QKV projection (bf16 output).
    qkv = ops["ln_mod_qkv"](x, p["ln1_w"], p["ln1_b"], g1, b1,
                            p["qkv"]["w"], p["qkv"]["b"], heads=heads)    # (B,H,S,3hd)
    # Attention (grid over heads) + output proj + residual * alpha1.
    y = ops["attn_out_res"](qkv, p["lv"]["w"], p["lv"]["b"], x, a1, hd=hd)
    # LN2 + modulation fused into ff1 (ReLU, bf16 output); ff2 fused with gate.
    h = ops["ln_mod_linear"](y, p["ln2_w"], p["ln2_b"], g2, b2,
                             p["ff1"]["w"], p["ff1"]["b"], activation="relu",
                             out_dtype=jnp.bfloat16)                      # (B,S,4E)
    return ops["linear_res_gate"](h, p["ff2"]["w"], p["ff2"]["b"], y, a2)


def dit_forward(params, x, t, y, *, img_size, channel, emb_size, heads,
                patch_size, ops):
    C, P, E, H = channel, patch_size, emb_size, heads
    F = img_size // P
    B = x.shape[0]

    # Conditioning path (tiny shapes): embedding gather + time MLP in plain XLA.
    y_emb = jnp.take(params["label_emb"], y, axis=0)                      # (B, E)
    t_emb = time_embedding(t, E)
    t_emb = _dense_apply(t_emb, params["time1"]["w"], params["time1"]["b"], "relu")
    t_emb = _dense_apply(t_emb, params["time2"]["w"], params["time2"]["b"])
    cond = y_emb + t_emb

    # Conv2d(kernel=P, stride=P) == patchify (im2col) + dense; NHWC flatten.
    xp = x.reshape(B, C, F, P, F, P).transpose(0, 2, 4, 1, 3, 5)
    xp = xp.reshape(B * F * F, C * P * P)
    xp = ops["linear"](xp, params["conv"]["w"], params["conv"]["b"])      # (B*S, C*P*P)
    xp = ops["linear"](xp, params["patch_emb"]["w"], params["patch_emb"]["b"])
    xp = xp.reshape(B, F * F, E) + params["pos"]

    for blk in params["blocks"]:
        xp = dit_block_forward(xp, cond, blk, heads=H, hd=E, ops=ops)

    # Final LayerNorm fused into the output projection (scale/shift == 0).
    zeros = jnp.zeros((B, E), jnp.float32)
    xp = ops["ln_mod_linear"](xp, params["ln_w"], params["ln_b"], zeros, zeros,
                              params["out"]["w"], params["out"]["b"])     # (B,S,P*P*C)

    xp = xp.reshape(B, F, F, C, P, P)
    xp = xp.transpose(0, 3, 1, 2, 4, 5)    # (B, C, F, F, P, P)
    xp = xp.transpose(0, 1, 2, 4, 3, 5)    # (B, C, F, P, F, P)
    return xp.reshape(B, C, F * P, F * P)


# ----------------------------------------------------------------------------
if __name__ == "__main__":
    img_size, channel, emb_size, heads = 16, 1, 32, 2
    numm, patch_size, labels, batch = 2, 4, 10, 2

    key = jax.random.PRNGKey(0)
    kp, kx, kt, ky = jax.random.split(key, 4)
    params = init_params(kp, img_size=img_size, channel=channel,
                         emb_size=emb_size, heads=heads, numm=numm,
                         patch_size=patch_size, labels=labels)

    x = jax.random.normal(kx, (batch, channel, img_size, img_size), jnp.float32)
    t = jax.random.uniform(kt, (batch,), jnp.float32, 0.0, 1000.0)
    y = jax.random.randint(ky, (batch,), 0, labels)

    cfg = dict(img_size=img_size, channel=channel, emb_size=emb_size,
               heads=heads, patch_size=patch_size)

    fwd_pallas = jax.jit(lambda p, a, b, c: dit_forward(p, a, b, c, ops=PALLAS_OPS, **cfg))
    fwd_ref = jax.jit(lambda p, a, b, c: dit_forward(p, a, b, c, ops=REF_OPS, **cfg))

    out = jax.block_until_ready(fwd_pallas(params, x, t, y))
    ref = jax.block_until_ready(fwd_ref(params, x, t, y))

    assert out.shape == (batch, channel, img_size, img_size), out.shape
    assert bool(jnp.all(jnp.isfinite(out)))
    np.testing.assert_allclose(np.asarray(out), np.asarray(ref), rtol=2e-2, atol=2e-2)
    print("KERNEL_OK")
</pallas_src>

<mosaic_0001>
module attributes {stable_mosaic.version = 11 : i64} {
  func.func @_matmul_kernel(%arg0: i32, %arg1: i32, %arg2: i32, %arg3: memref<32x16xf32, #tpu.memory_space<vmem>>, %arg4: memref<16x16xbf16, #tpu.memory_space<vmem>>, %arg5: memref<1x16xf32, #tpu.memory_space<vmem>>, %arg6: memref<32x16xf32, #tpu.memory_space<vmem>>, %arg7: memref<32x16xf32, #tpu.memory_space<vmem>>) attributes {dimension_semantics = [#tpu.dimension_semantics<parallel>, #tpu.dimension_semantics<parallel>, #tpu.dimension_semantics<arbitrary>], iteration_bounds = array<i64: 1, 1, 1>, scalar_prefetch = 0 : i64, scratch_operands = 1 : i64, tpu.core_type = #tpu.core_type<tc>, window_params = [{transform_indices = @transform_0, window_bounds = array<i64: 32, 16>}, {transform_indices = @transform_1, window_bounds = array<i64: 16, 16>}, {transform_indices = @transform_2, window_bounds = array<i64: 1, 16>}, {transform_indices = @transform_3, window_bounds = array<i64: 32, 16>}]} {
    %c0_i32 = arith.constant 0 : i32
    %0 = arith.cmpi eq, %arg2, %c0_i32 : i32
    %1 = arith.extui %0 : i1 to i32
    %c0_i32_0 = arith.constant 0 : i32
    %2 = arith.cmpi ne, %1, %c0_i32_0 : i32
    scf.if %2 {
      %cst_10 = arith.constant 0.000000e+00 : f32
      %13 = vector.broadcast %cst_10 : f32 to vector<32x16xf32>
      %c0_11 = arith.constant 0 : index
      %c0_12 = arith.constant 0 : index
      %14 = vector.load %arg7[%c0_11, %c0_12] : memref<32x16xf32, #tpu.memory_space<vmem>>, vector<32x16xf32>
      tpu.vector_store %arg7[%c0_11, %c0_12], %13 {strides = array<i32>} : memref<32x16xf32, #tpu.memory_space<vmem>>, vector<32x16xf32>,
    } else {
    }
    %c0 = arith.constant 0 : index
    %c0_1 = arith.constant 0 : index
    %3 = vector.load %arg7[%c0, %c0_1] : memref<32x16xf32, #tpu.memory_space<vmem>>, vector<32x16xf32>
    %c0_2 = arith.constant 0 : index
    %c0_3 = arith.constant 0 : index
    %4 = vector.load %arg3[%c0_2, %c0_3] : memref<32x16xf32, #tpu.memory_space<vmem>>, vector<32x16xf32>
    %5 = arith.truncf %4 : vector<32x16xf32> to vector<32x16xbf16>
    %c0_4 = arith.constant 0 : index
    %c0_5 = arith.constant 0 : index
    %6 = vector.load %arg4[%c0_4, %c0_5] : memref<16x16xbf16, #tpu.memory_space<vmem>>, vector<16x16xbf16>
    %cst = arith.constant dense<0.000000e+00> : vector<32x16xf32>
    %7 = tpu.matmul %5, %6, %cst {dimension_numbers = #tpu.dot_dimension_numbers<[1], [0], [0], [1], [0, 0, 1, 1], [], []>} : vector<32x16xbf16>, vector<16x16xbf16>, vector<32x16xf32> -> vector<32x16xf32>
    %8 = arith.addf %3, %7 : vector<32x16xf32>
    %c0_6 = arith.constant 0 : index
    %c0_7 = arith.constant 0 : index
    %9 = vector.load %arg7[%c0_6, %c0_7] : memref<32x16xf32, #tpu.memory_space<vmem>>, vector<32x16xf32>
    tpu.vector_store %arg7[%c0_6, %c0_7], %8 {strides = array<i32>} : memref<32x16xf32, #tpu.memory_space<vmem>>, vector<32x16xf32>,
    %c0_i32_8 = arith.constant 0 : i32
    %10 = arith.cmpi eq, %arg2, %c0_i32_8 : i32
    %11 = arith.extui %10 : i1 to i32
    %c0_i32_9 = arith.constant 0 : i32
    %12 = arith.cmpi ne, %11, %c0_i32_9 : i32
    scf.if %12 {
      %c0_10 = arith.constant 0 : index
      %c0_11 = arith.constant 0 : index
      %13 = vector.load %arg7[%c0_10, %c0_11] : memref<32x16xf32, #tpu.memory_space<vmem>>, vector<32x16xf32>
      %c0_12 = arith.constant 0 : index
      %c0_13 = arith.constant 0 : index
      %14 = vector.load %arg5[%c0_12, %c0_13] : memref<1x16xf32, #tpu.memory_space<vmem>>, vector<1x16xf32>
      %15 = vector.broadcast %14 : vector<1x16xf32> to vector<32x16xf32>
      %16 = arith.addf %13, %15 : vector<32x16xf32>
      %c0_14 = arith.constant 0 : index
      %c0_15 = arith.constant 0 : index
      %17 = vector.load %arg6[%c0_14, %c0_15] : memref<32x16xf32, #tpu.memory_space<vmem>>, vector<32x16xf32>
      tpu.vector_store %arg6[%c0_14, %c0_15], %16 {strides = array<i32>} : memref<32x16xf32, #tpu.memory_space<vmem>>, vector<32x16xf32>,
    } else {
    }
    return
  }
  func.func @transform_0(%arg0: i32, %arg1: i32, %arg2: i32) -> (i32, i32) {
    %c0_i32 = arith.constant 0 : i32
    return %arg0, %arg2 : i32, i32
  }
  func.func @transform_1(%arg0: i32, %arg1: i32, %arg2: i32) -> (i32, i32) {
    %c0_i32 = arith.constant 0 : i32
    return %arg2, %arg1 : i32, i32
  }
  func.func @transform_2(%arg0: i32, %arg1: i32, %arg2: i32) -> (i32, i32) {
    %c0_i32 = arith.constant 0 : i32
    %c0_i32_0 = arith.constant 0 : i32
    return %c0_i32, %arg1 : i32, i32
  }
  func.func @transform_3(%arg0: i32, %arg1: i32, %arg2: i32) -> (i32, i32) {
    %c0_i32 = arith.constant 0 : i32
    return %arg0, %arg1 : i32, i32
  }
}

module attributes {stable_mosaic.version = 11 : i64} {
  func.func @_matmul_kernel(%arg0: i32, %arg1: i32, %arg2: i32, %arg3: memref<32x16xf32, #tpu.memory_space<vmem>>, %arg4: memref<16x32xbf16, #tpu.memory_space<vmem>>, %arg5: memref<1x32xf32, #tpu.memory_space<vmem>>, %arg6: memref<32x32xf32, #tpu.memory_space<vmem>>, %arg7: memref<32x32xf32, #tpu.memory_space<vmem>>) attributes {dimension_semantics = [#tpu.dimension_semantics<parallel>, #tpu.dimension_semantics<parallel>, #tpu.dimension_semantics<arbitrary>], iteration_bounds = array<i64: 1, 1, 1>, scalar_prefetch = 0 : i64, scratch_operands = 1 : i64, tpu.core_type = #tpu.core_type<tc>, window_params = [{transform_indices = @transform_0, window_bounds = array<i64: 32, 16>}, {transform_indices = @transform_1, window_bounds = array<i64: 16, 32>}, {transform_indices = @transform_2, window_bounds = array<i64: 1, 32>}, {transform_indices = @transform_3, window_bounds = array<i64: 32, 32>}]} {
    %c0_i32 = arith.constant 0 : i32
    %0 = arith.cmpi eq, %arg2, %c0_i32 : i32
    %1 = arith.extui %0 : i1 to i32
    %c0_i32_0 = arith.constant 0 : i32
    %2 = arith.cmpi ne, %1, %c0_i32_0 : i32
    scf.if %2 {
      %cst_10 = arith.constant 0.000000e+00 : f32
      %13 = vector.broadcast %cst_10 : f32 to vector<32x32xf32>
      %c0_11 = arith.constant 0 : index
      %c0_12 = arith.constant 0 : index
      %14 = vector.load %arg7[%c0_11, %c0_12] : memref<32x32xf32, #tpu.memory_space<vmem>>, vector<32x32xf32>
      tpu.vector_store %arg7[%c0_11, %c0_12], %13 {strides = array<i32>} : memref<32x32xf32, #tpu.memory_space<vmem>>, vector<32x32xf32>,
    } else {
    }
    %c0 = arith.constant 0 : index
    %c0_1 = arith.constant 0 : index
    %3 = vector.load %arg7[%c0, %c0_1] : memref<32x32xf32, #tpu.memory_space<vmem>>, vector<32x32xf32>
    %c0_2 = arith.constant 0 : index
    %c0_3 = arith.constant 0 : index
    %4 = vector.load %arg3[%c0_2, %c0_3] : memref<32x16xf32, #tpu.memory_space<vmem>>, vector<32x16xf32>
    %5 = arith.truncf %4 : vector<32x16xf32> to vector<32x16xbf16>
    %c0_4 = arith.constant 0 : index
    %c0_5 = arith.constant 0 : index
    %6 = vector.load %arg4[%c0_4, %c0_5] : memref<16x32xbf16, #tpu.memory_space<vmem>>, vector<16x32xbf16>
    %cst = arith.constant dense<0.000000e+00> : vector<32x32xf32>
    %7 = tpu.matmul %5, %6, %cst {dimension_numbers = #tpu.dot_dimension_numbers<[1], [0], [0], [1], [0, 0, 1, 1], [], []>} : vector<32x16xbf16>, vector<16x32xbf16>, vector<32x32xf32> -> vector<32x32xf32>
    %8 = arith.addf %3, %7 : vector<32x32xf32>
    %c0_6 = arith.constant 0 : index
    %c0_7 = arith.constant 0 : index
    %9 = vector.load %arg7[%c0_6, %c0_7] : memref<32x32xf32, #tpu.memory_space<vmem>>, vector<32x32xf32>
    tpu.vector_store %arg7[%c0_6, %c0_7], %8 {strides = array<i32>} : memref<32x32xf32, #tpu.memory_space<vmem>>, vector<32x32xf32>,
    %c0_i32_8 = arith.constant 0 : i32
    %10 = arith.cmpi eq, %arg2, %c0_i32_8 : i32
    %11 = arith.extui %10 : i1 to i32
    %c0_i32_9 = arith.constant 0 : i32
    %12 = arith.cmpi ne, %11, %c0_i32_9 : i32
    scf.if %12 {
      %c0_10 = arith.constant 0 : index
      %c0_11 = arith.constant 0 : index
      %13 = vector.load %arg7[%c0_10, %c0_11] : memref<32x32xf32, #tpu.memory_space<vmem>>, vector<32x32xf32>
      %c0_12 = arith.constant 0 : index
      %c0_13 = arith.constant 0 : index
      %14 = vector.load %arg5[%c0_12, %c0_13] : memref<1x32xf32, #tpu.memory_space<vmem>>, vector<1x32xf32>
      %15 = vector.broadcast %14 : vector<1x32xf32> to vector<32x32xf32>
      %16 = arith.addf %13, %15 : vector<32x32xf32>
      %c0_14 = arith.constant 0 : index
      %c0_15 = arith.constant 0 : index
      %17 = vector.load %arg6[%c0_14, %c0_15] : memref<32x32xf32, #tpu.memory_space<vmem>>, vector<32x32xf32>
      tpu.vector_store %arg6[%c0_14, %c0_15], %16 {strides = array<i32>} : memref<32x32xf32, #tpu.memory_space<vmem>>, vector<32x32xf32>,
    } else {
    }
    return
  }
  func.func @transform_0(%arg0: i32, %arg1: i32, %arg2: i32) -> (i32, i32) {
    %c0_i32 = arith.constant 0 : i32
    return %arg0, %arg2 : i32, i32
  }
  func.func @transform_1(%arg0: i32, %arg1: i32, %arg2: i32) -> (i32, i32) {
    %c0_i32 = arith.constant 0 : i32
    return %arg2, %arg1 : i32, i32
  }
  func.func @transform_2(%arg0: i32, %arg1: i32, %arg2: i32) -> (i32, i32) {
    %c0_i32 = arith.constant 0 : i32
    %c0_i32_0 = arith.constant 0 : i32
    return %c0_i32, %arg1 : i32, i32
  }
  func.func @transform_3(%arg0: i32, %arg1: i32, %arg2: i32) -> (i32, i32) {
    %c0_i32 = arith.constant 0 : i32
    return %arg0, %arg1 : i32, i32
  }
}

module attributes {stable_mosaic.version = 11 : i64} {
  func.func @_ln_mod_linear_kernel(%arg0: i32, %arg1: i32, %arg2: i32, %arg3: memref<1x16x32xf32, #tpu.memory_space<vmem>>, %arg4: memref<1x1x32xf32, #tpu.memory_space<vmem>>, %arg5: memref<1x1x32xf32, #tpu.memory_space<vmem>>, %arg6: memref<1x1x32xf32, #tpu.memory_space<vmem>>, %arg7: memref<1x1x32xf32, #tpu.memory_space<vmem>>, %arg8: memref<32x128xbf16, #tpu.memory_space<vmem>>, %arg9: memref<1x128xf32, #tpu.memory_space<vmem>>, %arg10: memref<1x16x128xbf16, #tpu.memory_space<vmem>>, %arg11: memref<16x32xbf16, #tpu.memory_space<vmem>>) attributes {dimension_semantics = [#tpu.dimension_semantics<parallel>, #tpu.dimension_semantics<parallel>, #tpu.dimension_semantics<arbitrary>], iteration_bounds = array<i64: 2, 1, 1>, scalar_prefetch = 0 : i64, scratch_operands = 1 : i64, tpu.core_type = #tpu.core_type<tc>, window_params = [{transform_indices = @transform_0, window_bounds = array<i64: 1, 16, 32>}, {pipeline_mode = #tpu.pipeline_mode<synchronous>, transform_indices = @transform_1, window_bounds = array<i64: 1, 1, 32>}, {pipeline_mode = #tpu.pipeline_mode<synchronous>, transform_indices = @transform_2, window_bounds = array<i64: 1, 1, 32>}, {transform_indices = @transform_3, window_bounds = array<i64: 1, 1, 32>}, {transform_indices = @transform_4, window_bounds = array<i64: 1, 1, 32>}, {transform_indices = @transform_5, window_bounds = array<i64: 32, 128>}, {transform_indices = @transform_6, window_bounds = array<i64: 1, 128>}, {transform_indices = @transform_7, window_bounds = array<i64: 1, 16, 128>}]} {
    %c0_i32 = arith.constant 0 : i32
    %0 = arith.cmpi eq, %arg2, %c0_i32 : i32
    %1 = arith.extui %0 : i1 to i32
    %c0_i32_0 = arith.constant 0 : i32
    %2 = arith.cmpi ne, %1, %c0_i32_0 : i32
    scf.if %2 {
      %c0_10 = arith.constant 0 : index
      %c0_11 = arith.constant 0 : index
      %c0_12 = arith.constant 0 : index
      %14 = vector.load %arg3[%c0_10, %c0_11, %c0_12] : memref<1x16x32xf32, #tpu.memory_space<vmem>>, vector<1x16x32xf32>
      %15 = vector.shape_cast %14 : vector<1x16x32xf32> to vector<16x32xf32>
      %cst_13 = arith.constant dense<0.000000e+00> : vector<16xf32>
      %16 = vector.multi_reduction <add>, %15, %cst_13 [1] : vector<16x32xf32> to vector<16xf32>
      %17 = vector.shape_cast %16 : vector<16xf32> to vector<16x1xf32>
      %cst_14 = arith.constant 3.200000e+01 : f32
      %18 = vector.broadcast %cst_14 : f32 to vector<16x1xf32>
      %19 = arith.divf %17, %18 : vector<16x1xf32>
      %20 = vector.broadcast %19 : vector<16x1xf32> to vector<16x32xf32>
      %21 = arith.subf %15, %20 : vector<16x32xf32>
      %22 = arith.mulf %21, %21 : vector<16x32xf32>
      %cst_15 = arith.constant dense<0.000000e+00> : vector<16xf32>
      %23 = vector.multi_reduction <add>, %22, %cst_15 [1] : vector<16x32xf32> to vector<16xf32>
      %24 = vector.shape_cast %23 : vector<16xf32> to vector<16x1xf32>
      %cst_16 = arith.constant 3.200000e+01 : f32
      %25 = vector.broadcast %cst_16 : f32 to vector<16x1xf32>
      %26 = arith.divf %24, %25 : vector<16x1xf32>
      %27 = vector.broadcast %19 : vector<16x1xf32> to vector<16x32xf32>
      %28 = arith.subf %15, %27 : vector<16x32xf32>
      %cst_17 = arith.constant 9.99999974E-6 : f32
      %29 = vector.broadcast %cst_17 : f32 to vector<16x1xf32>
      %30 = arith.addf %26, %29 : vector<16x1xf32>
      %31 = math.rsqrt %30 : vector<16x1xf32>
      %32 = vector.broadcast %31 : vector<16x1xf32> to vector<16x32xf32>
      %33 = arith.mulf %28, %32 : vector<16x32xf32>
      %c0_18 = arith.constant 0 : index
      %c0_19 = arith.constant 0 : index
      %c0_20 = arith.constant 0 : index
      %34 = vector.load %arg4[%c0_18, %c0_19, %c0_20] : memref<1x1x32xf32, #tpu.memory_space<vmem>>, vector<1x1x32xf32>
      %35 = vector.shape_cast %34 : vector<1x1x32xf32> to vector<1x32xf32>
      %36 = vector.broadcast %35 : vector<1x32xf32> to vector<16x32xf32>
      %37 = arith.mulf %33, %36 : vector<16x32xf32>
      %c0_21 = arith.constant 0 : index
      %c0_22 = arith.constant 0 : index
      %c0_23 = arith.constant 0 : index
      %38 = vector.load %arg5[%c0_21, %c0_22, %c0_23] : memref<1x1x32xf32, #tpu.memory_space<vmem>>, vector<1x1x32xf32>
      %39 = vector.shape_cast %38 : vector<1x1x32xf32> to vector<1x32xf32>
      %40 = vector.broadcast %39 : vector<1x32xf32> to vector<16x32xf32>
      %41 = arith.addf %37, %40 : vector<16x32xf32>
      %c0_24 = arith.constant 0 : index
      %c0_25 = arith.constant 0 : index
      %c0_26 = arith.constant 0 : index
      %42 = vector.load %arg6[%c0_24, %c0_25, %c0_26] : memref<1x1x32xf32, #tpu.memory_space<vmem>>, vector<1x1x32xf32>
      %43 = vector.shape_cast %42 : vector<1x1x32xf32> to vector<1x32xf32>
      %cst_27 = arith.constant 1.000000e+00 : f32
      %44 = vector.broadcast %cst_27 : f32 to vector<1x32xf32>
      %45 = arith.addf %44, %43 : vector<1x32xf32>
      %46 = vector.broadcast %45 : vector<1x32xf32> to vector<16x32xf32>
      %47 = arith.mulf %41, %46 : vector<16x32xf32>
      %c0_28 = arith.constant 0 : index
      %c0_29 = arith.constant 0 : index
      %c0_30 = arith.constant 0 : index
      %48 = vector.load %arg7[%c0_28, %c0_29, %c0_30] : memref<1x1x32xf32, #tpu.memory_space<vmem>>, vector<1x1x32xf32>
      %49 = vector.shape_cast %48 : vector<1x1x32xf32> to vector<1x32xf32>
      %50 = vector.broadcast %49 : vector<1x32xf32> to vector<16x32xf32>
      %51 = arith.addf %47, %50 : vector<16x32xf32>
      %52 = arith.truncf %51 : vector<16x32xf32> to vector<16x32xbf16>
      %c0_31 = arith.constant 0 : index
      %c0_32 = arith.constant 0 : index
      %53 = vector.load %arg11[%c0_31, %c0_32] : memref<16x32xbf16, #tpu.memory_space<vmem>>, vector<16x32xbf16>
      tpu.vector_store %arg11[%c0_31, %c0_32], %52 {strides = array<i32>} : memref<16x32xbf16, #tpu.memory_space<vmem>>, vector<16x32xbf16>,
    } else {
    }
    %c0 = arith.constant 0 : index
    %c0_1 = arith.constant 0 : index
    %3 = vector.load %arg8[%c0, %c0_1] : memref<32x128xbf16, #tpu.memory_space<vmem>>, vector<32x128xbf16>
    %c0_2 = arith.constant 0 : index
    %c0_3 = arith.constant 0 : index
    %4 = vector.load %arg9[%c0_2, %c0_3] : memref<1x128xf32, #tpu.memory_space<vmem>>, vector<1x128xf32>
    %c0_4 = arith.constant 0 : index
    %c0_5 = arith.constant 0 : index
    %5 = vector.load %arg11[%c0_4, %c0_5] : memref<16x32xbf16, #tpu.memory_space<vmem>>, vector<16x32xbf16>
    %cst = arith.constant dense<0.000000e+00> : vector<16x128xf32>
    %6 = tpu.matmul %5, %3, %cst {dimension_numbers = #tpu.dot_dimension_numbers<[1], [0], [0], [1], [0, 0, 1, 1], [], []>} : vector<16x32xbf16>, vector<32x128xbf16>, vector<16x128xf32> -> vector<16x128xf32>
    %7 = vector.broadcast %4 : vector<1x128xf32> to vector<16x128xf32>
    %8 = arith.addf %6, %7 : vector<16x128xf32>
    %cst_6 = arith.constant 0.000000e+00 : f32
    %9 = vector.broadcast %cst_6 : f32 to vector<16x128xf32>
    %10 = arith.maximumf %8, %9 : vector<16x128xf32>
    %11 = vector.shape_cast %10 : vector<16x128xf32> to vector<1x16x128xf32>
    %12 = arith.truncf %11 : vector<1x16x128xf32> to vector<1x16x128xbf16>
    %c0_7 = arith.constant 0 : index
    %c0_8 = arith.constant 0 : index
    %c0_9 = arith.constant 0 : index
    %13 = vector.load %arg10[%c0_7, %c0_8, %c0_9] : memref<1x16x128xbf16, #tpu.memory_space<vmem>>, vector<1x16x128xbf16>
    tpu.vector_store %arg10[%c0_7, %c0_8, %c0_9], %12 {strides = array<i32>} : memref<1x16x128xbf16, #tpu.memory_space<vmem>>, vector<1x16x128xbf16>,
    return
  }
  func.func @transform_0(%arg0: i32, %arg1: i32, %arg2: i32) -> (i32, i32, i32) {
    %c0_i32 = arith.constant 0 : i32
    %c0_i32_0 = arith.constant 0 : i32
    return %arg0, %arg1, %c0_i32 : i32, i32, i32
  }
  func.func @transform_1(%arg0: i32, %arg1: i32, %arg2: i32) -> (i32, i32, i32) {
    %c0_i32 = arith.constant 0 : i32
    %c0_i32_0 = arith.constant 0 : i32
    %c0_i32_1 = arith.constant 0 : i32
    %c0_i32_2 = arith.constant 0 : i32
    return %c0_i32, %c0_i32_0, %c0_i32_1 : i32, i32, i32
  }
  func.func @transform_2(%arg0: i32, %arg1: i32, %arg2: i32) -> (i32, i32, i32) {
    %c0_i32 = arith.constant 0 : i32
    %c0_i32_0 = arith.constant 0 : i32
    %c0_i32_1 = arith.constant 0 : i32
    %c0_i32_2 = arith.constant 0 : i32
    return %c0_i32, %c0_i32_0, %c0_i32_1 : i32, i32, i32
  }
  func.func @transform_3(%arg0: i32, %arg1: i32, %arg2: i32) -> (i32, i32, i32) {
    %c0_i32 = arith.constant 0 : i32
    %c0_i32_0 = arith.constant 0 : i32
    %c0_i32_1 = arith.constant 0 : i32
    return %arg0, %c0_i32, %c0_i32_0 : i32, i32, i32
  }
  func.func @transform_4(%arg0: i32, %arg1: i32, %arg2: i32) -> (i32, i32, i32) {
    %c0_i32 = arith.constant 0 : i32
    %c0_i32_0 = arith.constant 0 : i32
    %c0_i32_1 = arith.constant 0 : i32
    return %arg0, %c0_i32, %c0_i32_0 : i32, i32, i32
  }
  func.func @transform_5(%arg0: i32, %arg1: i32, %arg2: i32) -> (i32, i32) {
    %c0_i32 = arith.constant 0 : i32
    %c0_i32_0 = arith.constant 0 : i32
    return %c0_i32, %arg2 : i32, i32
  }
  func.func @transform_6(%arg0: i32, %arg1: i32, %arg2: i32) -> (i32, i32) {
    %c0_i32 = arith.constant 0 : i32
    %c0_i32_0 = arith.constant 0 : i32
    return %c0_i32, %arg2 : i32, i32
  }
  func.func @transform_7(%arg0: i32, %arg1: i32, %arg2: i32) -> (i32, i32, i32) {
    %c0_i32 = arith.constant 0 : i32
    return %arg0, %arg1, %arg2 : i32, i32, i32
  }
}

module attributes {stable_mosaic.version = 11 : i64} {
  func.func @_ln_mod_linear_kernel(%arg0: i32, %arg1: i32, %arg2: i32, %arg3: memref<1x16x32xf32, #tpu.memory_space<vmem>>, %arg4: memref<1x1x32xf32, #tpu.memory_space<vmem>>, %arg5: memref<1x1x32xf32, #tpu.memory_space<vmem>>, %arg6: memref<1x1x32xf32, #tpu.memory_space<vmem>>, %arg7: memref<1x1x32xf32, #tpu.memory_space<vmem>>, %arg8: memref<1x32x96xbf16, #tpu.memory_space<vmem>>, %arg9: memref<1x1x96xf32, #tpu.memory_space<vmem>>, %arg10: memref<1x1x16x96xbf16, #tpu.memory_space<vmem>>, %arg11: memref<16x32xbf16, #tpu.memory_space<vmem>>) attributes {dimension_semantics = [#tpu.dimension_semantics<parallel>, #tpu.dimension_semantics<parallel>, #tpu.dimension_semantics<arbitrary>], iteration_bounds = array<i64: 2, 1, 2>, scalar_prefetch = 0 : i64, scratch_operands = 1 : i64, tpu.core_type = #tpu.core_type<tc>, window_params = [{transform_indices = @transform_0, window_bounds = array<i64: 1, 16, 32>}, {pipeline_mode = #tpu.pipeline_mode<synchronous>, transform_indices = @transform_1, window_bounds = array<i64: 1, 1, 32>}, {pipeline_mode = #tpu.pipeline_mode<synchronous>, transform_indices = @transform_2, window_bounds = array<i64: 1, 1, 32>}, {transform_indices = @transform_3, window_bounds = array<i64: 1, 1, 32>}, {transform_indices = @transform_4, window_bounds = array<i64: 1, 1, 32>}, {transform_indices = @transform_5, window_bounds = array<i64: 1, 32, 96>}, {transform_indices = @transform_6, window_bounds = array<i64: 1, 1, 96>}, {transform_indices = @transform_7, window_bounds = array<i64: 1, 1, 16, 96>}]} {
    %c0_i32 = arith.constant 0 : i32
    %0 = arith.cmpi eq, %arg2, %c0_i32 : i32
    %1 = arith.extui %0 : i1 to i32
    %c0_i32_0 = arith.constant 0 : i32
    %2 = arith.cmpi ne, %1, %c0_i32_0 : i32
    scf.if %2 {
      %c0_12 = arith.constant 0 : index
      %c0_13 = arith.constant 0 : index
      %c0_14 = arith.constant 0 : index
      %14 = vector.load %arg3[%c0_12, %c0_13, %c0_14] : memref<1x16x32xf32, #tpu.memory_space<vmem>>, vector<1x16x32xf32>
      %15 = vector.shape_cast %14 : vector<1x16x32xf32> to vector<16x32xf32>
      %cst_15 = arith.constant dense<0.000000e+00> : vector<16xf32>
      %16 = vector.multi_reduction <add>, %15, %cst_15 [1] : vector<16x32xf32> to vector<16xf32>
      %17 = vector.shape_cast %16 : vector<16xf32> to vector<16x1xf32>
      %cst_16 = arith.constant 3.200000e+01 : f32
      %18 = vector.broadcast %cst_16 : f32 to vector<16x1xf32>
      %19 = arith.divf %17, %18 : vector<16x1xf32>
      %20 = vector.broadcast %19 : vector<16x1xf32> to vector<16x32xf32>
      %21 = arith.subf %15, %20 : vector<16x32xf32>
      %22 = arith.mulf %21, %21 : vector<16x32xf32>
      %cst_17 = arith.constant dense<0.000000e+00> : vector<16xf32>
      %23 = vector.multi_reduction <add>, %22, %cst_17 [1] : vector<16x32xf32> to vector<16xf32>
      %24 = vector.shape_cast %23 : vector<16xf32> to vector<16x1xf32>
      %cst_18 = arith.constant 3.200000e+01 : f32
      %25 = vector.broadcast %cst_18 : f32 to vector<16x1xf32>
      %26 = arith.divf %24, %25 : vector<16x1xf32>
      %27 = vector.broadcast %19 : vector<16x1xf32> to vector<16x32xf32>
      %28 = arith.subf %15, %27 : vector<16x32xf32>
      %cst_19 = arith.constant 9.99999974E-6 : f32
      %29 = vector.broadcast %cst_19 : f32 to vector<16x1xf32>
      %30 = arith.addf %26, %29 : vector<16x1xf32>
      %31 = math.rsqrt %30 : vector<16x1xf32>
      %32 = vector.broadcast %31 : vector<16x1xf32> to vector<16x32xf32>
      %33 = arith.mulf %28, %32 : vector<16x32xf32>
      %c0_20 = arith.constant 0 : index
      %c0_21 = arith.constant 0 : index
      %c0_22 = arith.constant 0 : index
      %34 = vector.load %arg4[%c0_20, %c0_21, %c0_22] : memref<1x1x32xf32, #tpu.memory_space<vmem>>, vector<1x1x32xf32>
      %35 = vector.shape_cast %34 : vector<1x1x32xf32> to vector<1x32xf32>
      %36 = vector.broadcast %35 : vector<1x32xf32> to vector<16x32xf32>
      %37 = arith.mulf %33, %36 : vector<16x32xf32>
      %c0_23 = arith.constant 0 : index
      %c0_24 = arith.constant 0 : index
      %c0_25 = arith.constant 0 : index
      %38 = vector.load %arg5[%c0_23, %c0_24, %c0_25] : memref<1x1x32xf32, #tpu.memory_space<vmem>>, vector<1x1x32xf32>
      %39 = vector.shape_cast %38 : vector<1x1x32xf32> to vector<1x32xf32>
      %40 = vector.broadcast %39 : vector<1x32xf32> to vector<16x32xf32>
      %41 = arith.addf %37, %40 : vector<16x32xf32>
      %c0_26 = arith.constant 0 : index
      %c0_27 = arith.constant 0 : index
      %c0_28 = arith.constant 0 : index
      %42 = vector.load %arg6[%c0_26, %c0_27, %c0_28] : memref<1x1x32xf32, #tpu.memory_space<vmem>>, vector<1x1x32xf32>
      %43 = vector.shape_cast %42 : vector<1x1x32xf32> to vector<1x32xf32>
      %cst_29 = arith.constant 1.000000e+00 : f32
      %44 = vector.broadcast %cst_29 : f32 to vector<1x32xf32>
      %45 = arith.addf %44, %43 : vector<1x32xf32>
      %46 = vector.broadcast %45 : vector<1x32xf32> to vector<16x32xf32>
      %47 = arith.mulf %41, %46 : vector<16x32xf32>
      %c0_30 = arith.constant 0 : index
      %c0_31 = arith.constant 0 : index
      %c0_32 = arith.constant 0 : index
      %48 = vector.load %arg7[%c0_30, %c0_31, %c0_32] : memref<1x1x32xf32, #tpu.memory_space<vmem>>, vector<1x1x32xf32>
      %49 = vector.shape_cast %48 : vector<1x1x32xf32> to vector<1x32xf32>
      %50 = vector.broadcast %49 : vector<1x32xf32> to vector<16x32xf32>
      %51 = arith.addf %47, %50 : vector<16x32xf32>
      %52 = arith.truncf %51 : vector<16x32xf32> to vector<16x32xbf16>
      %c0_33 = arith.constant 0 : index
      %c0_34 = arith.constant 0 : index
      %53 = vector.load %arg11[%c0_33, %c0_34] : memref<16x32xbf16, #tpu.memory_space<vmem>>, vector<16x32xbf16>
      tpu.vector_store %arg11[%c0_33, %c0_34], %52 {strides = array<i32>} : memref<16x32xbf16, #tpu.memory_space<vmem>>, vector<16x32xbf16>,
    } else {
    }
    %c0 = arith.constant 0 : index
    %c0_1 = arith.constant 0 : index
    %c0_2 = arith.constant 0 : index
    %3 = vector.load %arg8[%c0, %c0_1, %c0_2] : memref<1x32x96xbf16, #tpu.memory_space<vmem>>, vector<1x32x96xbf16>
    %4 = vector.shape_cast %3 : vector<1x32x96xbf16> to vector<32x96xbf16>
    %c0_3 = arith.constant 0 : index
    %c0_4 = arith.constant 0 : index
    %c0_5 = arith.constant 0 : index
    %5 = vector.load %arg9[%c0_3, %c0_4, %c0_5] : memref<1x1x96xf32, #tpu.memory_space<vmem>>, vector<1x1x96xf32>
    %6 = vector.shape_cast %5 : vector<1x1x96xf32> to vector<1x96xf32>
    %c0_6 = arith.constant 0 : index
    %c0_7 = arith.constant 0 : index
    %7 = vector.load %arg11[%c0_6, %c0_7] : memref<16x32xbf16, #tpu.memory_space<vmem>>, vector<16x32xbf16>
    %cst = arith.constant dense<0.000000e+00> : vector<16x96xf32>
    %8 = tpu.matmul %7, %4, %cst {dimension_numbers = #tpu.dot_dimension_numbers<[1], [0], [0], [1], [0, 0, 1, 1], [], []>} : vector<16x32xbf16>, vector<32x96xbf16>, vector<16x96xf32> -> vector<16x96xf32>
    %9 = vector.broadcast %6 : vector<1x96xf32> to vector<16x96xf32>
    %10 = arith.addf %8, %9 : vector<16x96xf32>
    %11 = vector.shape_cast %10 : vector<16x96xf32> to vector<1x1x16x96xf32>
    %12 = arith.truncf %11 : vector<1x1x16x96xf32> to vector<1x1x16x96xbf16>
    %c0_8 = arith.constant 0 : index
    %c0_9 = arith.constant 0 : index
    %c0_10 = arith.constant 0 : index
    %c0_11 = arith.constant 0 : index
    %13 = vector.load %arg10[%c0_8, %c0_9, %c0_10, %c0_11] : memref<1x1x16x96xbf16, #tpu.memory_space<vmem>>, vector<1x1x16x96xbf16>
    tpu.vector_store %arg10[%c0_8, %c0_9, %c0_10, %c0_11], %12 {strides = array<i32>} : memref<1x1x16x96xbf16, #tpu.memory_space<vmem>>, vector<1x1x16x96xbf16>,
    return
  }
  func.func @transform_0(%arg0: i32, %arg1: i32, %arg2: i32) -> (i32, i32, i32) {
    %c0_i32 = arith.constant 0 : i32
    %c0_i32_0 = arith.constant 0 : i32
    return %arg0, %arg1, %c0_i32 : i32, i32, i32
  }
  func.func @transform_1(%arg0: i32, %arg1: i32, %arg2: i32) -> (i32, i32, i32) {
    %c0_i32 = arith.constant 0 : i32
    %c0_i32_0 = arith.constant 0 : i32
    %c0_i32_1 = arith.constant 0 : i32
    %c0_i32_2 = arith.constant 0 : i32
    return %c0_i32, %c0_i32_0, %c0_i32_1 : i32, i32, i32
  }
  func.func @transform_2(%arg0: i32, %arg1: i32, %arg2: i32) -> (i32, i32, i32) {
    %c0_i32 = arith.constant 0 : i32
    %c0_i32_0 = arith.constant 0 : i32
    %c0_i32_1 = arith.constant 0 : i32
    %c0_i32_2 = arith.constant 0 : i32
    return %c0_i32, %c0_i32_0, %c0_i32_1 : i32, i32, i32
  }
  func.func @transform_3(%arg0: i32, %arg1: i32, %arg2: i32) -> (i32, i32, i32) {
    %c0_i32 = arith.constant 0 : i32
    %c0_i32_0 = arith.constant 0 : i32
    %c0_i32_1 = arith.constant 0 : i32
    return %arg0, %c0_i32, %c0_i32_0 : i32, i32, i32
  }
  func.func @transform_4(%arg0: i32, %arg1: i32, %arg2: i32) -> (i32, i32, i32) {
    %c0_i32 = arith.constant 0 : i32
    %c0_i32_0 = arith.constant 0 : i32
    %c0_i32_1 = arith.constant 0 : i32
    return %arg0, %c0_i32, %c0_i32_0 : i32, i32, i32
  }
  func.func @transform_5(%arg0: i32, %arg1: i32, %arg2: i32) -> (i32, i32, i32) {
    %c0_i32 = arith.constant 0 : i32
    %c0_i32_0 = arith.constant 0 : i32
    %c0_i32_1 = arith.constant 0 : i32
    return %arg2, %c0_i32, %c0_i32_0 : i32, i32, i32
  }
  func.func @transform_6(%arg0: i32, %arg1: i32, %arg2: i32) -> (i32, i32, i32) {
    %c0_i32 = arith.constant 0 : i32
    %c0_i32_0 = arith.constant 0 : i32
    %c0_i32_1 = arith.constant 0 : i32
    return %arg2, %c0_i32, %c0_i32_0 : i32, i32, i32
  }
  func.func @transform_7(%arg0: i32, %arg1: i32, %arg2: i32) -> (i32, i32, i32, i32) {
    %c0_i32 = arith.constant 0 : i32
    %c0_i32_0 = arith.constant 0 : i32
    return %arg0, %arg2, %arg1, %c0_i32 : i32, i32, i32, i32
  }
}

module attributes {stable_mosaic.version = 11 : i64} {
  func.func @_linear_res_gate_kernel(%arg0: i32, %arg1: i32, %arg2: i32, %arg3: memref<1x16x128xbf16, #tpu.memory_space<vmem>>, %arg4: memref<128x32xbf16, #tpu.memory_space<vmem>>, %arg5: memref<1x32xf32, #tpu.memory_space<vmem>>, %arg6: memref<1x16x32xf32, #tpu.memory_space<vmem>>, %arg7: memref<1x1x32xf32, #tpu.memory_space<vmem>>, %arg8: memref<1x16x32xf32, #tpu.memory_space<vmem>>, %arg9: memref<16x32xf32, #tpu.memory_space<vmem>>) attributes {dimension_semantics = [#tpu.dimension_semantics<parallel>, #tpu.dimension_semantics<parallel>, #tpu.dimension_semantics<arbitrary>], iteration_bounds = array<i64: 2, 1, 1>, scalar_prefetch = 0 : i64, scratch_operands = 1 : i64, tpu.core_type = #tpu.core_type<tc>, window_params = [{transform_indices = @transform_0, window_bounds = array<i64: 1, 16, 128>}, {transform_indices = @transform_1, window_bounds = array<i64: 128, 32>}, {pipeline_mode = #tpu.pipeline_mode<synchronous>, transform_indices = @transform_2, window_bounds = array<i64: 1, 32>}, {transform_indices = @transform_3, window_bounds = array<i64: 1, 16, 32>}, {transform_indices = @transform_4, window_bounds = array<i64: 1, 1, 32>}, {transform_indices = @transform_5, window_bounds = array<i64: 1, 16, 32>}]} {
    %c0_i32 = arith.constant 0 : i32
    %0 = arith.cmpi eq, %arg2, %c0_i32 : i32
    %1 = arith.extui %0 : i1 to i32
    %c0_i32_0 = arith.constant 0 : i32
    %2 = arith.cmpi ne, %1, %c0_i32_0 : i32
    scf.if %2 {
      %cst_11 = arith.constant 0.000000e+00 : f32
      %13 = vector.broadcast %cst_11 : f32 to vector<16x32xf32>
      %c0_12 = arith.constant 0 : index
      %c0_13 = arith.constant 0 : index
      %14 = vector.load %arg9[%c0_12, %c0_13] : memref<16x32xf32, #tpu.memory_space<vmem>>, vector<16x32xf32>
      tpu.vector_store %arg9[%c0_12, %c0_13], %13 {strides = array<i32>} : memref<16x32xf32, #tpu.memory_space<vmem>>, vector<16x32xf32>,
    } else {
    }
    %c0 = arith.constant 0 : index
    %c0_1 = arith.constant 0 : index
    %3 = vector.load %arg9[%c0, %c0_1] : memref<16x32xf32, #tpu.memory_space<vmem>>, vector<16x32xf32>
    %c0_2 = arith.constant 0 : index
    %c0_3 = arith.constant 0 : index
    %c0_4 = arith.constant 0 : index
    %4 = vector.load %arg3[%c0_2, %c0_3, %c0_4] : memref<1x16x128xbf16, #tpu.memory_space<vmem>>, vector<1x16x128xbf16>
    %5 = vector.shape_cast %4 : vector<1x16x128xbf16> to vector<16x128xbf16>
    %c0_5 = arith.constant 0 : index
    %c0_6 = arith.constant 0 : index
    %6 = vector.load %arg4[%c0_5, %c0_6] : memref<128x32xbf16, #tpu.memory_space<vmem>>, vector<128x32xbf16>
    %cst = arith.constant dense<0.000000e+00> : vector<16x32xf32>
    %7 = tpu.matmul %5, %6, %cst {dimension_numbers = #tpu.dot_dimension_numbers<[1], [0], [0], [1], [0, 0, 1, 1], [], []>} : vector<16x128xbf16>, vector<128x32xbf16>, vector<16x32xf32> -> vector<16x32xf32>
    %8 = arith.addf %3, %7 : vector<16x32xf32>
    %c0_7 = arith.constant 0 : index
    %c0_8 = arith.constant 0 : index
    %9 = vector.load %arg9[%c0_7, %c0_8] : memref<16x32xf32, #tpu.memory_space<vmem>>, vector<16x32xf32>
    tpu.vector_store %arg9[%c0_7, %c0_8], %8 {strides = array<i32>} : memref<16x32xf32, #tpu.memory_space<vmem>>, vector<16x32xf32>,
    %c0_i32_9 = arith.constant 0 : i32
    %10 = arith.cmpi eq, %arg2, %c0_i32_9 : i32
    %11 = arith.extui %10 : i1 to i32
    %c0_i32_10 = arith.constant 0 : i32
    %12 = arith.cmpi ne, %11, %c0_i32_10 : i32
    scf.if %12 {
      %c0_11 = arith.constant 0 : index
      %c0_12 = arith.constant 0 : index
      %13 = vector.load %arg9[%c0_11, %c0_12] : memref<16x32xf32, #tpu.memory_space<vmem>>, vector<16x32xf32>
      %c0_13 = arith.constant 0 : index
      %c0_14 = arith.constant 0 : index
      %14 = vector.load %arg5[%c0_13, %c0_14] : memref<1x32xf32, #tpu.memory_space<vmem>>, vector<1x32xf32>
      %15 = vector.broadcast %14 : vector<1x32xf32> to vector<16x32xf32>
      %16 = arith.addf %13, %15 : vector<16x32xf32>
      %c0_15 = arith.constant 0 : index
      %c0_16 = arith.constant 0 : index
      %c0_17 = arith.constant 0 : index
      %17 = vector.load %arg6[%c0_15, %c0_16, %c0_17] : memref<1x16x32xf32, #tpu.memory_space<vmem>>, vector<1x16x32xf32>
      %18 = vector.shape_cast %17 : vector<1x16x32xf32> to vector<16x32xf32>
      %c0_18 = arith.constant 0 : index
      %c0_19 = arith.constant 0 : index
      %c0_20 = arith.constant 0 : index
      %19 = vector.load %arg7[%c0_18, %c0_19, %c0_20] : memref<1x1x32xf32, #tpu.memory_space<vmem>>, vector<1x1x32xf32>
      %20 = vector.shape_cast %19 : vector<1x1x32xf32> to vector<1x32xf32>
      %21 = vector.broadcast %20 : vector<1x32xf32> to vector<16x32xf32>
      %22 = arith.mulf %16, %21 : vector<16x32xf32>
      %23 = arith.addf %18, %22 : vector<16x32xf32>
      %c0_21 = arith.constant 0 : index
      %c0_22 = arith.constant 0 : index
      %c0_23 = arith.constant 0 : index
      %24 = vector.load %arg8[%c0_21, %c0_22, %c0_23] : memref<1x16x32xf32, #tpu.memory_space<vmem>>, vector<1x16x32xf32>
      %25 = vector.shape_cast %24 : vector<1x16x32xf32> to vector<16x32xf32>
      %26 = vector.shape_cast %23 : vector<16x32xf32> to vector<1x16x32xf32>
      tpu.vector_store %arg8[%c0_21, %c0_22, %c0_23], %26 {strides = array<i32>} : memref<1x16x32xf32, #tpu.memory_space<vmem>>, vector<1x16x32xf32>,
    } else {
    }
    return
  }
  func.func @transform_0(%arg0: i32, %arg1: i32, %arg2: i32) -> (i32, i32, i32) {
    %c0_i32 = arith.constant 0 : i32
    return %arg0, %arg1, %arg2 : i32, i32, i32
  }
  func.func @transform_1(%arg0: i32, %arg1: i32, %arg2: i32) -> (i32, i32) {
    %c0_i32 = arith.constant 0 : i32
    %c0_i32_0 = arith.constant 0 : i32
    return %arg2, %c0_i32 : i32, i32
  }
  func.func @transform_2(%arg0: i32, %arg1: i32, %arg2: i32) -> (i32, i32) {
    %c0_i32 = arith.constant 0 : i32
    %c0_i32_0 = arith.constant 0 : i32
    %c0_i32_1 = arith.constant 0 : i32
    return %c0_i32, %c0_i32_0 : i32, i32
  }
  func.func @transform_3(%arg0: i32, %arg1: i32, %arg2: i32) -> (i32, i32, i32) {
    %c0_i32 = arith.constant 0 : i32
    %c0_i32_0 = arith.constant 0 : i32
    return %arg0, %arg1, %c0_i32 : i32, i32, i32
  }
  func.func @transform_4(%arg0: i32, %arg1: i32, %arg2: i32) -> (i32, i32, i32) {
    %c0_i32 = arith.constant 0 : i32
    %c0_i32_0 = arith.constant 0 : i32
    %c0_i32_1 = arith.constant 0 : i32
    return %arg0, %c0_i32, %c0_i32_0 : i32, i32, i32
  }
  func.func @transform_5(%arg0: i32, %arg1: i32, %arg2: i32) -> (i32, i32, i32) {
    %c0_i32 = arith.constant 0 : i32
    %c0_i32_0 = arith.constant 0 : i32
    return %arg0, %arg1, %c0_i32 : i32, i32, i32
  }
}

module attributes {stable_mosaic.version = 11 : i64} {
  func.func @_attn_out_res_kernel(%arg0: i32, %arg1: i32, %arg2: memref<1x1x16x96xbf16, #tpu.memory_space<vmem>>, %arg3: memref<32x32xbf16, #tpu.memory_space<vmem>>, %arg4: memref<1x32xf32, #tpu.memory_space<vmem>>, %arg5: memref<1x16x32xf32, #tpu.memory_space<vmem>>, %arg6: memref<1x1x32xf32, #tpu.memory_space<vmem>>, %arg7: memref<1x16x32xf32, #tpu.memory_space<vmem>>, %arg8: memref<16x32xf32, #tpu.memory_space<vmem>>) attributes {dimension_semantics = [#tpu.dimension_semantics<parallel>, #tpu.dimension_semantics<arbitrary>], iteration_bounds = array<i64: 2, 2>, scalar_prefetch = 0 : i64, scratch_operands = 1 : i64, tpu.core_type = #tpu.core_type<tc>, window_params = [{transform_indices = @transform_0, window_bounds = array<i64: 1, 1, 16, 96>}, {transform_indices = @transform_1, window_bounds = array<i64: 32, 32>}, {pipeline_mode = #tpu.pipeline_mode<synchronous>, transform_indices = @transform_2, window_bounds = array<i64: 1, 32>}, {transform_indices = @transform_3, window_bounds = array<i64: 1, 16, 32>}, {transform_indices = @transform_4, window_bounds = array<i64: 1, 1, 32>}, {transform_indices = @transform_5, window_bounds = array<i64: 1, 16, 32>}]} {
    %c0_i32 = arith.constant 0 : i32
    %0 = arith.cmpi eq, %arg1, %c0_i32 : i32
    %1 = arith.extui %0 : i1 to i32
    %c0_i32_0 = arith.constant 0 : i32
    %2 = arith.cmpi ne, %1, %c0_i32_0 : i32
    scf.if %2 {
      %cst_15 = arith.constant 0.000000e+00 : f32
      %30 = vector.broadcast %cst_15 : f32 to vector<16x32xf32>
      %c0_16 = arith.constant 0 : index
      %c0_17 = arith.constant 0 : index
      %31 = vector.load %arg8[%c0_16, %c0_17] : memref<16x32xf32, #tpu.memory_space<vmem>>, vector<16x32xf32>
      tpu.vector_store %arg8[%c0_16, %c0_17], %30 {strides = array<i32>} : memref<16x32xf32, #tpu.memory_space<vmem>>, vector<16x32xf32>,
    } else {
    }
    %c0 = arith.constant 0 : index
    %c0_1 = arith.constant 0 : index
    %c0_2 = arith.constant 0 : index
    %c0_3 = arith.constant 0 : index
    %3 = vector.load %arg2[%c0, %c0_1, %c0_2, %c0_3] : memref<1x1x16x96xbf16, #tpu.memory_space<vmem>>, vector<1x1x16x96xbf16>
    %4 = vector.shape_cast %3 : vector<1x1x16x96xbf16> to vector<16x96xbf16>
    %5 = vector.extract_strided_slice %4 {offsets = [0, 0], sizes = [16, 32], strides = [1, 1]} : vector<16x96xbf16> to vector<16x32xbf16>
    %6 = vector.extract_strided_slice %4 {offsets = [0, 32], sizes = [16, 32], strides = [1, 1]} : vector<16x96xbf16> to vector<16x32xbf16>
    %7 = vector.extract_strided_slice %4 {offsets = [0, 64], sizes = [16, 32], strides = [1, 1]} : vector<16x96xbf16> to vector<16x32xbf16>
    %cst = arith.constant dense<0.000000e+00> : vector<16x16xf32>
    %8 = tpu.matmul %5, %6, %cst {dimension_numbers = #tpu.dot_dimension_numbers<[1], [1], [0], [0], [0, 0, 1, 0], [], []>} : vector<16x32xbf16>, vector<16x32xbf16>, vector<16x16xf32> -> vector<16x16xf32>
    %cst_4 = arith.constant dense<0xFF800000> : vector<16xf32>
    %9 = vector.multi_reduction <maximumf>, %8, %cst_4 [1] : vector<16x16xf32> to vector<16xf32>
    %10 = vector.shape_cast %9 : vector<16xf32> to vector<16x1xf32>
    %11 = vector.broadcast %10 : vector<16x1xf32> to vector<16x16xf32>
    %12 = arith.subf %8, %11 : vector<16x16xf32>
    %13 = math.exp %12 : vector<16x16xf32>
    %cst_5 = arith.constant dense<0.000000e+00> : vector<16xf32>
    %14 = vector.multi_reduction <add>, %13, %cst_5 [1] : vector<16x16xf32> to vector<16xf32>
    %15 = vector.shape_cast %14 : vector<16xf32> to vector<16x1xf32>
    %16 = tpu.reciprocal %15 {approx = true} : vector<16x1xf32> -> vector<16x1xf32>
    %17 = vector.broadcast %16 : vector<16x1xf32> to vector<16x16xf32>
    %18 = arith.mulf %13, %17 : vector<16x16xf32>
    %19 = arith.truncf %18 : vector<16x16xf32> to vector<16x16xbf16>
    %cst_6 = arith.constant dense<0.000000e+00> : vector<16x32xf32>
    %20 = tpu.matmul %19, %7, %cst_6 {dimension_numbers = #tpu.dot_dimension_numbers<[1], [0], [0], [1], [0, 0, 1, 1], [], []>} : vector<16x16xbf16>, vector<16x32xbf16>, vector<16x32xf32> -> vector<16x32xf32>
    %c0_7 = arith.constant 0 : index
    %c0_8 = arith.constant 0 : index
    %21 = vector.load %arg8[%c0_7, %c0_8] : memref<16x32xf32, #tpu.memory_space<vmem>>, vector<16x32xf32>
    %22 = arith.truncf %20 : vector<16x32xf32> to vector<16x32xbf16>
    %c0_9 = arith.constant 0 : index
    %c0_10 = arith.constant 0 : index
    %23 = vector.load %arg3[%c0_9, %c0_10] : memref<32x32xbf16, #tpu.memory_space<vmem>>, vector<32x32xbf16>
    %cst_11 = arith.constant dense<0.000000e+00> : vector<16x32xf32>
    %24 = tpu.matmul %22, %23, %cst_11 {dimension_numbers = #tpu.dot_dimension_numbers<[1], [0], [0], [1], [0, 0, 1, 1], [], []>} : vector<16x32xbf16>, vector<32x32xbf16>, vector<16x32xf32> -> vector<16x32xf32>
    %25 = arith.addf %21, %24 : vector<16x32xf32>
    %c0_12 = arith.constant 0 : index
    %c0_13 = arith.constant 0 : index
    %26 = vector.load %arg8[%c0_12, %c0_13] : memref<16x32xf32, #tpu.memory_space<vmem>>, vector<16x32xf32>
    tpu.vector_store %arg8[%c0_12, %c0_13], %25 {strides = array<i32>} : memref<16x32xf32, #tpu.memory_space<vmem>>, vector<16x32xf32>,
    %c1_i32 = arith.constant 1 : i32
    %27 = arith.cmpi eq, %arg1, %c1_i32 : i32
    %28 = arith.extui %27 : i1 to i32
    %c0_i32_14 = arith.constant 0 : i32
    %29 = arith.cmpi ne, %28, %c0_i32_14 : i32
    scf.if %29 {
      %c0_15 = arith.constant 0 : index
      %c0_16 = arith.constant 0 : index
      %30 = vector.load %arg8[%c0_15, %c0_16] : memref<16x32xf32, #tpu.memory_space<vmem>>, vector<16x32xf32>
      %c0_17 = arith.constant 0 : index
      %c0_18 = arith.constant 0 : index
      %31 = vector.load %arg4[%c0_17, %c0_18] : memref<1x32xf32, #tpu.memory_space<vmem>>, vector<1x32xf32>
      %32 = vector.broadcast %31 : vector<1x32xf32> to vector<16x32xf32>
      %33 = arith.addf %30, %32 : vector<16x32xf32>
      %c0_19 = arith.constant 0 : index
      %c0_20 = arith.constant 0 : index
      %c0_21 = arith.constant 0 : index
      %34 = vector.load %arg5[%c0_19, %c0_20, %c0_21] : memref<1x16x32xf32, #tpu.memory_space<vmem>>, vector<1x16x32xf32>
      %35 = vector.shape_cast %34 : vector<1x16x32xf32> to vector<16x32xf32>
      %c0_22 = arith.constant 0 : index
      %c0_23 = arith.constant 0 : index
      %c0_24 = arith.constant 0 : index
      %36 = vector.load %arg6[%c0_22, %c0_23, %c0_24] : memref<1x1x32xf32, #tpu.memory_space<vmem>>, vector<1x1x32xf32>
      %37 = vector.shape_cast %36 : vector<1x1x32xf32> to vector<1x32xf32>
      %38 = vector.broadcast %37 : vector<1x32xf32> to vector<16x32xf32>
      %39 = arith.mulf %33, %38 : vector<16x32xf32>
      %40 = arith.addf %35, %39 : vector<16x32xf32>
      %c0_25 = arith.constant 0 : index
      %c0_26 = arith.constant 0 : index
      %c0_27 = arith.constant 0 : index
      %41 = vector.load %arg7[%c0_25, %c0_26, %c0_27] : memref<1x16x32xf32, #tpu.memory_space<vmem>>, vector<1x16x32xf32>
      %42 = vector.shape_cast %41 : vector<1x16x32xf32> to vector<16x32xf32>
      %43 = vector.shape_cast %40 : vector<16x32xf32> to vector<1x16x32xf32>
      tpu.vector_store %arg7[%c0_25, %c0_26, %c0_27], %43 {strides = array<i32>} : memref<1x16x32xf32, #tpu.memory_space<vmem>>, vector<1x16x32xf32>,
    } else {
    }
    return
  }
  func.func @transform_0(%arg0: i32, %arg1: i32) -> (i32, i32, i32, i32) {
    %c0_i32 = arith.constant 0 : i32
    %c0_i32_0 = arith.constant 0 : i32
    %c0_i32_1 = arith.constant 0 : i32
    return %arg0, %arg1, %c0_i32, %c0_i32_0 : i32, i32, i32, i32
  }
  func.func @transform_1(%arg0: i32, %arg1: i32) -> (i32, i32) {
    %c0_i32 = arith.constant 0 : i32
    %c0_i32_0 = arith.constant 0 : i32
    return %arg1, %c0_i32 : i32, i32
  }
  func.func @transform_2(%arg0: i32, %arg1: i32) -> (i32, i32) {
    %c0_i32 = arith.constant 0 : i32
    %c0_i32_0 = arith.constant 0 : i32
    %c0_i32_1 = arith.constant 0 : i32
    return %c0_i32, %c0_i32_0 : i32, i32
  }
  func.func @transform_3(%arg0: i32, %arg1: i32) -> (i32, i32, i32) {
    %c0_i32 = arith.constant 0 : i32
    %c0_i32_0 = arith.constant 0 : i32
    %c0_i32_1 = arith.constant 0 : i32
    return %arg0, %c0_i32, %c0_i32_0 : i32, i32, i32
  }
  func.func @transform_4(%arg0: i32, %arg1: i32) -> (i32, i32, i32) {
    %c0_i32 = arith.constant 0 : i32
    %c0_i32_0 = arith.constant 0 : i32
    %c0_i32_1 = arith.constant 0 : i32
    return %arg0, %c0_i32, %c0_i32_0 : i32, i32, i32
  }
  func.func @transform_5(%arg0: i32, %arg1: i32) -> (i32, i32, i32) {
    %c0_i32 = arith.constant 0 : i32
    %c0_i32_0 = arith.constant 0 : i32
    %c0_i32_1 = arith.constant 0 : i32
    return %arg0, %c0_i32, %c0_i32_0 : i32, i32, i32
  }
}

module attributes {stable_mosaic.version = 11 : i64} {
  func.func @_ln_mod_linear_kernel(%arg0: i32, %arg1: i32, %arg2: i32, %arg3: memref<1x16x32xf32, #tpu.memory_space<vmem>>, %arg4: memref<1x1x32xf32, #tpu.memory_space<vmem>>, %arg5: memref<1x1x32xf32, #tpu.memory_space<vmem>>, %arg6: memref<1x1x32xf32, #tpu.memory_space<vmem>>, %arg7: memref<1x1x32xf32, #tpu.memory_space<vmem>>, %arg8: memref<32x16xbf16, #tpu.memory_space<vmem>>, %arg9: memref<1x16xf32, #tpu.memory_space<vmem>>, %arg10: memref<1x16x16xf32, #tpu.memory_space<vmem>>, %arg11: memref<16x32xbf16, #tpu.memory_space<vmem>>) attributes {dimension_semantics = [#tpu.dimension_semantics<parallel>, #tpu.dimension_semantics<parallel>, #tpu.dimension_semantics<arbitrary>], iteration_bounds = array<i64: 2, 1, 1>, scalar_prefetch = 0 : i64, scratch_operands = 1 : i64, tpu.core_type = #tpu.core_type<tc>, window_params = [{transform_indices = @transform_0, window_bounds = array<i64: 1, 16, 32>}, {pipeline_mode = #tpu.pipeline_mode<synchronous>, transform_indices = @transform_1, window_bounds = array<i64: 1, 1, 32>}, {pipeline_mode = #tpu.pipeline_mode<synchronous>, transform_indices = @transform_2, window_bounds = array<i64: 1, 1, 32>}, {transform_indices = @transform_3, window_bounds = array<i64: 1, 1, 32>}, {transform_indices = @transform_4, window_bounds = array<i64: 1, 1, 32>}, {transform_indices = @transform_5, window_bounds = array<i64: 32, 16>}, {transform_indices = @transform_6, window_bounds = array<i64: 1, 16>}, {transform_indices = @transform_7, window_bounds = array<i64: 1, 16, 16>}]} {
    %c0_i32 = arith.constant 0 : i32
    %0 = arith.cmpi eq, %arg2, %c0_i32 : i32
    %1 = arith.extui %0 : i1 to i32
    %c0_i32_0 = arith.constant 0 : i32
    %2 = arith.cmpi ne, %1, %c0_i32_0 : i32
    scf.if %2 {
      %c0_9 = arith.constant 0 : index
      %c0_10 = arith.constant 0 : index
      %c0_11 = arith.constant 0 : index
      %11 = vector.load %arg3[%c0_9, %c0_10, %c0_11] : memref<1x16x32xf32, #tpu.memory_space<vmem>>, vector<1x16x32xf32>
      %12 = vector.shape_cast %11 : vector<1x16x32xf32> to vector<16x32xf32>
      %cst_12 = arith.constant dense<0.000000e+00> : vector<16xf32>
      %13 = vector.multi_reduction <add>, %12, %cst_12 [1] : vector<16x32xf32> to vector<16xf32>
      %14 = vector.shape_cast %13 : vector<16xf32> to vector<16x1xf32>
      %cst_13 = arith.constant 3.200000e+01 : f32
      %15 = vector.broadcast %cst_13 : f32 to vector<16x1xf32>
      %16 = arith.divf %14, %15 : vector<16x1xf32>
      %17 = vector.broadcast %16 : vector<16x1xf32> to vector<16x32xf32>
      %18 = arith.subf %12, %17 : vector<16x32xf32>
      %19 = arith.mulf %18, %18 : vector<16x32xf32>
      %cst_14 = arith.constant dense<0.000000e+00> : vector<16xf32>
      %20 = vector.multi_reduction <add>, %19, %cst_14 [1] : vector<16x32xf32> to vector<16xf32>
      %21 = vector.shape_cast %20 : vector<16xf32> to vector<16x1xf32>
      %cst_15 = arith.constant 3.200000e+01 : f32
      %22 = vector.broadcast %cst_15 : f32 to vector<16x1xf32>
      %23 = arith.divf %21, %22 : vector<16x1xf32>
      %24 = vector.broadcast %16 : vector<16x1xf32> to vector<16x32xf32>
      %25 = arith.subf %12, %24 : vector<16x32xf32>
      %cst_16 = arith.constant 9.99999974E-6 : f32
      %26 = vector.broadcast %cst_16 : f32 to vector<16x1xf32>
      %27 = arith.addf %23, %26 : vector<16x1xf32>
      %28 = math.rsqrt %27 : vector<16x1xf32>
      %29 = vector.broadcast %28 : vector<16x1xf32> to vector<16x32xf32>
      %30 = arith.mulf %25, %29 : vector<16x32xf32>
      %c0_17 = arith.constant 0 : index
      %c0_18 = arith.constant 0 : index
      %c0_19 = arith.constant 0 : index
      %31 = vector.load %arg4[%c0_17, %c0_18, %c0_19] : memref<1x1x32xf32, #tpu.memory_space<vmem>>, vector<1x1x32xf32>
      %32 = vector.shape_cast %31 : vector<1x1x32xf32> to vector<1x32xf32>
      %33 = vector.broadcast %32 : vector<1x32xf32> to vector<16x32xf32>
      %34 = arith.mulf %30, %33 : vector<16x32xf32>
      %c0_20 = arith.constant 0 : index
      %c0_21 = arith.constant 0 : index
      %c0_22 = arith.constant 0 : index
      %35 = vector.load %arg5[%c0_20, %c0_21, %c0_22] : memref<1x1x32xf32, #tpu.memory_space<vmem>>, vector<1x1x32xf32>
      %36 = vector.shape_cast %35 : vector<1x1x32xf32> to vector<1x32xf32>
      %37 = vector.broadcast %36 : vector<1x32xf32> to vector<16x32xf32>
      %38 = arith.addf %34, %37 : vector<16x32xf32>
      %c0_23 = arith.constant 0 : index
      %c0_24 = arith.constant 0 : index
      %c0_25 = arith.constant 0 : index
      %39 = vector.load %arg6[%c0_23, %c0_24, %c0_25] : memref<1x1x32xf32, #tpu.memory_space<vmem>>, vector<1x1x32xf32>
      %40 = vector.shape_cast %39 : vector<1x1x32xf32> to vector<1x32xf32>
      %cst_26 = arith.constant 1.000000e+00 : f32
      %41 = vector.broadcast %cst_26 : f32 to vector<1x32xf32>
      %42 = arith.addf %41, %40 : vector<1x32xf32>
      %43 = vector.broadcast %42 : vector<1x32xf32> to vector<16x32xf32>
      %44 = arith.mulf %38, %43 : vector<16x32xf32>
      %c0_27 = arith.constant 0 : index
      %c0_28 = arith.constant 0 : index
      %c0_29 = arith.constant 0 : index
      %45 = vector.load %arg7[%c0_27, %c0_28, %c0_29] : memref<1x1x32xf32, #tpu.memory_space<vmem>>, vector<1x1x32xf32>
      %46 = vector.shape_cast %45 : vector<1x1x32xf32> to vector<1x32xf32>
      %47 = vector.broadcast %46 : vector<1x32xf32> to vector<16x32xf32>
      %48 = arith.addf %44, %47 : vector<16x32xf32>
      %49 = arith.truncf %48 : vector<16x32xf32> to vector<16x32xbf16>
      %c0_30 = arith.constant 0 : index
      %c0_31 = arith.constant 0 : index
      %50 = vector.load %arg11[%c0_30, %c0_31] : memref<16x32xbf16, #tpu.memory_space<vmem>>, vector<16x32xbf16>
      tpu.vector_store %arg11[%c0_30, %c0_31], %49 {strides = array<i32>} : memref<16x32xbf16, #tpu.memory_space<vmem>>, vector<16x32xbf16>,
    } else {
    }
    %c0 = arith.constant 0 : index
    %c0_1 = arith.constant 0 : index
    %3 = vector.load %arg8[%c0, %c0_1] : memref<32x16xbf16, #tpu.memory_space<vmem>>, vector<32x16xbf16>
    %c0_2 = arith.constant 0 : index
    %c0_3 = arith.constant 0 : index
    %4 = vector.load %arg9[%c0_2, %c0_3] : memref<1x16xf32, #tpu.memory_space<vmem>>, vector<1x16xf32>
    %c0_4 = arith.constant 0 : index
    %c0_5 = arith.constant 0 : index
    %5 = vector.load %arg11[%c0_4, %c0_5] : memref<16x32xbf16, #tpu.memory_space<vmem>>, vector<16x32xbf16>
    %cst = arith.constant dense<0.000000e+00> : vector<16x16xf32>
    %6 = tpu.matmul %5, %3, %cst {dimension_numbers = #tpu.dot_dimension_numbers<[1], [0], [0], [1], [0, 0, 1, 1], [], []>} : vector<16x32xbf16>, vector<32x16xbf16>, vector<16x16xf32> -> vector<16x16xf32>
    %7 = vector.broadcast %4 : vector<1x16xf32> to vector<16x16xf32>
    %8 = arith.addf %6, %7 : vector<16x16xf32>
    %9 = vector.shape_cast %8 : vector<16x16xf32> to vector<1x16x16xf32>
    %c0_6 = arith.constant 0 : index
    %c0_7 = arith.constant 0 : index
    %c0_8 = arith.constant 0 : index
    %10 = vector.load %arg10[%c0_6, %c0_7, %c0_8] : memref<1x16x16xf32, #tpu.memory_space<vmem>>, vector<1x16x16xf32>
    tpu.vector_store %arg10[%c0_6, %c0_7, %c0_8], %9 {strides = array<i32>} : memref<1x16x16xf32, #tpu.memory_space<vmem>>, vector<1x16x16xf32>,
    return
  }
  func.func @transform_0(%arg0: i32, %arg1: i32, %arg2: i32) -> (i32, i32, i32) {
    %c0_i32 = arith.constant 0 : i32
    %c0_i32_0 = arith.constant 0 : i32
    return %arg0, %arg1, %c0_i32 : i32, i32, i32
  }
  func.func @transform_1(%arg0: i32, %arg1: i32, %arg2: i32) -> (i32, i32, i32) {
    %c0_i32 = arith.constant 0 : i32
    %c0_i32_0 = arith.constant 0 : i32
    %c0_i32_1 = arith.constant 0 : i32
    %c0_i32_2 = arith.constant 0 : i32
    return %c0_i32, %c0_i32_0, %c0_i32_1 : i32, i32, i32
  }
  func.func @transform_2(%arg0: i32, %arg1: i32, %arg2: i32) -> (i32, i32, i32) {
    %c0_i32 = arith.constant 0 : i32
    %c0_i32_0 = arith.constant 0 : i32
    %c0_i32_1 = arith.constant 0 : i32
    %c0_i32_2 = arith.constant 0 : i32
    return %c0_i32, %c0_i32_0, %c0_i32_1 : i32, i32, i32
  }
  func.func @transform_3(%arg0: i32, %arg1: i32, %arg2: i32) -> (i32, i32, i32) {
    %c0_i32 = arith.constant 0 : i32
    %c0_i32_0 = arith.constant 0 : i32
    %c0_i32_1 = arith.constant 0 : i32
    return %arg0, %c0_i32, %c0_i32_0 : i32, i32, i32
  }
  func.func @transform_4(%arg0: i32, %arg1: i32, %arg2: i32) -> (i32, i32, i32) {
    %c0_i32 = arith.constant 0 : i32
    %c0_i32_0 = arith.constant 0 : i32
    %c0_i32_1 = arith.constant 0 : i32
    return %arg0, %c0_i32, %c0_i32_0 : i32, i32, i32
  }
  func.func @transform_5(%arg0: i32, %arg1: i32, %arg2: i32) -> (i32, i32) {
    %c0_i32 = arith.constant 0 : i32
    %c0_i32_0 = arith.constant 0 : i32
    return %c0_i32, %arg2 : i32, i32
  }
  func.func @transform_6(%arg0: i32, %arg1: i32, %arg2: i32) -> (i32, i32) {
    %c0_i32 = arith.constant 0 : i32
    %c0_i32_0 = arith.constant 0 : i32
    return %c0_i32, %arg2 : i32, i32
  }
  func.func @transform_7(%arg0: i32, %arg1: i32, %arg2: i32) -> (i32, i32, i32) {
    %c0_i32 = arith.constant 0 : i32
    return %arg0, %arg1, %arg2 : i32, i32, i32
  }
}

</mosaic_0001>

<llo_original>
// kernel: _lambda_.11
$region0: #{_lambda_.11}
  #allocation0 [shape = 'u32[]', space=smem, size = 0x4, offset = 0x4, fixed_abs, tag = 'smem constant byte address 0x4 - core index']
  #allocation1 [shape = 'u32[72,128]{1,0:T(1,128)}', space=vmem, size = 0x9000, scoped, tag = 'internal scratch']
  #allocation2 [shape = 'f32[32,16]{1,0:T(8,128)}', space=vmem, size = 0x4000, scoped, tag = 'scratch operand']
  %s0 = inlined_call_operand.vmem [shape: f32[32,16], index: 0, kind: input, shape index: {}]
  %s1 = inlined_call_operand.vmem [shape: bf16[16,16], index: 1, kind: input, shape index: {}]
  %s2 = inlined_call_operand.vmem [shape: f32[1,16], index: 2, kind: input, shape index: {}]
  %s3 = inlined_call_operand.vmem [shape: f32[32,16], index: 3, kind: output, shape index: {}]
  %s4 = sld [smem:[#allocation0]]
  $region30: #{_lambda_.11} parent=0
    _
  %s6 = ssub.s32 1, %s4
  %s7 = scalar_select 0, %s6, %s4
  // Predicated region
  $region2: #{_lambda_.11} parent=0 // pred_check
    _
  $region3: #{_lambda_.11} parent=0 // pred_check_branch
    %9 = sbr.rel (0) target = $region5
  $region4: #{_lambda_.11} parent=0 // pred_region
    _
  $region5: #{_lambda_.11} parent=0 // pred_fallthru
    _
  // Predicated region
  $region6: #{_lambda_.11} parent=0 // pred_check
    _
  $region7: #{_lambda_.11} parent=0 // pred_check_branch
    %11 = sbr.rel (0) target = $region9
  $region8: #{_lambda_.11} parent=0 // pred_region
    _
  $region9: #{_lambda_.11} parent=0 // pred_fallthru
    _
  // Predicated region
  $region10: #{_lambda_.11} parent=0 // pred_check
    _
  $region11: #{_lambda_.11} parent=0 // pred_check_branch
    %13 = sbr.rel (0) target = $region13
  $region12: #{_lambda_.11} parent=0 // pred_region
    _
  $region13: #{_lambda_.11} parent=0 // pred_fallthru
    _
  %p15 = scmp.eq.s32.totalorder 0, 0
  // Predicated region
  $region14: #{_lambda_.11} parent=0 // pred_check
    %p16 = pneg %p15
  $region15: #{_lambda_.11} parent=0 // pred_check_branch
    %18 = sbr.rel (%p16) target = $region17
  $region16: #{_lambda_.11} parent=0 // pred_region
    %vm19 = vcmask 130048
    %20 = vst.msk [vmem:[#allocation2] sm:$0xff] %vm19, 0.0
    %21 = vst.msk [vmem:[#allocation2 + $0x8] sm:$0xff] %vm19, 0.0
    %22 = vst.msk [vmem:[#allocation2 + $0x10] sm:$0xff] %vm19, 0.0
    %23 = vst.msk [vmem:[#allocation2 + $0x18] sm:$0xff] %vm19, 0.0
  $region17: #{_lambda_.11} parent=0 // pred_fallthru
    _
  %v24 = vld [vmem:[#allocation2] sm:$0xff]
  %v25 = vld [vmem:[#allocation2 + $0x8] sm:$0xff]
  %v26 = vld [vmem:[#allocation2 + $0x10] sm:$0xff]
  %v27 = vld [vmem:[#allocation2 + $0x18] sm:$0xff]
  %v28 = vld [vmem:[%s0] sm:$0xff]
  %v29 = vld [vmem:[%s0 + $0x8] sm:$0xff]
  %v30 = vld [vmem:[%s0 + $0x10] sm:$0xff]
  %v31 = vld [vmem:[%s0 + $0x18] sm:$0xff]
  %v32 = vpack.c.bf16 %v29, %v28
  %v33 = vpack.c.bf16 %v31, %v30
  %v34 = vld [vmem:[%s1] sm:$0xf]
  %v35 = vld [vmem:[%s1 + $0x4] sm:$0xf]
  %v38 = vunpack.c.l.b16 %v34
  %v39 = vunpack.c.l.b16 %v35
  %v40 = vpack.c.b16 %v39, %v38
  %vm42 = vcmask 130048
  %v44 = vsel %vm42, %v32, 0
  %v47 = vsel %vm42, %v33, 0
  %49 = vmatpush.bf16.msra.mxu0 0
  %50 = vmatpush.bf16.msra.mxu0 0
  %51 = vmatpush.bf16.msra.mxu0 0
  %52 = vmatpush.bf16.msra.mxu0 0
  %53 = vmatpush.bf16.msra.mxu0 0
  %54 = vmatpush.bf16.msra.mxu0 0
  %55 = vmatpush.bf16.msra.mxu0 0
  %56 = vmatpush.bf16.msra.mxu0 %v40
  %57 = vmatmul.bf16.gmra.mxu0 %v44
  %v58 = vpop.f32.mrf.mxu0
  %v59 = vadd.f32 0.0, %v58
  %v60 = vpop.f32.mrf.mxu0
  %v61 = vadd.f32 0.0, %v60
  %62 = vmatmul.bf16.gmra.mxu0 %v47
  %v63 = vpop.f32.mrf.mxu0
  %v64 = vadd.f32 0.0, %v63
  %v65 = vpop.f32.mrf.mxu0
  %v66 = vadd.f32 0.0, %v65
  %67 = vdwg.mxu0
  %v68 = vadd.f32 %v24, %v59
  %v69 = vadd.f32 %v25, %v61
  %v70 = vadd.f32 %v26, %v64
  %v71 = vadd.f32 %v27, %v66
  %72 = vst.msk [vmem:[#allocation2] sm:$0xff] %vm42, %v68
  %73 = vst.msk [vmem:[#allocation2 + $0x8] sm:$0xff] %vm42, %v69
  %74 = vst.msk [vmem:[#allocation2 + $0x10] sm:$0xff] %vm42, %v70
  %75 = vst.msk [vmem:[#allocation2 + $0x18] sm:$0xff] %vm42, %v71
  // Predicated region
  $region18: #{_lambda_.11} parent=0 // pred_check
    %p76 = pneg %p15
  $region19: #{_lambda_.11} parent=0 // pred_check_branch
    %78 = sbr.rel (%p76) target = $region21
  $region20: #{_lambda_.11} parent=0 // pred_region
    %v79 = vld [vmem:[#allocation2] sm:$0xff]
    %v80 = vld [vmem:[#allocation2 + $0x8] sm:$0xff]
    %v81 = vld [vmem:[#allocation2 + $0x10] sm:$0xff]
    %v82 = vld [vmem:[#allocation2 + $0x18] sm:$0xff]
    %v83 = vld [vmem:[%s2] sm:$0x1]
    %v85 = vperm.slane %v83, 0
    %v87 = vadd.f32 %v79, %v85
    %v88 = vadd.f32 %v80, %v85
    %v89 = vadd.f32 %v81, %v85
    %v90 = vadd.f32 %v82, %v85
    %91 = vst.msk [vmem:[%s3] sm:$0xff] %vm42, %v87
    %92 = vst.msk [vmem:[%s3 + $0x8] sm:$0xff] %vm42, %v88
    %93 = vst.msk [vmem:[%s3 + $0x10] sm:$0xff] %vm42, %v89
    %94 = vst.msk [vmem:[%s3 + $0x18] sm:$0xff] %vm42, %v90
  $region21: #{_lambda_.11} parent=0 // pred_fallthru
    _
  // Predicated region
  $region22: #{_lambda_.11} parent=0 // pred_check
    _
  $region23: #{_lambda_.11} parent=0 // pred_check_branch
    %96 = sbr.rel (0) target = $region25
  $region24: #{_lambda_.11} parent=0 // pred_region
    _
  $region25: #{_lambda_.11} parent=0 // pred_fallthru
    _
  // Predicated region
  $region26: #{_lambda_.11} parent=0 // pred_check
    _
  $region27: #{_lambda_.11} parent=0 // pred_check_branch
    %98 = sbr.rel (0) target = $region29
  $region28: #{_lambda_.11} parent=0 // pred_region
    _
  $region29: #{_lambda_.11} parent=0 // pred_fallthru
    _

// kernel: _lambda_.12
$region0: #{_lambda_.12}
  #allocation0 [shape = 'u32[]', space=smem, size = 0x4, offset = 0x4, fixed_abs, tag = 'smem constant byte address 0x4 - core index']
  #allocation1 [shape = 'u32[72,128]{1,0:T(1,128)}', space=vmem, size = 0x9000, scoped, tag = 'internal scratch']
  #allocation2 [shape = 'f32[32,32]{1,0:T(8,128)}', space=vmem, size = 0x4000, scoped, tag = 'scratch operand']
  %s0 = inlined_call_operand.vmem [shape: f32[32,16], index: 0, kind: input, shape index: {}]
  %s1 = inlined_call_operand.vmem [shape: bf16[16,32], index: 1, kind: input, shape index: {}]
  %s2 = inlined_call_operand.vmem [shape: f32[1,32], index: 2, kind: input, shape index: {}]
  %s3 = inlined_call_operand.vmem [shape: f32[32,32], index: 3, kind: output, shape index: {}]
  %s4 = sld [smem:[#allocation0]]
  $region30: #{_lambda_.12} parent=0
    _
  %s6 = ssub.s32 1, %s4
  %s7 = scalar_select 0, %s6, %s4
  // Predicated region
  $region2: #{_lambda_.12} parent=0 // pred_check
    _
  $region3: #{_lambda_.12} parent=0 // pred_check_branch
    %9 = sbr.rel (0) target = $region5
  $region4: #{_lambda_.12} parent=0 // pred_region
    _
  $region5: #{_lambda_.12} parent=0 // pred_fallthru
    _
  // Predicated region
  $region6: #{_lambda_.12} parent=0 // pred_check
    _
  $region7: #{_lambda_.12} parent=0 // pred_check_branch
    %11 = sbr.rel (0) target = $region9
  $region8: #{_lambda_.12} parent=0 // pred_region
    _
  $region9: #{_lambda_.12} parent=0 // pred_fallthru
    _
  // Predicated region
  $region10: #{_lambda_.12} parent=0 // pred_check
    _
  $region11: #{_lambda_.12} parent=0 // pred_check_branch
    %13 = sbr.rel (0) target = $region13
  $region12: #{_lambda_.12} parent=0 // pred_region
    _
  $region13: #{_lambda_.12} parent=0 // pred_fallthru
    _
  %p15 = scmp.eq.s32.totalorder 0, 0
  // Predicated region
  $region14: #{_lambda_.12} parent=0 // pred_check
    %p16 = pneg %p15
  $region15: #{_lambda_.12} parent=0 // pred_check_branch
    %18 = sbr.rel (%p16) target = $region17
  $region16: #{_lambda_.12} parent=0 // pred_region
    %vm19 = vcmask 261120
    %20 = vst.msk [vmem:[#allocation2] sm:$0xff] %vm19, 0.0
    %21 = vst.msk [vmem:[#allocation2 + $0x8] sm:$0xff] %vm19, 0.0
    %22 = vst.msk [vmem:[#allocation2 + $0x10] sm:$0xff] %vm19, 0.0
    %23 = vst.msk [vmem:[#allocation2 + $0x18] sm:$0xff] %vm19, 0.0
  $region17: #{_lambda_.12} parent=0 // pred_fallthru
    _
  %v24 = vld [vmem:[#allocation2] sm:$0xff]
  %v25 = vld [vmem:[#allocation2 + $0x8] sm:$0xff]
  %v26 = vld [vmem:[#allocation2 + $0x10] sm:$0xff]
  %v27 = vld [vmem:[#allocation2 + $0x18] sm:$0xff]
  %v28 = vld [vmem:[%s0] sm:$0xff]
  %v29 = vld [vmem:[%s0 + $0x8] sm:$0xff]
  %v30 = vld [vmem:[%s0 + $0x10] sm:$0xff]
  %v31 = vld [vmem:[%s0 + $0x18] sm:$0xff]
  %v32 = vpack.c.bf16 %v29, %v28
  %v33 = vpack.c.bf16 %v31, %v30
  %v34 = vld [vmem:[%s1] sm:$0xf]
  %v35 = vld [vmem:[%s1 + $0x4] sm:$0xf]
  %v38 = vunpack.c.l.b16 %v34
  %v39 = vunpack.c.l.b16 %v35
  %v40 = vpack.c.b16 %v39, %v38
  %vm42 = vcmask 130048
  %v44 = vsel %vm42, %v32, 0
  %v47 = vsel %vm42, %v33, 0
  %49 = vmatpush.bf16.msra.mxu0 0
  %50 = vmatpush.bf16.msra.mxu0 0
  %51 = vmatpush.bf16.msra.mxu0 0
  %52 = vmatpush.bf16.msra.mxu0 0
  %53 = vmatpush.bf16.msra.mxu0 0
  %54 = vmatpush.bf16.msra.mxu0 0
  %55 = vmatpush.bf16.msra.mxu0 0
  %56 = vmatpush.bf16.msra.mxu0 %v40
  %57 = vmatmul.bf16.gmra.mxu0 %v44
  %v58 = vpop.f32.mrf.mxu0
  %v59 = vadd.f32 0.0, %v58
  %v60 = vpop.f32.mrf.mxu0
  %v61 = vadd.f32 0.0, %v60
  %62 = vmatmul.bf16.gmra.mxu0 %v47
  %v63 = vpop.f32.mrf.mxu0
  %v64 = vadd.f32 0.0, %v63
  %v65 = vpop.f32.mrf.mxu0
  %v66 = vadd.f32 0.0, %v65
  %67 = vdwg.mxu0
  %v68 = vadd.f32 %v24, %v59
  %v69 = vadd.f32 %v25, %v61
  %v70 = vadd.f32 %v26, %v64
  %v71 = vadd.f32 %v27, %v66
  %vm72 = vcmask 261120
  %73 = vst.msk [vmem:[#allocation2] sm:$0xff] %vm72, %v68
  %74 = vst.msk [vmem:[#allocation2 + $0x8] sm:$0xff] %vm72, %v69
  %75 = vst.msk [vmem:[#allocation2 + $0x10] sm:$0xff] %vm72, %v70
  %76 = vst.msk [vmem:[#allocation2 + $0x18] sm:$0xff] %vm72, %v71
  // Predicated region
  $region18: #{_lambda_.12} parent=0 // pred_check
    %p77 = pneg %p15
  $region19: #{_lambda_.12} parent=0 // pred_check_branch
    %79 = sbr.rel (%p77) target = $region21
  $region20: #{_lambda_.12} parent=0 // pred_region
    %v80 = vld [vmem:[#allocation2] sm:$0xff]
    %v81 = vld [vmem:[#allocation2 + $0x8] sm:$0xff]
    %v82 = vld [vmem:[#allocation2 + $0x10] sm:$0xff]
    %v83 = vld [vmem:[#allocation2 + $0x18] sm:$0xff]
    %v84 = vld [vmem:[%s2] sm:$0x1]
    %v86 = vperm.slane %v84, 0
    %v88 = vadd.f32 %v80, %v86
    %v89 = vadd.f32 %v81, %v86
    %v90 = vadd.f32 %v82, %v86
    %v91 = vadd.f32 %v83, %v86
    %92 = vst.msk [vmem:[%s3] sm:$0xff] %vm72, %v88
    %93 = vst.msk [vmem:[%s3 + $0x8] sm:$0xff] %vm72, %v89
    %94 = vst.msk [vmem:[%s3 + $0x10] sm:$0xff] %vm72, %v90
    %95 = vst.msk [vmem:[%s3 + $0x18] sm:$0xff] %vm72, %v91
  $region21: #{_lambda_.12} parent=0 // pred_fallthru
    _
  // Predicated region
  $region22: #{_lambda_.12} parent=0 // pred_check
    _
  $region23: #{_lambda_.12} parent=0 // pred_check_branch
    %97 = sbr.rel (0) target = $region25
  $region24: #{_lambda_.12} parent=0 // pred_region
    _
  $region25: #{_lambda_.12} parent=0 // pred_fallthru
    _
  // Predicated region
  $region26: #{_lambda_.12} parent=0 // pred_check
    _
  $region27: #{_lambda_.12} parent=0 // pred_check_branch
    %99 = sbr.rel (0) target = $region29
  $region28: #{_lambda_.12} parent=0 // pred_region
    _
  $region29: #{_lambda_.12} parent=0 // pred_fallthru
    _

// kernel: _lambda_.15
$region0: #{_lambda_.15}
  #allocation0 [shape = 'u32[]', space=smem, size = 0x4, offset = 0x4, fixed_abs, tag = 'smem constant byte address 0x4 - core index']
  #allocation1 [shape = 'u32[72,128]{1,0:T(1,128)}', space=vmem, size = 0x9000, scoped, tag = 'internal scratch']
  #allocation2 [shape = 'bf16[16,32]{1,0:T(8,128)(2,1)}', space=vmem, size = 0x1000, scoped, tag = 'scratch operand']
  %s0 = inlined_call_operand.vmem [shape: f32[2,16,32], index: 0, kind: input, shape index: {}]
  %s1 = inlined_call_operand.vmem [shape: f32[1,1,32], index: 1, kind: input, shape index: {}]
  %s2 = inlined_call_operand.vmem [shape: f32[1,1,32], index: 2, kind: input, shape index: {}]
  %s3 = inlined_call_operand.vmem [shape: f32[2,1,32], index: 3, kind: input, shape index: {}]
  %s4 = inlined_call_operand.vmem [shape: f32[2,1,32], index: 4, kind: input, shape index: {}]
  %s5 = inlined_call_operand.vmem [shape: bf16[32,128], index: 5, kind: input, shape index: {}]
  %s6 = inlined_call_operand.vmem [shape: f32[1,128], index: 6, kind: input, shape index: {}]
  %s7 = inlined_call_operand.vmem [shape: bf16[2,16,128], index: 7, kind: output, shape index: {}]
  %s8 = sld [smem:[#allocation0]]
  $region65: #{_lambda_.15} parent=0
    _
  %s10 = ssub.s32 1, %s8
  %s11 = scalar_select 0, %s10, %s8
  loop: start=0, step=1, limit=4
  $region2: #{_lambda_.15} parent=0 // loop_pre_header
    _
  $region3: #{_lambda_.15} parent=0 // loop_header
    %s13 = sphi 0, %s17
    %p14 = scmp.ge.s32.totalorder %s13, 4
    %s20 = sphi 0, %s39
    %s21 = sphi 0, %s35
    %s22 = sphi 0, %s31
    %s23 = sphi 0, %s20
    %s24 = sphi 0, %s21
    %s25 = sphi 0, %s22
    %s26 = sphi 0, %s23
    %s27 = sphi 0, %s24
    %s28 = sphi 0, %s25
    %s44 = sphi 0, %s46
    %s47 = sphi 0, %s44
    %s48 = sphi 0, %s47
    %s64 = sphi 0, %s48
    %s68 = sphi 0, %s68
    %s70 = sphi 0, %s68
    %s71 = sphi 0, %s70
    %s85 = sphi 0, %s71
    %s89 = sphi 0, %s89
    %s91 = sphi 0, %s89
    %s92 = sphi 0, %s91
    %s106 = sphi 0, %s92
    %s112 = sphi 0, %s114
    %s115 = sphi 0, %s112
    %s116 = sphi 0, %s115
    %s132 = sphi 0, %s116
    %s138 = sphi 0, %s140
    %s141 = sphi 0, %s138
    %s142 = sphi 0, %s141
    %s158 = sphi 0, %s142
    %s164 = sphi 0, %s166
    %s167 = sphi 0, %s164
    %s168 = sphi 0, %s167
    %s184 = sphi 0, %s168
    %s190 = sphi 0, %s192
    %s193 = sphi 0, %s190
    %s194 = sphi 0, %s193
    %s210 = sphi 0, %s194
    %s220 = sphi 0, %s222
    %s223 = sphi 0, %s220
    %s224 = sphi 0, %s223
    %s240 = sphi 0, %s224
  $region4: #{_lambda_.15} parent=0 // loop_header_branch
    %16 = sbr.rel (%p14) target = $region8
  $region5: #{_lambda_.15} parent=0 // loop_body
    %s18 = ssub.s32 %s13, 1
    %s19 = ssub.s32 %s13, 2
    %s29 = sadd.s32 1, %s22
    %p30 = scmp.ge.s32.totalorder %s29, 1
    %s31 = scalar_select %p30, 0, %s29
    %s32 = sadd.s32 1, %s21
    %s33 = scalar_select %p30, %s32, %s21
    %p34 = scmp.ge.s32.totalorder %s33, 1
    %s35 = scalar_select %p34, 0, %s33
    %s36 = sadd.s32 1, %s20
    %s37 = scalar_select %p34, %s36, %s20
    %p38 = scmp.ge.s32.totalorder %s37, 2
    %s39 = scalar_select %p38, 0, %s37
    %s40 = ssub.s32 %s20, %s39
    %s41 = ssub.s32 %s21, %s35
    %s42 = sor.u32 %s40, %s41
    %p43 = scmp.eq.s32.totalorder %s42, 0
    %s45 = sadd.s32 %s44, 1
    %s46 = scalar_select %p43, %s44, %s45
    %p49 = pneg %p43
    %p50 = scmp.eq.s32.totalorder %s13, 1
    %p51 = por %p49, %p50
    %p52 = scmp.ne.s32.totalorder %s44, %s47
    %p53 = scmp.eq.s32.totalorder %s13, 0
    %p54 = por %p52, %p53
    %p55 = scmp.ne.s32.totalorder %s44, %s47
    %p56 = scmp.eq.s32.totalorder %s18, 1
    %p57 = por %p55, %p56
    %p58 = scmp.ne.s32.totalorder %s47, %s48
    %p59 = scmp.eq.s32.totalorder %s18, 0
    %p60 = por %p58, %p59
    %p61 = scmp.ne.s32.totalorder %s47, %s48
    %p62 = scmp.eq.s32.totalorder %s19, 1
    %p63 = por %p61, %p62
    %p65 = scmp.ne.s32.totalorder %s48, %s64
    %p66 = scmp.eq.s32.totalorder %s19, 0
    %p67 = por %p65, %p66
    %s69 = sadd.s32 %s68, 1
    %p72 = scmp.eq.s32.totalorder %s13, 1
    %p73 = scmp.ne.s32.totalorder %s68, %s70
    %p74 = scmp.eq.s32.totalorder %s13, 0
    %p75 = por %p73, %p74
    %p76 = scmp.ne.s32.totalorder %s68, %s70
    %p77 = scmp.eq.s32.totalorder %s18, 1
    %p78 = por %p76, %p77
    %p79 = scmp.ne.s32.totalorder %s70, %s71
    %p80 = scmp.eq.s32.totalorder %s18, 0
    %p81 = por %p79, %p80
    %p82 = scmp.ne.s32.totalorder %s70, %s71
    %p83 = scmp.eq.s32.totalorder %s19, 1
    %p84 = por %p82, %p83
    %p86 = scmp.ne.s32.totalorder %s71, %s85
    %p87 = scmp.eq.s32.totalorder %s19, 0
    %p88 = por %p86, %p87
    %s90 = sadd.s32 %s89, 1
    %p93 = scmp.eq.s32.totalorder %s13, 1
    %p94 = scmp.ne.s32.totalorder %s89, %s91
    %p95 = scmp.eq.s32.totalorder %s13, 0
    %p96 = por %p94, %p95
    %p97 = scmp.ne.s32.totalorder %s89, %s91
    %p98 = scmp.eq.s32.totalorder %s18, 1
    %p99 = por %p97, %p98
    %p100 = scmp.ne.s32.totalorder %s91, %s92
    %p101 = scmp.eq.s32.totalorder %s18, 0
    %p102 = por %p100, %p101
    %p103 = scmp.ne.s32.totalorder %s91, %s92
    %p104 = scmp.eq.s32.totalorder %s19, 1
    %p105 = por %p103, %p104
    %p107 = scmp.ne.s32.totalorder %s92, %s106
    %p108 = scmp.eq.s32.totalorder %s19, 0
    %p109 = por %p107, %p108
    %s110 = ssub.s32 %s20, %s39
    %p111 = scmp.eq.s32.totalorder %s110, 0
    %s113 = sadd.s32 %s112, 1
    %s114 = scalar_select %p111, %s112, %s113
    %p117 = pneg %p111
    %p118 = scmp.eq.s32.totalorder %s13, 1
    %p119 = por %p117, %p118
    %p120 = scmp.ne.s32.totalorder %s112, %s115
    %p121 = scmp.eq.s32.totalorder %s13, 0
    %p122 = por %p120, %p121
    %p123 = scmp.ne.s32.totalorder %s112, %s115
    %p124 = scmp.eq.s32.totalorder %s18, 1
    %p125 = por %p123, %p124
    %p126 = scmp.ne.s32.totalorder %s115, %s116
    %p127 = scmp.eq.s32.totalorder %s18, 0
    %p128 = por %p126, %p127
    %p129 = scmp.ne.s32.totalorder %s115, %s116
    %p130 = scmp.eq.s32.totalorder %s19, 1
    %p131 = por %p129, %p130
    %p133 = scmp.ne.s32.totalorder %s116, %s132
    %p134 = scmp.eq.s32.totalorder %s19, 0
    %p135 = por %p133, %p134
    %s136 = ssub.s32 %s20, %s39
    %p137 = scmp.eq.s32.totalorder %s136, 0
    %s139 = sadd.s32 %s138, 1
    %s140 = scalar_select %p137, %s138, %s139
    %p143 = pneg %p137
    %p144 = scmp.eq.s32.totalorder %s13, 1
    %p145 = por %p143, %p144
    %p146 = scmp.ne.s32.totalorder %s138, %s141
    %p147 = scmp.eq.s32.totalorder %s13, 0
    %p148 = por %p146, %p147
    %p149 = scmp.ne.s32.totalorder %s138, %s141
    %p150 = scmp.eq.s32.totalorder %s18, 1
    %p151 = por %p149, %p150
    %p152 = scmp.ne.s32.totalorder %s141, %s142
    %p153 = scmp.eq.s32.totalorder %s18, 0
    %p154 = por %p152, %p153
    %p155 = scmp.ne.s32.totalorder %s141, %s142
    %p156 = scmp.eq.s32.totalorder %s19, 1
    %p157 = por %p155, %p156
    %p159 = scmp.ne.s32.totalorder %s142, %s158
    %p160 = scmp.eq.s32.totalorder %s19, 0
    %p161 = por %p159, %p160
    %s162 = ssub.s32 %s22, %s31
    %p163 = scmp.eq.s32.totalorder %s162, 0
    %s165 = sadd.s32 %s164, 1
    %s166 = scalar_select %p163, %s164, %s165
    %p169 = pneg %p163
    %p170 = scmp.eq.s32.totalorder %s13, 1
    %p171 = por %p169, %p170
    %p172 = scmp.ne.s32.totalorder %s164, %s167
    %p173 = scmp.eq.s32.totalorder %s13, 0
    %p174 = por %p172, %p173
    %p175 = scmp.ne.s32.totalorder %s164, %s167
    %p176 = scmp.eq.s32.totalorder %s18, 1
    %p177 = por %p175, %p176
    %p178 = scmp.ne.s32.totalorder %s167, %s168
    %p179 = scmp.eq.s32.totalorder %s18, 0
    %p180 = por %p178, %p179
    %p181 = scmp.ne.s32.totalorder %s167, %s168
    %p182 = scmp.eq.s32.totalorder %s19, 1
    %p183 = por %p181, %p182
    %p185 = scmp.ne.s32.totalorder %s168, %s184
    %p186 = scmp.eq.s32.totalorder %s19, 0
    %p187 = por %p185, %p186
    %s188 = ssub.s32 %s22, %s31
    %p189 = scmp.eq.s32.totalorder %s188, 0
    %s191 = sadd.s32 %s190, 1
    %s192 = scalar_select %p189, %s190, %s191
    %p195 = pneg %p189
    %p196 = scmp.eq.s32.totalorder %s13, 1
    %p197 = por %p195, %p196
    %p198 = scmp.ne.s32.totalorder %s190, %s193
    %p199 = scmp.eq.s32.totalorder %s13, 0
    %p200 = por %p198, %p199
    %p201 = scmp.ne.s32.totalorder %s190, %s193
    %p202 = scmp.eq.s32.totalorder %s18, 1
    %p203 = por %p201, %p202
    %p204 = scmp.ne.s32.totalorder %s193, %s194
    %p205 = scmp.eq.s32.totalorder %s18, 0
    %p206 = por %p204, %p205
    %p207 = scmp.ne.s32.totalorder %s193, %s194
    %p208 = scmp.eq.s32.totalorder %s19, 1
    %p209 = por %p207, %p208
    %p211 = scmp.ne.s32.totalorder %s194, %s210
    %p212 = scmp.eq.s32.totalorder %s19, 0
    %p213 = por %p211, %p212
    %s214 = ssub.s32 %s20, %s39
    %s215 = ssub.s32 %s21, %s35
    %s216 = sor.u32 %s214, %s215
    %s217 = ssub.s32 %s22, %s31
    %s218 = sor.u32 %s216, %s217
    %p219 = scmp.eq.s32.totalorder %s218, 0
    %s221 = sadd.s32 %s220, 1
    %s222 = scalar_select %p219, %s220, %s221
    %p225 = pneg %p219
    %p226 = scmp.eq.s32.totalorder %s13, 1
    %p227 = por %p225, %p226
    %p228 = scmp.ne.s32.totalorder %s220, %s223
    %p229 = scmp.eq.s32.totalorder %s13, 0
    %p230 = por %p228, %p229
    %p231 = scmp.ne.s32.totalorder %s220, %s223
    %p232 = scmp.eq.s32.totalorder %s18, 1
    %p233 = por %p231, %p232
    %p234 = scmp.ne.s32.totalorder %s223, %s224
    %p235 = scmp.eq.s32.totalorder %s18, 0
    %p236 = por %p234, %p235
    %p237 = scmp.ne.s32.totalorder %s223, %s224
    %p238 = scmp.eq.s32.totalorder %s19, 1
    %p239 = por %p237, %p238
    %p241 = scmp.ne.s32.totalorder %s224, %s240
    %p242 = scmp.eq.s32.totalorder %s19, 0
    %p243 = por %p241, %p242
    %p244 = scmp.le.s32.totalorder 1, %s13
    %p245 = scmp.lt.s32.totalorder %s13, 3
    %p246 = pnand %p244, %p245
    %p247 = pneg %p246
    // Predicated region
    $region9: #{_lambda_.15} parent=5 // pred_check
      _
    $region10: #{_lambda_.15} parent=5 // pred_check_branch
      %249 = sbr.rel (%p246) target = $region12
    $region11: #{_lambda_.15} parent=5 // pred_region
      %s250 = ssub.s32 %s13, 1
      // Predicated region
      $region13: #{_lambda_.15} parent=11 // pred_check
        %p251 = pneg %p81
      $region14: #{_lambda_.15} parent=11 // pred_check_branch
        %253 = sbr.rel (%p251) target = $region16
      $region15: #{_lambda_.15} parent=11 // pred_region
        _
      $region16: #{_lambda_.15} parent=11 // pred_fallthru
        _
      // Predicated region
      $region17: #{_lambda_.15} parent=11 // pred_check
        %p254 = pneg %p102
      $region18: #{_lambda_.15} parent=11 // pred_check_branch
        %256 = sbr.rel (%p254) target = $region20
      $region19: #{_lambda_.15} parent=11 // pred_region
        _
      $region20: #{_lambda_.15} parent=11 // pred_fallthru
        _
      // Predicated region
      $region21: #{_lambda_.15} parent=11 // pred_check
        %p257 = pneg %p180
      $region22: #{_lambda_.15} parent=11 // pred_check_branch
        %259 = sbr.rel (%p257) target = $region24
      $region23: #{_lambda_.15} parent=11 // pred_region
        %p260 = scmp.lt.s32.totalorder %s25, 0
        %s261 = scalar_select %p260, %s25, 0
        %s262 = smul.addr %s261, 4
        %s263 = scalar_lea.vmem %s5, %s262
      $region24: #{_lambda_.15} parent=11 // pred_fallthru
        _
      // Predicated region
      $region25: #{_lambda_.15} parent=11 // pred_check
        %p264 = pneg %p206
      $region26: #{_lambda_.15} parent=11 // pred_check_branch
        %266 = sbr.rel (%p264) target = $region28
      $region27: #{_lambda_.15} parent=11 // pred_region
        %p267 = scmp.lt.s32.totalorder %s25, 0
        %s268 = scalar_select %p267, %s25, 0
        %s269 = scalar_lea.vmem %s6, %s268
      $region28: #{_lambda_.15} parent=11 // pred_fallthru
        _
    $region12: #{_lambda_.15} parent=5 // pred_fallthru
      _
    %p270 = scmp.lt.s32.totalorder %s13, 2
    // Predicated region
    $region29: #{_lambda_.15} parent=5 // pred_check
      %p271 = pneg %p270
    $region30: #{_lambda_.15} parent=5 // pred_check_branch
      %273 = sbr.rel (%p271) target = $region32
    $region31: #{_lambda_.15} parent=5 // pred_region
      // Predicated region
      $region33: #{_lambda_.15} parent=31 // pred_check
        %p274 = pneg %p54
      $region34: #{_lambda_.15} parent=31 // pred_check_branch
        %276 = sbr.rel (%p274) target = $region36
      $region35: #{_lambda_.15} parent=31 // pred_region
        %s277 = smul.u32 2, %s21
        %p278 = scmp.lt.s32.totalorder %s20, 1
        %s279 = scalar_select %p278, %s20, 1
        %p280 = scmp.lt.s32.totalorder %s277, 1
        %s281 = scalar_select %p280, %s277, 1
        %s282 = smul.addr %s279, 2
        %s283 = sadd.s32 %s281, %s282
        %s284 = smul.addr %s283, 8
        %s285 = scalar_lea.vmem %s0, %s284
        %s286 = smul.u32 2, %s21
      $region36: #{_lambda_.15} parent=31 // pred_fallthru
        _
      // Predicated region
      $region37: #{_lambda_.15} parent=31 // pred_check
        %p287 = pneg %p122
      $region38: #{_lambda_.15} parent=31 // pred_check_branch
        %289 = sbr.rel (%p287) target = $region40
      $region39: #{_lambda_.15} parent=31 // pred_region
        %p290 = scmp.lt.s32.totalorder %s20, 1
        %s291 = scalar_select %p290, %s20, 1
        %s292 = scalar_lea.vmem %s3, %s291
      $region40: #{_lambda_.15} parent=31 // pred_fallthru
        _
      // Predicated region
      $region41: #{_lambda_.15} parent=31 // pred_check
        %p293 = pneg %p148
      $region42: #{_lambda_.15} parent=31 // pred_check_branch
        %295 = sbr.rel (%p293) target = $region44
      $region43: #{_lambda_.15} parent=31 // pred_region
        %p296 = scmp.lt.s32.totalorder %s20, 1
        %s297 = scalar_select %p296, %s20, 1
        %s298 = scalar_lea.vmem %s4, %s297
      $region44: #{_lambda_.15} parent=31 // pred_fallthru
        _
    $region32: #{_lambda_.15} parent=5 // pred_fallthru
      _
    %p299 = scmp.le.s32.totalorder 1, %s13
    %p300 = scmp.lt.s32.totalorder %s13, 3
    %p301 = pnand %p299, %p300
    %p302 = pneg %p301
    // Predicated region
    $region45: #{_lambda_.15} parent=5 // pred_check
      _
    $region46: #{_lambda_.15} parent=5 // pred_check_branch
      %304 = sbr.rel (%p301) target = $region48
    $region47: #{_lambda_.15} parent=5 // pred_region
      %s305 = ssub.s32 %s13, 1
      %s306 = smul.u32 2, %s24
      %p307 = scmp.lt.s32.totalorder %s23, 1
      %s308 = scalar_select %p307, %s23, 1
      %p309 = scmp.lt.s32.totalorder %s306, 1
      %s310 = scalar_select %p309, %s306, 1
      %s311 = smul.addr %s308, 2
      %s312 = sadd.s32 %s310, %s311
      %s313 = smul.addr %s312, 8
      %s314 = scalar_lea.vmem %s0, %s313
      %p315 = pneg %p60
      %p316 = pneg %p57
      %p317 = pneg %p81
      %p318 = pneg %p78
      %p319 = pneg %p102
      %p320 = pneg %p99
      %p321 = scmp.lt.s32.totalorder %s23, 1
      %s322 = scalar_select %p321, %s23, 1
      %s323 = scalar_lea.vmem %s3, %s322
      %p324 = pneg %p128
      %p325 = pneg %p125
      %p326 = scmp.lt.s32.totalorder %s23, 1
      %s327 = scalar_select %p326, %s23, 1
      %s328 = scalar_lea.vmem %s4, %s327
      %p329 = pneg %p154
      %p330 = pneg %p151
      %p331 = scmp.lt.s32.totalorder %s25, 0
      %s332 = scalar_select %p331, %s25, 0
      %s333 = smul.addr %s332, 4
      %s334 = scalar_lea.vmem %s5, %s333
      %p335 = pneg %p180
      %p336 = pneg %p177
      %p337 = scmp.lt.s32.totalorder %s25, 0
      %s338 = scalar_select %p337, %s25, 0
      %s339 = scalar_lea.vmem %s6, %s338
      %p340 = pneg %p206
      %p341 = pneg %p203
      %p342 = pneg %p236
      %p343 = pneg %p233
      %s344 = smul.u32 2, %s24
      %p345 = scmp.lt.s32.totalorder %s23, 1
      %s346 = scalar_select %p345, %s23, 1
      %p347 = scmp.lt.s32.totalorder %s344, 1
      %s348 = scalar_select %p347, %s344, 1
      %p349 = scmp.lt.s32.totalorder %s25, 0
      %s350 = scalar_select %p349, %s25, 0
      %s351 = sadd.s32 %s350, %s348
      %s352 = smul.addr %s346, 2
      %s353 = sadd.s32 %s351, %s352
      %s354 = smul.addr %s353, 4
      %s355 = scalar_lea.vmem %s7, %s354
      %s356 = smul.u32 2, %s24
      %p357 = scmp.lt.s32.totalorder %s23, 1
      %s358 = scalar_select %p357, %s23, 1
      %p359 = scmp.lt.s32.totalorder %s356, 1
      %s360 = scalar_select %p359, %s356, 1
      %s361 = smul.addr %s358, 2
      %s362 = sadd.s32 %s360, %s361
      %s363 = smul.addr %s362, 8
      %s364 = scalar_lea.vmem %s0, %s363
      %s365 = smul.u32 2, %s24
      %p366 = scmp.lt.s32.totalorder %s23, 1
      %s367 = scalar_select %p366, %s23, 1
      %s368 = scalar_lea.vmem %s3, %s367
      %p369 = scmp.lt.s32.totalorder %s23, 1
      %s370 = scalar_select %p369, %s23, 1
      %s371 = scalar_lea.vmem %s4, %s370
      %p372 = scmp.lt.s32.totalorder %s25, 0
      %s373 = scalar_select %p372, %s25, 0
      %s374 = smul.addr %s373, 4
      %s375 = scalar_lea.vmem %s5, %s374
      %p376 = scmp.lt.s32.totalorder %s25, 0
      %s377 = scalar_select %p376, %s25, 0
      %s378 = scalar_lea.vmem %s6, %s377
      %s379 = smul.u32 2, %s24
      %p380 = scmp.lt.s32.totalorder %s23, 1
      %s381 = scalar_select %p380, %s23, 1
      %p382 = scmp.lt.s32.totalorder %s379, 1
      %s383 = scalar_select %p382, %s379, 1
      %p384 = scmp.lt.s32.totalorder %s25, 0
      %s385 = scalar_select %p384, %s25, 0
      %s386 = sadd.s32 %s385, %s383
      %s387 = smul.addr %s381, 2
      %s388 = sadd.s32 %s386, %s387
      %s389 = smul.addr %s388, 4
      %s390 = scalar_lea.vmem %s7, %s389
      %s391 = smul.u32 2, %s24
      %p393 = scmp.eq.s32.totalorder %s25, 0
      // Predicated region
      $region49: #{_lambda_.15} parent=47 // pred_check
        %p394 = pneg %p393
      $region50: #{_lambda_.15} parent=47 // pred_check_branch
        %396 = sbr.rel (%p394) target = $region52
      $region51: #{_lambda_.15} parent=47 // pred_region
        %v397 = vld [vmem:[%s364] sm:$0xff]
        %v398 = vld [vmem:[%s364 + $0x8] sm:$0xff]
        %vm399 = vcmask 261120
        %v400 = vsel %vm399, %v397, 0.0
        %401 = vadd.xlane.f32.xlu0 %v400
        %v402 = vpop.xlane.xlu0 %401
        %v403 = vsel %vm399, %v398, 0.0
        %404 = vadd.xlane.f32.xlu0 %v403
        %v405 = vpop.xlane.xlu0 %404
        %v406 = vrcp.pop 32.0
        %v407 = vmul.f32 32.0, %v406
        %v408 = vsub.f32 1.0, %v407
        %v409 = vmul.f32 %v406, %v408
        %v410 = vadd.f32 %v406, %v409
        %vm411 = vweird.f32 %v406
        %v412 = vsel %vm411, %v406, %v410
        %v413 = vmul.f32 %v402, %v412
        %v414 = vmul.f32 %v405, %v412
        %v415 = vsub.f32 %v397, %v413
        %v416 = vsub.f32 %v398, %v414
        %v417 = vmul.f32 %v415, %v415
        %v418 = vmul.f32 %v416, %v416
        %v419 = vsel %vm399, %v417, 0.0
        %420 = vadd.xlane.f32.xlu0 %v419
        %v421 = vpop.xlane.xlu0 %420
        %v422 = vsel %vm399, %v418, 0.0
        %423 = vadd.xlane.f32.xlu0 %v422
        %v424 = vpop.xlane.xlu0 %423
        %v425 = vmul.f32 %v421, %v412
        %v426 = vmul.f32 %v424, %v412
        %v427 = vadd.f32 %v425, 1e-05
        %v428 = vadd.f32 %v426, 1e-05
        %v429 = vrsqrt.pop %v427
        %v430 = vmul.f32 %v429, %v427
        %v431 = vmul.f32 %v430, %v429
        %v432 = vmul.f32 0.5, %v431
        %v433 = vsub.f32 1.5, %v432
        %v434 = vmul.f32 %v429, %v433
        %vm435 = vweird.f32 %v427
        %vm436 = vweird.f32 %v429
        %vm437 = vmor %vm435, %vm436
        %v438 = vsel %vm437, %v429, %v434
        %v439 = vrsqrt.pop %v428
        %v440 = vmul.f32 %v439, %v428
        %v441 = vmul.f32 %v440, %v439
        %v442 = vmul.f32 0.5, %v441
        %v443 = vsub.f32 1.5, %v442
        %v444 = vmul.f32 %v439, %v443
        %vm445 = vweird.f32 %v428
        %vm446 = vweird.f32 %v439
        %vm447 = vmor %vm445, %vm446
        %v448 = vsel %vm447, %v439, %v444
        %v449 = vmul.f32 %v415, %v438
        %v450 = vmul.f32 %v416, %v448
        %v451 = vld [vmem:[%s1] sm:$0x1]
        %v453 = vperm.slane %v451, 0
        %v455 = vmul.f32 %v449, %v453
        %v456 = vmul.f32 %v450, %v453
        %v457 = vld [vmem:[%s2] sm:$0x1]
        %v459 = vperm.slane %v457, 0
        %v461 = vadd.f32 %v455, %v459
        %v462 = vadd.f32 %v456, %v459
        %v463 = vld [vmem:[%s368] sm:$0x1]
        %v464 = vadd.f32 %v463, 1.0
        %v466 = vperm.slane %v464, 0
        %v468 = vmul.f32 %v461, %v466
        %v469 = vmul.f32 %v462, %v466
        %v470 = vld [vmem:[%s371] sm:$0x1]
        %v472 = vperm.slane %v470, 0
        %v474 = vadd.f32 %v468, %v472
        %v475 = vadd.f32 %v469, %v472
        %v476 = vpack.c.bf16 %v474, %v474
        %v477 = vpack.c.bf16 %v475, %v475
        %vm478 = vcmask 257024
        %479 = vst.msk [vmem:[#allocation2] sm:$0xf] %vm478, %v476
        %480 = vst.msk [vmem:[#allocation2 + $0x4] sm:$0xf] %vm478, %v477
      $region52: #{_lambda_.15} parent=47 // pred_fallthru
        _
      %v481 = vld [vmem:[%s375] sm:$0xf]
      %v482 = vld [vmem:[%s375 + $0x4] sm:$0xf]
      %v483 = vld [vmem:[%s375 + $0x8] sm:$0xf]
      %v484 = vld [vmem:[%s375 + $0xc] sm:$0xf]
      %v485 = vld [vmem:[%s378] sm:$0x1]
      %v486 = vld [vmem:[#allocation2] sm:$0xf]
      %v487 = vld [vmem:[#allocation2 + $0x4] sm:$0xf]
      %v489 = vperm.slane %v485, 0
      %v493 = vunpack.c.l.b16 %v486
      %v494 = vunpack.c.l.b16 %v487
      %v495 = vpack.c.b16 %v494, %v493
      %v500 = vunpack.c.l.b16 %v481
      %v501 = vunpack.c.l.b16 %v482
      %v502 = vunpack.c.l.b16 %v483
      %v503 = vunpack.c.l.b16 %v484
      %v504 = vpack.c.b16 %v501, %v500
      %v505 = vpack.c.b16 %v503, %v502
      %vm508 = vcmask 261120
      %v510 = vsel %vm508, %v495, 0
      %512 = vmatpush.bf16.msra.mxu0 0
      %513 = vmatpush.bf16.msra.mxu0 0
      %514 = vmatpush.bf16.msra.mxu0 0
      %515 = vmatpush.bf16.msra.mxu0 0
      %516 = vmatpush.bf16.msra.mxu0 0
      %517 = vmatpush.bf16.msra.mxu0 0
      %518 = vmatpush.bf16.msra.mxu0 %v505
      %519 = vmatpush.bf16.msra.mxu0 %v504
      %520 = vmatmul.bf16.gmra.mxu0 %v510
      %v521 = vpop.f32.mrf.mxu0
      %v522 = vadd.f32 %v489, %v521
      %v523 = vpop.f32.mrf.mxu0
      %v524 = vadd.f32 %v489, %v523
      %525 = vdwg.mxu0
      %v526 = vmax.f32 %v522, 0.0
      %v527 = vmax.f32 %v524, 0.0
      %v528 = vpack.c.bf16 %v526, %v526
      %v529 = vpack.c.bf16 %v527, %v527
      %530 = vst [vmem:[%s390] sm:$0xf] %v528
      %531 = vst [vmem:[%s390 + $0x4] sm:$0xf] %v529
      %s532 = smul.u32 2, %s24
      %p533 = scmp.lt.s32.totalorder %s23, 1
      %s534 = scalar_select %p533, %s23, 1
      %p535 = scmp.lt.s32.totalorder %s532, 1
      %s536 = scalar_select %p535, %s532, 1
      %p537 = scmp.lt.s32.totalorder %s25, 0
      %s538 = scalar_select %p537, %s25, 0
      %s539 = sadd.s32 %s538, %s536
      %s540 = smul.addr %s534, 2
      %s541 = sadd.s32 %s539, %s540
      %s542 = smul.addr %s541, 4
      %s543 = scalar_lea.vmem %s7, %s542
      // Predicated region
      $region53: #{_lambda_.15} parent=47 // pred_check
        %p544 = pneg %p233
      $region54: #{_lambda_.15} parent=47 // pred_check_branch
        %546 = sbr.rel (%p544) target = $region56
      $region55: #{_lambda_.15} parent=47 // pred_region
        %s547 = smul.u32 2, %s24
      $region56: #{_lambda_.15} parent=47 // pred_fallthru
        _
    $region48: #{_lambda_.15} parent=5 // pred_fallthru
      _
    %p548 = scmp.le.s32.totalorder 2, %s13
    // Predicated region
    $region57: #{_lambda_.15} parent=5 // pred_check
      %p549 = pneg %p548
    $region58: #{_lambda_.15} parent=5 // pred_check_branch
      %551 = sbr.rel (%p549) target = $region60
    $region59: #{_lambda_.15} parent=5 // pred_region
      %s552 = ssub.s32 %s13, 2
      // Predicated region
      $region61: #{_lambda_.15} parent=59 // pred_check
        %p553 = pneg %p239
      $region62: #{_lambda_.15} parent=59 // pred_check_branch
        %555 = sbr.rel (%p553) target = $region64
      $region63: #{_lambda_.15} parent=59 // pred_region
        %s556 = smul.u32 2, %s27
        %p557 = scmp.lt.s32.totalorder %s26, 1
        %s558 = scalar_select %p557, %s26, 1
        %p559 = scmp.lt.s32.totalorder %s556, 1
        %s560 = scalar_select %p559, %s556, 1
        %p561 = scmp.lt.s32.totalorder %s28, 0
        %s562 = scalar_select %p561, %s28, 0
        %s563 = sadd.s32 %s562, %s560
        %s564 = smul.addr %s558, 2
        %s565 = sadd.s32 %s563, %s564
        %s566 = smul.addr %s565, 4
        %s567 = scalar_lea.vmem %s7, %s566
      $region64: #{_lambda_.15} parent=59 // pred_fallthru
        _
    $region60: #{_lambda_.15} parent=5 // pred_fallthru
      _
  $region6: #{_lambda_.15} parent=0 // loop_footer
    %s17 = sadd.s32 1, %s13
  $region7: #{_lambda_.15} parent=0 // loop_footer_branch
    %12 = sbr.rel target = $region3
  $region8: #{_lambda_.15} parent=0 // loop_exit
    _

// kernel: _lambda_.13
$region0: #{_lambda_.13}
  #allocation0 [shape = 'u32[]', space=smem, size = 0x4, offset = 0x4, fixed_abs, tag = 'smem constant byte address 0x4 - core index']
  #allocation1 [shape = 'u32[72,128]{1,0:T(1,128)}', space=vmem, size = 0x9000, scoped, tag = 'internal scratch']
  #allocation2 [shape = 'bf16[16,32]{1,0:T(8,128)(2,1)}', space=vmem, size = 0x1000, scoped, tag = 'scratch operand']
  %s0 = inlined_call_operand.vmem [shape: f32[2,16,32], index: 0, kind: input, shape index: {}]
  %s1 = inlined_call_operand.vmem [shape: f32[1,1,32], index: 1, kind: input, shape index: {}]
  %s2 = inlined_call_operand.vmem [shape: f32[1,1,32], index: 2, kind: input, shape index: {}]
  %s3 = inlined_call_operand.vmem [shape: f32[2,1,32], index: 3, kind: input, shape index: {}]
  %s4 = inlined_call_operand.vmem [shape: f32[2,1,32], index: 4, kind: input, shape index: {}]
  %s5 = inlined_call_operand.vmem [shape: bf16[2,32,96], index: 5, kind: input, shape index: {}]
  %s6 = inlined_call_operand.vmem [shape: f32[2,1,96], index: 6, kind: input, shape index: {}]
  %s7 = inlined_call_operand.vmem [shape: bf16[2,2,16,96], index: 7, kind: output, shape index: {}]
  %s8 = sld [smem:[#allocation0]]
  $region65: #{_lambda_.13} parent=0
    _
  %s10 = ssub.s32 1, %s8
  %s11 = scalar_select 0, %s10, %s8
  loop: start=0, step=1, limit=6
  $region2: #{_lambda_.13} parent=0 // loop_pre_header
    _
  $region3: #{_lambda_.13} parent=0 // loop_header
    %s13 = sphi 0, %s17
    %p14 = scmp.ge.s32.totalorder %s13, 6
    %s20 = sphi 0, %s39
    %s21 = sphi 0, %s35
    %s22 = sphi 0, %s31
    %s23 = sphi 0, %s20
    %s24 = sphi 0, %s21
    %s25 = sphi 0, %s22
    %s26 = sphi 0, %s23
    %s27 = sphi 0, %s24
    %s28 = sphi 0, %s25
    %s44 = sphi 0, %s46
    %s47 = sphi 0, %s44
    %s48 = sphi 0, %s47
    %s64 = sphi 0, %s48
    %s68 = sphi 0, %s68
    %s70 = sphi 0, %s68
    %s71 = sphi 0, %s70
    %s85 = sphi 0, %s71
    %s89 = sphi 0, %s89
    %s91 = sphi 0, %s89
    %s92 = sphi 0, %s91
    %s106 = sphi 0, %s92
    %s112 = sphi 0, %s114
    %s115 = sphi 0, %s112
    %s116 = sphi 0, %s115
    %s132 = sphi 0, %s116
    %s138 = sphi 0, %s140
    %s141 = sphi 0, %s138
    %s142 = sphi 0, %s141
    %s158 = sphi 0, %s142
    %s164 = sphi 0, %s166
    %s167 = sphi 0, %s164
    %s168 = sphi 0, %s167
    %s184 = sphi 0, %s168
    %s190 = sphi 0, %s192
    %s193 = sphi 0, %s190
    %s194 = sphi 0, %s193
    %s210 = sphi 0, %s194
    %s220 = sphi 0, %s222
    %s223 = sphi 0, %s220
    %s224 = sphi 0, %s223
    %s240 = sphi 0, %s224
  $region4: #{_lambda_.13} parent=0 // loop_header_branch
    %16 = sbr.rel (%p14) target = $region8
  $region5: #{_lambda_.13} parent=0 // loop_body
    %s18 = ssub.s32 %s13, 1
    %s19 = ssub.s32 %s13, 2
    %s29 = sadd.s32 1, %s22
    %p30 = scmp.ge.s32.totalorder %s29, 2
    %s31 = scalar_select %p30, 0, %s29
    %s32 = sadd.s32 1, %s21
    %s33 = scalar_select %p30, %s32, %s21
    %p34 = scmp.ge.s32.totalorder %s33, 1
    %s35 = scalar_select %p34, 0, %s33
    %s36 = sadd.s32 1, %s20
    %s37 = scalar_select %p34, %s36, %s20
    %p38 = scmp.ge.s32.totalorder %s37, 2
    %s39 = scalar_select %p38, 0, %s37
    %s40 = ssub.s32 %s20, %s39
    %s41 = ssub.s32 %s21, %s35
    %s42 = sor.u32 %s40, %s41
    %p43 = scmp.eq.s32.totalorder %s42, 0
    %s45 = sadd.s32 %s44, 1
    %s46 = scalar_select %p43, %s44, %s45
    %p49 = pneg %p43
    %p50 = scmp.eq.s32.totalorder %s13, 3
    %p51 = por %p49, %p50
    %p52 = scmp.ne.s32.totalorder %s44, %s47
    %p53 = scmp.eq.s32.totalorder %s13, 0
    %p54 = por %p52, %p53
    %p55 = scmp.ne.s32.totalorder %s44, %s47
    %p56 = scmp.eq.s32.totalorder %s18, 3
    %p57 = por %p55, %p56
    %p58 = scmp.ne.s32.totalorder %s47, %s48
    %p59 = scmp.eq.s32.totalorder %s18, 0
    %p60 = por %p58, %p59
    %p61 = scmp.ne.s32.totalorder %s47, %s48
    %p62 = scmp.eq.s32.totalorder %s19, 3
    %p63 = por %p61, %p62
    %p65 = scmp.ne.s32.totalorder %s48, %s64
    %p66 = scmp.eq.s32.totalorder %s19, 0
    %p67 = por %p65, %p66
    %s69 = sadd.s32 %s68, 1
    %p72 = scmp.eq.s32.totalorder %s13, 3
    %p73 = scmp.ne.s32.totalorder %s68, %s70
    %p74 = scmp.eq.s32.totalorder %s13, 0
    %p75 = por %p73, %p74
    %p76 = scmp.ne.s32.totalorder %s68, %s70
    %p77 = scmp.eq.s32.totalorder %s18, 3
    %p78 = por %p76, %p77
    %p79 = scmp.ne.s32.totalorder %s70, %s71
    %p80 = scmp.eq.s32.totalorder %s18, 0
    %p81 = por %p79, %p80
    %p82 = scmp.ne.s32.totalorder %s70, %s71
    %p83 = scmp.eq.s32.totalorder %s19, 3
    %p84 = por %p82, %p83
    %p86 = scmp.ne.s32.totalorder %s71, %s85
    %p87 = scmp.eq.s32.totalorder %s19, 0
    %p88 = por %p86, %p87
    %s90 = sadd.s32 %s89, 1
    %p93 = scmp.eq.s32.totalorder %s13, 3
    %p94 = scmp.ne.s32.totalorder %s89, %s91
    %p95 = scmp.eq.s32.totalorder %s13, 0
    %p96 = por %p94, %p95
    %p97 = scmp.ne.s32.totalorder %s89, %s91
    %p98 = scmp.eq.s32.totalorder %s18, 3
    %p99 = por %p97, %p98
    %p100 = scmp.ne.s32.totalorder %s91, %s92
    %p101 = scmp.eq.s32.totalorder %s18, 0
    %p102 = por %p100, %p101
    %p103 = scmp.ne.s32.totalorder %s91, %s92
    %p104 = scmp.eq.s32.totalorder %s19, 3
    %p105 = por %p103, %p104
    %p107 = scmp.ne.s32.totalorder %s92, %s106
    %p108 = scmp.eq.s32.totalorder %s19, 0
    %p109 = por %p107, %p108
    %s110 = ssub.s32 %s20, %s39
    %p111 = scmp.eq.s32.totalorder %s110, 0
    %s113 = sadd.s32 %s112, 1
    %s114 = scalar_select %p111, %s112, %s113
    %p117 = pneg %p111
    %p118 = scmp.eq.s32.totalorder %s13, 3
    %p119 = por %p117, %p118
    %p120 = scmp.ne.s32.totalorder %s112, %s115
    %p121 = scmp.eq.s32.totalorder %s13, 0
    %p122 = por %p120, %p121
    %p123 = scmp.ne.s32.totalorder %s112, %s115
    %p124 = scmp.eq.s32.totalorder %s18, 3
    %p125 = por %p123, %p124
    %p126 = scmp.ne.s32.totalorder %s115, %s116
    %p127 = scmp.eq.s32.totalorder %s18, 0
    %p128 = por %p126, %p127
    %p129 = scmp.ne.s32.totalorder %s115, %s116
    %p130 = scmp.eq.s32.totalorder %s19, 3
    %p131 = por %p129, %p130
    %p133 = scmp.ne.s32.totalorder %s116, %s132
    %p134 = scmp.eq.s32.totalorder %s19, 0
    %p135 = por %p133, %p134
    %s136 = ssub.s32 %s20, %s39
    %p137 = scmp.eq.s32.totalorder %s136, 0
    %s139 = sadd.s32 %s138, 1
    %s140 = scalar_select %p137, %s138, %s139
    %p143 = pneg %p137
    %p144 = scmp.eq.s32.totalorder %s13, 3
    %p145 = por %p143, %p144
    %p146 = scmp.ne.s32.totalorder %s138, %s141
    %p147 = scmp.eq.s32.totalorder %s13, 0
    %p148 = por %p146, %p147
    %p149 = scmp.ne.s32.totalorder %s138, %s141
    %p150 = scmp.eq.s32.totalorder %s18, 3
    %p151 = por %p149, %p150
    %p152 = scmp.ne.s32.totalorder %s141, %s142
    %p153 = scmp.eq.s32.totalorder %s18, 0
    %p154 = por %p152, %p153
    %p155 = scmp.ne.s32.totalorder %s141, %s142
    %p156 = scmp.eq.s32.totalorder %s19, 3
    %p157 = por %p155, %p156
    %p159 = scmp.ne.s32.totalorder %s142, %s158
    %p160 = scmp.eq.s32.totalorder %s19, 0
    %p161 = por %p159, %p160
    %s162 = ssub.s32 %s22, %s31
    %p163 = scmp.eq.s32.totalorder %s162, 0
    %s165 = sadd.s32 %s164, 1
    %s166 = scalar_select %p163, %s164, %s165
    %p169 = pneg %p163
    %p170 = scmp.eq.s32.totalorder %s13, 3
    %p171 = por %p169, %p170
    %p172 = scmp.ne.s32.totalorder %s164, %s167
    %p173 = scmp.eq.s32.totalorder %s13, 0
    %p174 = por %p172, %p173
    %p175 = scmp.ne.s32.totalorder %s164, %s167
    %p176 = scmp.eq.s32.totalorder %s18, 3
    %p177 = por %p175, %p176
    %p178 = scmp.ne.s32.totalorder %s167, %s168
    %p179 = scmp.eq.s32.totalorder %s18, 0
    %p180 = por %p178, %p179
    %p181 = scmp.ne.s32.totalorder %s167, %s168
    %p182 = scmp.eq.s32.totalorder %s19, 3
    %p183 = por %p181, %p182
    %p185 = scmp.ne.s32.totalorder %s168, %s184
    %p186 = scmp.eq.s32.totalorder %s19, 0
    %p187 = por %p185, %p186
    %s188 = ssub.s32 %s22, %s31
    %p189 = scmp.eq.s32.totalorder %s188, 0
    %s191 = sadd.s32 %s190, 1
    %s192 = scalar_select %p189, %s190, %s191
    %p195 = pneg %p189
    %p196 = scmp.eq.s32.totalorder %s13, 3
    %p197 = por %p195, %p196
    %p198 = scmp.ne.s32.totalorder %s190, %s193
    %p199 = scmp.eq.s32.totalorder %s13, 0
    %p200 = por %p198, %p199
    %p201 = scmp.ne.s32.totalorder %s190, %s193
    %p202 = scmp.eq.s32.totalorder %s18, 3
    %p203 = por %p201, %p202
    %p204 = scmp.ne.s32.totalorder %s193, %s194
    %p205 = scmp.eq.s32.totalorder %s18, 0
    %p206 = por %p204, %p205
    %p207 = scmp.ne.s32.totalorder %s193, %s194
    %p208 = scmp.eq.s32.totalorder %s19, 3
    %p209 = por %p207, %p208
    %p211 = scmp.ne.s32.totalorder %s194, %s210
    %p212 = scmp.eq.s32.totalorder %s19, 0
    %p213 = por %p211, %p212
    %s214 = ssub.s32 %s20, %s39
    %s215 = ssub.s32 %s22, %s31
    %s216 = sor.u32 %s214, %s215
    %s217 = ssub.s32 %s21, %s35
    %s218 = sor.u32 %s216, %s217
    %p219 = scmp.eq.s32.totalorder %s218, 0
    %s221 = sadd.s32 %s220, 1
    %s222 = scalar_select %p219, %s220, %s221
    %p225 = pneg %p219
    %p226 = scmp.eq.s32.totalorder %s13, 3
    %p227 = por %p225, %p226
    %p228 = scmp.ne.s32.totalorder %s220, %s223
    %p229 = scmp.eq.s32.totalorder %s13, 0
    %p230 = por %p228, %p229
    %p231 = scmp.ne.s32.totalorder %s220, %s223
    %p232 = scmp.eq.s32.totalorder %s18, 3
    %p233 = por %p231, %p232
    %p234 = scmp.ne.s32.totalorder %s223, %s224
    %p235 = scmp.eq.s32.totalorder %s18, 0
    %p236 = por %p234, %p235
    %p237 = scmp.ne.s32.totalorder %s223, %s224
    %p238 = scmp.eq.s32.totalorder %s19, 3
    %p239 = por %p237, %p238
    %p241 = scmp.ne.s32.totalorder %s224, %s240
    %p242 = scmp.eq.s32.totalorder %s19, 0
    %p243 = por %p241, %p242
    %p244 = scmp.le.s32.totalorder 1, %s13
    %p245 = scmp.lt.s32.totalorder %s13, 5
    %p246 = pnand %p244, %p245
    %p247 = pneg %p246
    // Predicated region
    $region9: #{_lambda_.13} parent=5 // pred_check
      _
    $region10: #{_lambda_.13} parent=5 // pred_check_branch
      %249 = sbr.rel (%p246) target = $region12
    $region11: #{_lambda_.13} parent=5 // pred_region
      %s250 = ssub.s32 %s13, 1
      // Predicated region
      $region13: #{_lambda_.13} parent=11 // pred_check
        %p251 = pneg %p81
      $region14: #{_lambda_.13} parent=11 // pred_check_branch
        %253 = sbr.rel (%p251) target = $region16
      $region15: #{_lambda_.13} parent=11 // pred_region
        _
      $region16: #{_lambda_.13} parent=11 // pred_fallthru
        _
      // Predicated region
      $region17: #{_lambda_.13} parent=11 // pred_check
        %p254 = pneg %p102
      $region18: #{_lambda_.13} parent=11 // pred_check_branch
        %256 = sbr.rel (%p254) target = $region20
      $region19: #{_lambda_.13} parent=11 // pred_region
        _
      $region20: #{_lambda_.13} parent=11 // pred_fallthru
        _
    $region12: #{_lambda_.13} parent=5 // pred_fallthru
      _
    %p257 = scmp.lt.s32.totalorder %s13, 4
    // Predicated region
    $region21: #{_lambda_.13} parent=5 // pred_check
      %p258 = pneg %p257
    $region22: #{_lambda_.13} parent=5 // pred_check_branch
      %260 = sbr.rel (%p258) target = $region24
    $region23: #{_lambda_.13} parent=5 // pred_region
      // Predicated region
      $region25: #{_lambda_.13} parent=23 // pred_check
        %p261 = pneg %p54
      $region26: #{_lambda_.13} parent=23 // pred_check_branch
        %263 = sbr.rel (%p261) target = $region28
      $region27: #{_lambda_.13} parent=23 // pred_region
        %s264 = smul.u32 2, %s21
        %p265 = scmp.lt.s32.totalorder %s20, 1
        %s266 = scalar_select %p265, %s20, 1
        %p267 = scmp.lt.s32.totalorder %s264, 1
        %s268 = scalar_select %p267, %s264, 1
        %s269 = smul.addr %s266, 2
        %s270 = sadd.s32 %s268, %s269
        %s271 = smul.addr %s270, 8
        %s272 = scalar_lea.vmem %s0, %s271
        %s273 = smul.u32 2, %s21
      $region28: #{_lambda_.13} parent=23 // pred_fallthru
        _
      // Predicated region
      $region29: #{_lambda_.13} parent=23 // pred_check
        %p274 = pneg %p122
      $region30: #{_lambda_.13} parent=23 // pred_check_branch
        %276 = sbr.rel (%p274) target = $region32
      $region31: #{_lambda_.13} parent=23 // pred_region
        %p277 = scmp.lt.s32.totalorder %s20, 1
        %s278 = scalar_select %p277, %s20, 1
        %s279 = scalar_lea.vmem %s3, %s278
      $region32: #{_lambda_.13} parent=23 // pred_fallthru
        _
      // Predicated region
      $region33: #{_lambda_.13} parent=23 // pred_check
        %p280 = pneg %p148
      $region34: #{_lambda_.13} parent=23 // pred_check_branch
        %282 = sbr.rel (%p280) target = $region36
      $region35: #{_lambda_.13} parent=23 // pred_region
        %p283 = scmp.lt.s32.totalorder %s20, 1
        %s284 = scalar_select %p283, %s20, 1
        %s285 = scalar_lea.vmem %s4, %s284
      $region36: #{_lambda_.13} parent=23 // pred_fallthru
        _
      // Predicated region
      $region37: #{_lambda_.13} parent=23 // pred_check
        %p286 = pneg %p174
      $region38: #{_lambda_.13} parent=23 // pred_check_branch
        %288 = sbr.rel (%p286) target = $region40
      $region39: #{_lambda_.13} parent=23 // pred_region
        %p289 = scmp.lt.s32.totalorder %s22, 1
        %s290 = scalar_select %p289, %s22, 1
        %s291 = smul.addr %s290, 4
        %s292 = smul.addr %s291, 4
        %s293 = scalar_lea.vmem %s5, %s292
      $region40: #{_lambda_.13} parent=23 // pred_fallthru
        _
      // Predicated region
      $region41: #{_lambda_.13} parent=23 // pred_check
        %p294 = pneg %p200
      $region42: #{_lambda_.13} parent=23 // pred_check_branch
        %296 = sbr.rel (%p294) target = $region44
      $region43: #{_lambda_.13} parent=23 // pred_region
        %p297 = scmp.lt.s32.totalorder %s22, 1
        %s298 = scalar_select %p297, %s22, 1
        %s299 = scalar_lea.vmem %s6, %s298
      $region44: #{_lambda_.13} parent=23 // pred_fallthru
        _
    $region24: #{_lambda_.13} parent=5 // pred_fallthru
      _
    %p300 = scmp.le.s32.totalorder 1, %s13
    %p301 = scmp.lt.s32.totalorder %s13, 5
    %p302 = pnand %p300, %p301
    %p303 = pneg %p302
    // Predicated region
    $region45: #{_lambda_.13} parent=5 // pred_check
      _
    $region46: #{_lambda_.13} parent=5 // pred_check_branch
      %305 = sbr.rel (%p302) target = $region48
    $region47: #{_lambda_.13} parent=5 // pred_region
      %s306 = ssub.s32 %s13, 1
      %s307 = smul.u32 2, %s24
      %p308 = scmp.lt.s32.totalorder %s23, 1
      %s309 = scalar_select %p308, %s23, 1
      %p310 = scmp.lt.s32.totalorder %s307, 1
      %s311 = scalar_select %p310, %s307, 1
      %s312 = smul.addr %s309, 2
      %s313 = sadd.s32 %s311, %s312
      %s314 = smul.addr %s313, 8
      %s315 = scalar_lea.vmem %s0, %s314
      %p316 = pneg %p60
      %p317 = pneg %p57
      %p318 = pneg %p81
      %p319 = pneg %p78
      %p320 = pneg %p102
      %p321 = pneg %p99
      %p322 = scmp.lt.s32.totalorder %s23, 1
      %s323 = scalar_select %p322, %s23, 1
      %s324 = scalar_lea.vmem %s3, %s323
      %p325 = pneg %p128
      %p326 = pneg %p125
      %p327 = scmp.lt.s32.totalorder %s23, 1
      %s328 = scalar_select %p327, %s23, 1
      %s329 = scalar_lea.vmem %s4, %s328
      %p330 = pneg %p154
      %p331 = pneg %p151
      %p332 = scmp.lt.s32.totalorder %s25, 1
      %s333 = scalar_select %p332, %s25, 1
      %s334 = smul.addr %s333, 4
      %s335 = smul.addr %s334, 4
      %s336 = scalar_lea.vmem %s5, %s335
      %p337 = pneg %p180
      %p338 = pneg %p177
      %p339 = scmp.lt.s32.totalorder %s25, 1
      %s340 = scalar_select %p339, %s25, 1
      %s341 = scalar_lea.vmem %s6, %s340
      %p342 = pneg %p206
      %p343 = pneg %p203
      %p344 = pneg %p236
      %p345 = pneg %p233
      %s346 = smul.u32 2, %s24
      %p347 = scmp.lt.s32.totalorder %s23, 1
      %s348 = scalar_select %p347, %s23, 1
      %p349 = scmp.lt.s32.totalorder %s25, 1
      %s350 = scalar_select %p349, %s25, 1
      %p351 = scmp.lt.s32.totalorder %s346, 1
      %s352 = scalar_select %p351, %s346, 1
      %s353 = smul.addr %s350, 2
      %s354 = sadd.s32 %s352, %s353
      %s355 = smul.addr %s348, 4
      %s356 = sadd.s32 %s354, %s355
      %s357 = smul.addr %s356, 4
      %s358 = scalar_lea.vmem %s7, %s357
      %s359 = smul.u32 2, %s24
      %p360 = scmp.lt.s32.totalorder %s23, 1
      %s361 = scalar_select %p360, %s23, 1
      %p362 = scmp.lt.s32.totalorder %s359, 1
      %s363 = scalar_select %p362, %s359, 1
      %s364 = smul.addr %s361, 2
      %s365 = sadd.s32 %s363, %s364
      %s366 = smul.addr %s365, 8
      %s367 = scalar_lea.vmem %s0, %s366
      %s368 = smul.u32 2, %s24
      %p369 = scmp.lt.s32.totalorder %s23, 1
      %s370 = scalar_select %p369, %s23, 1
      %s371 = scalar_lea.vmem %s3, %s370
      %p372 = scmp.lt.s32.totalorder %s23, 1
      %s373 = scalar_select %p372, %s23, 1
      %s374 = scalar_lea.vmem %s4, %s373
      %p375 = scmp.lt.s32.totalorder %s25, 1
      %s376 = scalar_select %p375, %s25, 1
      %s377 = smul.addr %s376, 4
      %s378 = smul.addr %s377, 4
      %s379 = scalar_lea.vmem %s5, %s378
      %p380 = scmp.lt.s32.totalorder %s25, 1
      %s381 = scalar_select %p380, %s25, 1
      %s382 = scalar_lea.vmem %s6, %s381
      %s383 = smul.u32 2, %s24
      %p384 = scmp.lt.s32.totalorder %s23, 1
      %s385 = scalar_select %p384, %s23, 1
      %p386 = scmp.lt.s32.totalorder %s25, 1
      %s387 = scalar_select %p386, %s25, 1
      %p388 = scmp.lt.s32.totalorder %s383, 1
      %s389 = scalar_select %p388, %s383, 1
      %s390 = smul.addr %s387, 2
      %s391 = sadd.s32 %s389, %s390
      %s392 = smul.addr %s385, 4
      %s393 = sadd.s32 %s391, %s392
      %s394 = smul.addr %s393, 4
      %s395 = scalar_lea.vmem %s7, %s394
      %s396 = smul.u32 2, %s24
      %p398 = scmp.eq.s32.totalorder %s25, 0
      // Predicated region
      $region49: #{_lambda_.13} parent=47 // pred_check
        %p399 = pneg %p398
      $region50: #{_lambda_.13} parent=47 // pred_check_branch
        %401 = sbr.rel (%p399) target = $region52
      $region51: #{_lambda_.13} parent=47 // pred_region
        %v402 = vld [vmem:[%s367] sm:$0xff]
        %v403 = vld [vmem:[%s367 + $0x8] sm:$0xff]
        %vm404 = vcmask 261120
        %v405 = vsel %vm404, %v402, 0.0
        %406 = vadd.xlane.f32.xlu0 %v405
        %v407 = vpop.xlane.xlu0 %406
        %v408 = vsel %vm404, %v403, 0.0
        %409 = vadd.xlane.f32.xlu0 %v408
        %v410 = vpop.xlane.xlu0 %409
        %v411 = vrcp.pop 32.0
        %v412 = vmul.f32 32.0, %v411
        %v413 = vsub.f32 1.0, %v412
        %v414 = vmul.f32 %v411, %v413
        %v415 = vadd.f32 %v411, %v414
        %vm416 = vweird.f32 %v411
        %v417 = vsel %vm416, %v411, %v415
        %v418 = vmul.f32 %v407, %v417
        %v419 = vmul.f32 %v410, %v417
        %v420 = vsub.f32 %v402, %v418
        %v421 = vsub.f32 %v403, %v419
        %v422 = vmul.f32 %v420, %v420
        %v423 = vmul.f32 %v421, %v421
        %v424 = vsel %vm404, %v422, 0.0
        %425 = vadd.xlane.f32.xlu0 %v424
        %v426 = vpop.xlane.xlu0 %425
        %v427 = vsel %vm404, %v423, 0.0
        %428 = vadd.xlane.f32.xlu0 %v427
        %v429 = vpop.xlane.xlu0 %428
        %v430 = vmul.f32 %v426, %v417
        %v431 = vmul.f32 %v429, %v417
        %v432 = vadd.f32 %v430, 1e-05
        %v433 = vadd.f32 %v431, 1e-05
        %v434 = vrsqrt.pop %v432
        %v435 = vmul.f32 %v434, %v432
        %v436 = vmul.f32 %v435, %v434
        %v437 = vmul.f32 0.5, %v436
        %v438 = vsub.f32 1.5, %v437
        %v439 = vmul.f32 %v434, %v438
        %vm440 = vweird.f32 %v432
        %vm441 = vweird.f32 %v434
        %vm442 = vmor %vm440, %vm441
        %v443 = vsel %vm442, %v434, %v439
        %v444 = vrsqrt.pop %v433
        %v445 = vmul.f32 %v444, %v433
        %v446 = vmul.f32 %v445, %v444
        %v447 = vmul.f32 0.5, %v446
        %v448 = vsub.f32 1.5, %v447
        %v449 = vmul.f32 %v444, %v448
        %vm450 = vweird.f32 %v433
        %vm451 = vweird.f32 %v444
        %vm452 = vmor %vm450, %vm451
        %v453 = vsel %vm452, %v444, %v449
        %v454 = vmul.f32 %v420, %v443
        %v455 = vmul.f32 %v421, %v453
        %v456 = vld [vmem:[%s1] sm:$0x1]
        %v458 = vperm.slane %v456, 0
        %v460 = vmul.f32 %v454, %v458
        %v461 = vmul.f32 %v455, %v458
        %v462 = vld [vmem:[%s2] sm:$0x1]
        %v464 = vperm.slane %v462, 0
        %v466 = vadd.f32 %v460, %v464
        %v467 = vadd.f32 %v461, %v464
        %v468 = vld [vmem:[%s371] sm:$0x1]
        %v469 = vadd.f32 %v468, 1.0
        %v471 = vperm.slane %v469, 0
        %v473 = vmul.f32 %v466, %v471
        %v474 = vmul.f32 %v467, %v471
        %v475 = vld [vmem:[%s374] sm:$0x1]
        %v477 = vperm.slane %v475, 0
        %v479 = vadd.f32 %v473, %v477
        %v480 = vadd.f32 %v474, %v477
        %v481 = vpack.c.bf16 %v479, %v479
        %v482 = vpack.c.bf16 %v480, %v480
        %vm483 = vcmask 257024
        %484 = vst.msk [vmem:[#allocation2] sm:$0xf] %vm483, %v481
        %485 = vst.msk [vmem:[#allocation2 + $0x4] sm:$0xf] %vm483, %v482
      $region52: #{_lambda_.13} parent=47 // pred_fallthru
        _
      %v486 = vld [vmem:[%s379] sm:$0xf]
      %v487 = vld [vmem:[%s379 + $0x4] sm:$0xf]
      %v488 = vld [vmem:[%s379 + $0x8] sm:$0xf]
      %v489 = vld [vmem:[%s379 + $0xc] sm:$0xf]
      %v490 = vld [vmem:[%s382] sm:$0x1]
      %v491 = vld [vmem:[#allocation2] sm:$0xf]
      %v492 = vld [vmem:[#allocation2 + $0x4] sm:$0xf]
      %v494 = vperm.slane %v490, 0
      %v498 = vunpack.c.l.b16 %v491
      %v499 = vunpack.c.l.b16 %v492
      %v500 = vpack.c.b16 %v499, %v498
      %v505 = vunpack.c.l.b16 %v486
      %v506 = vunpack.c.l.b16 %v487
      %v507 = vunpack.c.l.b16 %v488
      %v508 = vunpack.c.l.b16 %v489
      %v509 = vpack.c.b16 %v506, %v505
      %v510 = vpack.c.b16 %v508, %v507
      %vm513 = vcmask 261120
      %v515 = vsel %vm513, %v500, 0
      %517 = vmatpush.bf16.msra.mxu0 0
      %518 = vmatpush.bf16.msra.mxu0 0
      %519 = vmatpush.bf16.msra.mxu0 0
      %520 = vmatpush.bf16.msra.mxu0 0
      %521 = vmatpush.bf16.msra.mxu0 0
      %522 = vmatpush.bf16.msra.mxu0 0
      %523 = vmatpush.bf16.msra.mxu0 %v510
      %524 = vmatpush.bf16.msra.mxu0 %v509
      %525 = vmatmul.bf16.gmra.mxu0 %v515
      %v526 = vpop.f32.mrf.mxu0
      %v527 = vadd.f32 %v494, %v526
      %v528 = vpop.f32.mrf.mxu0
      %v529 = vadd.f32 %v494, %v528
      %530 = vdwg.mxu0
      %v531 = vpack.c.bf16 %v527, %v527
      %v532 = vpack.c.bf16 %v529, %v529
      %vm533 = vcmask 781312
      %534 = vst.msk [vmem:[%s395] sm:$0xf] %vm533, %v531
      %535 = vst.msk [vmem:[%s395 + $0x4] sm:$0xf] %vm533, %v532
      %s536 = smul.u32 2, %s24
      %p537 = scmp.lt.s32.totalorder %s23, 1
      %s538 = scalar_select %p537, %s23, 1
      %p539 = scmp.lt.s32.totalorder %s25, 1
      %s540 = scalar_select %p539, %s25, 1
      %p541 = scmp.lt.s32.totalorder %s536, 1
      %s542 = scalar_select %p541, %s536, 1
      %s543 = smul.addr %s540, 2
      %s544 = sadd.s32 %s542, %s543
      %s545 = smul.addr %s538, 4
      %s546 = sadd.s32 %s544, %s545
      %s547 = smul.addr %s546, 4
      %s548 = scalar_lea.vmem %s7, %s547
      // Predicated region
      $region53: #{_lambda_.13} parent=47 // pred_check
        %p549 = pneg %p233
      $region54: #{_lambda_.13} parent=47 // pred_check_branch
        %551 = sbr.rel (%p549) target = $region56
      $region55: #{_lambda_.13} parent=47 // pred_region
        %s552 = smul.u32 2, %s24
      $region56: #{_lambda_.13} parent=47 // pred_fallthru
        _
    $region48: #{_lambda_.13} parent=5 // pred_fallthru
      _
    %p553 = scmp.le.s32.totalorder 2, %s13
    // Predicated region
    $region57: #{_lambda_.13} parent=5 // pred_check
      %p554 = pneg %p553
    $region58: #{_lambda_.13} parent=5 // pred_check_branch
      %556 = sbr.rel (%p554) target = $region60
    $region59: #{_lambda_.13} parent=5 // pred_region
      %s557 = ssub.s32 %s13, 2
      // Predicated region
      $region61: #{_lambda_.13} parent=59 // pred_check
        %p558 = pneg %p239
      $region62: #{_lambda_.13} parent=59 // pred_check_branch
        %560 = sbr.rel (%p558) target = $region64
      $region63: #{_lambda_.13} parent=59 // pred_region
        %s561 = smul.u32 2, %s27
        %p562 = scmp.lt.s32.totalorder %s26, 1
        %s563 = scalar_select %p562, %s26, 1
        %p564 = scmp.lt.s32.totalorder %s28, 1
        %s565 = scalar_select %p564, %s28, 1
        %p566 = scmp.lt.s32.totalorder %s561, 1
        %s567 = scalar_select %p566, %s561, 1
        %s568 = smul.addr %s565, 2
        %s569 = sadd.s32 %s567, %s568
        %s570 = smul.addr %s563, 4
        %s571 = sadd.s32 %s569, %s570
        %s572 = smul.addr %s571, 4
        %s573 = scalar_lea.vmem %s7, %s572
      $region64: #{_lambda_.13} parent=59 // pred_fallthru
        _
    $region60: #{_lambda_.13} parent=5 // pred_fallthru
      _
  $region6: #{_lambda_.13} parent=0 // loop_footer
    %s17 = sadd.s32 1, %s13
  $region7: #{_lambda_.13} parent=0 // loop_footer_branch
    %12 = sbr.rel target = $region3
  $region8: #{_lambda_.13} parent=0 // loop_exit
    _

// kernel: _lambda_.14
$region0: #{_lambda_.14}
  #allocation0 [shape = 'u32[]', space=smem, size = 0x4, offset = 0x4, fixed_abs, tag = 'smem constant byte address 0x4 - core index']
  #allocation1 [shape = 'u32[72,128]{1,0:T(1,128)}', space=vmem, size = 0x9000, scoped, tag = 'internal scratch']
  #allocation2 [shape = 'f32[16,32]{1,0:T(8,128)}', space=vmem, size = 0x2000, scoped, tag = 'scratch operand']
  %s0 = inlined_call_operand.vmem [shape: bf16[2,2,16,96], index: 0, kind: input, shape index: {}]
  %s1 = inlined_call_operand.vmem [shape: bf16[64,32], index: 1, kind: input, shape index: {}]
  %s2 = inlined_call_operand.vmem [shape: f32[1,32], index: 2, kind: input, shape index: {}]
  %s3 = inlined_call_operand.vmem [shape: f32[2,16,32], index: 3, kind: input, shape index: {}]
  %s4 = inlined_call_operand.vmem [shape: f32[2,1,32], index: 4, kind: input, shape index: {}]
  %s5 = inlined_call_operand.vmem [shape: f32[2,16,32], index: 5, kind: output, shape index: {}]
  %s6 = sld [smem:[#allocation0]]
  $region61: #{_lambda_.14} parent=0
    _
  %s8 = ssub.s32 1, %s6
  %s9 = scalar_select 0, %s8, %s6
  loop: start=0, step=1, limit=6
  $region2: #{_lambda_.14} parent=0 // loop_pre_header
    _
  $region3: #{_lambda_.14} parent=0 // loop_header
    %s11 = sphi 0, %s15
    %p12 = scmp.ge.s32.totalorder %s11, 6
    %s18 = sphi 0, %s30
    %s19 = sphi 0, %s26
    %s20 = sphi 0, %s18
    %s21 = sphi 0, %s19
    %s22 = sphi 0, %s20
    %s23 = sphi 0, %s21
    %s35 = sphi 0, %s37
    %s38 = sphi 0, %s35
    %s39 = sphi 0, %s38
    %s55 = sphi 0, %s39
    %s61 = sphi 0, %s63
    %s64 = sphi 0, %s61
    %s65 = sphi 0, %s64
    %s81 = sphi 0, %s65
    %s85 = sphi 0, %s85
    %s87 = sphi 0, %s85
    %s88 = sphi 0, %s87
    %s102 = sphi 0, %s88
    %s108 = sphi 0, %s110
    %s111 = sphi 0, %s108
    %s112 = sphi 0, %s111
    %s128 = sphi 0, %s112
    %s134 = sphi 0, %s136
    %s137 = sphi 0, %s134
    %s138 = sphi 0, %s137
    %s154 = sphi 0, %s138
    %s160 = sphi 0, %s162
    %s163 = sphi 0, %s160
    %s164 = sphi 0, %s163
    %s180 = sphi 0, %s164
  $region4: #{_lambda_.14} parent=0 // loop_header_branch
    %14 = sbr.rel (%p12) target = $region8
  $region5: #{_lambda_.14} parent=0 // loop_body
    %s16 = ssub.s32 %s11, 1
    %s17 = ssub.s32 %s11, 2
    %s24 = sadd.s32 1, %s19
    %p25 = scmp.ge.s32.totalorder %s24, 2
    %s26 = scalar_select %p25, 0, %s24
    %s27 = sadd.s32 1, %s18
    %s28 = scalar_select %p25, %s27, %s18
    %p29 = scmp.ge.s32.totalorder %s28, 2
    %s30 = scalar_select %p29, 0, %s28
    %s31 = ssub.s32 %s18, %s30
    %s32 = ssub.s32 %s19, %s26
    %s33 = sor.u32 %s31, %s32
    %p34 = scmp.eq.s32.totalorder %s33, 0
    %s36 = sadd.s32 %s35, 1
    %s37 = scalar_select %p34, %s35, %s36
    %p40 = pneg %p34
    %p41 = scmp.eq.s32.totalorder %s11, 3
    %p42 = por %p40, %p41
    %p43 = scmp.ne.s32.totalorder %s35, %s38
    %p44 = scmp.eq.s32.totalorder %s11, 0
    %p45 = por %p43, %p44
    %p46 = scmp.ne.s32.totalorder %s35, %s38
    %p47 = scmp.eq.s32.totalorder %s16, 3
    %p48 = por %p46, %p47
    %p49 = scmp.ne.s32.totalorder %s38, %s39
    %p50 = scmp.eq.s32.totalorder %s16, 0
    %p51 = por %p49, %p50
    %p52 = scmp.ne.s32.totalorder %s38, %s39
    %p53 = scmp.eq.s32.totalorder %s17, 3
    %p54 = por %p52, %p53
    %p56 = scmp.ne.s32.totalorder %s39, %s55
    %p57 = scmp.eq.s32.totalorder %s17, 0
    %p58 = por %p56, %p57
    %s59 = ssub.s32 %s19, %s26
    %p60 = scmp.eq.s32.totalorder %s59, 0
    %s62 = sadd.s32 %s61, 1
    %s63 = scalar_select %p60, %s61, %s62
    %p66 = pneg %p60
    %p67 = scmp.eq.s32.totalorder %s11, 3
    %p68 = por %p66, %p67
    %p69 = scmp.ne.s32.totalorder %s61, %s64
    %p70 = scmp.eq.s32.totalorder %s11, 0
    %p71 = por %p69, %p70
    %p72 = scmp.ne.s32.totalorder %s61, %s64
    %p73 = scmp.eq.s32.totalorder %s16, 3
    %p74 = por %p72, %p73
    %p75 = scmp.ne.s32.totalorder %s64, %s65
    %p76 = scmp.eq.s32.totalorder %s16, 0
    %p77 = por %p75, %p76
    %p78 = scmp.ne.s32.totalorder %s64, %s65
    %p79 = scmp.eq.s32.totalorder %s17, 3
    %p80 = por %p78, %p79
    %p82 = scmp.ne.s32.totalorder %s65, %s81
    %p83 = scmp.eq.s32.totalorder %s17, 0
    %p84 = por %p82, %p83
    %s86 = sadd.s32 %s85, 1
    %p89 = scmp.eq.s32.totalorder %s11, 3
    %p90 = scmp.ne.s32.totalorder %s85, %s87
    %p91 = scmp.eq.s32.totalorder %s11, 0
    %p92 = por %p90, %p91
    %p93 = scmp.ne.s32.totalorder %s85, %s87
    %p94 = scmp.eq.s32.totalorder %s16, 3
    %p95 = por %p93, %p94
    %p96 = scmp.ne.s32.totalorder %s87, %s88
    %p97 = scmp.eq.s32.totalorder %s16, 0
    %p98 = por %p96, %p97
    %p99 = scmp.ne.s32.totalorder %s87, %s88
    %p100 = scmp.eq.s32.totalorder %s17, 3
    %p101 = por %p99, %p100
    %p103 = scmp.ne.s32.totalorder %s88, %s102
    %p104 = scmp.eq.s32.totalorder %s17, 0
    %p105 = por %p103, %p104
    %s106 = ssub.s32 %s18, %s30
    %p107 = scmp.eq.s32.totalorder %s106, 0
    %s109 = sadd.s32 %s108, 1
    %s110 = scalar_select %p107, %s108, %s109
    %p113 = pneg %p107
    %p114 = scmp.eq.s32.totalorder %s11, 3
    %p115 = por %p113, %p114
    %p116 = scmp.ne.s32.totalorder %s108, %s111
    %p117 = scmp.eq.s32.totalorder %s11, 0
    %p118 = por %p116, %p117
    %p119 = scmp.ne.s32.totalorder %s108, %s111
    %p120 = scmp.eq.s32.totalorder %s16, 3
    %p121 = por %p119, %p120
    %p122 = scmp.ne.s32.totalorder %s111, %s112
    %p123 = scmp.eq.s32.totalorder %s16, 0
    %p124 = por %p122, %p123
    %p125 = scmp.ne.s32.totalorder %s111, %s112
    %p126 = scmp.eq.s32.totalorder %s17, 3
    %p127 = por %p125, %p126
    %p129 = scmp.ne.s32.totalorder %s112, %s128
    %p130 = scmp.eq.s32.totalorder %s17, 0
    %p131 = por %p129, %p130
    %s132 = ssub.s32 %s18, %s30
    %p133 = scmp.eq.s32.totalorder %s132, 0
    %s135 = sadd.s32 %s134, 1
    %s136 = scalar_select %p133, %s134, %s135
    %p139 = pneg %p133
    %p140 = scmp.eq.s32.totalorder %s11, 3
    %p141 = por %p139, %p140
    %p142 = scmp.ne.s32.totalorder %s134, %s137
    %p143 = scmp.eq.s32.totalorder %s11, 0
    %p144 = por %p142, %p143
    %p145 = scmp.ne.s32.totalorder %s134, %s137
    %p146 = scmp.eq.s32.totalorder %s16, 3
    %p147 = por %p145, %p146
    %p148 = scmp.ne.s32.totalorder %s137, %s138
    %p149 = scmp.eq.s32.totalorder %s16, 0
    %p150 = por %p148, %p149
    %p151 = scmp.ne.s32.totalorder %s137, %s138
    %p152 = scmp.eq.s32.totalorder %s17, 3
    %p153 = por %p151, %p152
    %p155 = scmp.ne.s32.totalorder %s138, %s154
    %p156 = scmp.eq.s32.totalorder %s17, 0
    %p157 = por %p155, %p156
    %s158 = ssub.s32 %s18, %s30
    %p159 = scmp.eq.s32.totalorder %s158, 0
    %s161 = sadd.s32 %s160, 1
    %s162 = scalar_select %p159, %s160, %s161
    %p165 = pneg %p159
    %p166 = scmp.eq.s32.totalorder %s11, 3
    %p167 = por %p165, %p166
    %p168 = scmp.ne.s32.totalorder %s160, %s163
    %p169 = scmp.eq.s32.totalorder %s11, 0
    %p170 = por %p168, %p169
    %p171 = scmp.ne.s32.totalorder %s160, %s163
    %p172 = scmp.eq.s32.totalorder %s16, 3
    %p173 = por %p171, %p172
    %p174 = scmp.ne.s32.totalorder %s163, %s164
    %p175 = scmp.eq.s32.totalorder %s16, 0
    %p176 = por %p174, %p175
    %p177 = scmp.ne.s32.totalorder %s163, %s164
    %p178 = scmp.eq.s32.totalorder %s17, 3
    %p179 = por %p177, %p178
    %p181 = scmp.ne.s32.totalorder %s164, %s180
    %p182 = scmp.eq.s32.totalorder %s17, 0
    %p183 = por %p181, %p182
    %p184 = scmp.le.s32.totalorder 1, %s11
    %p185 = scmp.lt.s32.totalorder %s11, 5
    %p186 = pnand %p184, %p185
    %p187 = pneg %p186
    // Predicated region
    $region9: #{_lambda_.14} parent=5 // pred_check
      _
    $region10: #{_lambda_.14} parent=5 // pred_check_branch
      %189 = sbr.rel (%p186) target = $region12
    $region11: #{_lambda_.14} parent=5 // pred_region
      %s190 = ssub.s32 %s11, 1
      // Predicated region
      $region13: #{_lambda_.14} parent=11 // pred_check
        %p191 = pneg %p98
      $region14: #{_lambda_.14} parent=11 // pred_check_branch
        %193 = sbr.rel (%p191) target = $region16
      $region15: #{_lambda_.14} parent=11 // pred_region
        _
      $region16: #{_lambda_.14} parent=11 // pred_fallthru
        _
    $region12: #{_lambda_.14} parent=5 // pred_fallthru
      _
    %p194 = scmp.lt.s32.totalorder %s11, 4
    // Predicated region
    $region17: #{_lambda_.14} parent=5 // pred_check
      %p195 = pneg %p194
    $region18: #{_lambda_.14} parent=5 // pred_check_branch
      %197 = sbr.rel (%p195) target = $region20
    $region19: #{_lambda_.14} parent=5 // pred_region
      // Predicated region
      $region21: #{_lambda_.14} parent=19 // pred_check
        %p198 = pneg %p45
      $region22: #{_lambda_.14} parent=19 // pred_check_branch
        %200 = sbr.rel (%p198) target = $region24
      $region23: #{_lambda_.14} parent=19 // pred_region
        %p201 = scmp.lt.s32.totalorder %s18, 1
        %s202 = scalar_select %p201, %s18, 1
        %p203 = scmp.lt.s32.totalorder %s19, 1
        %s204 = scalar_select %p203, %s19, 1
        %s205 = smul.addr %s204, 2
        %s206 = smul.addr %s202, 4
        %s207 = sadd.s32 %s205, %s206
        %s208 = smul.addr %s207, 4
        %s209 = scalar_lea.vmem %s0, %s208
      $region24: #{_lambda_.14} parent=19 // pred_fallthru
        _
      // Predicated region
      $region25: #{_lambda_.14} parent=19 // pred_check
        %p210 = pneg %p71
      $region26: #{_lambda_.14} parent=19 // pred_check_branch
        %212 = sbr.rel (%p210) target = $region28
      $region27: #{_lambda_.14} parent=19 // pred_region
        %s213 = smul.u32 4, %s19
        %p214 = scmp.lt.s32.totalorder %s213, 7
        %s215 = scalar_select %p214, %s213, 7
        %s216 = smul.addr %s215, 4
        %s217 = scalar_lea.vmem %s1, %s216
        %s218 = smul.u32 4, %s19
      $region28: #{_lambda_.14} parent=19 // pred_fallthru
        _
      // Predicated region
      $region29: #{_lambda_.14} parent=19 // pred_check
        %p219 = pneg %p118
      $region30: #{_lambda_.14} parent=19 // pred_check_branch
        %221 = sbr.rel (%p219) target = $region32
      $region31: #{_lambda_.14} parent=19 // pred_region
        %p222 = scmp.lt.s32.totalorder %s18, 1
        %s223 = scalar_select %p222, %s18, 1
        %s224 = smul.addr %s223, 2
        %s225 = smul.addr %s224, 8
        %s226 = scalar_lea.vmem %s3, %s225
      $region32: #{_lambda_.14} parent=19 // pred_fallthru
        _
      // Predicated region
      $region33: #{_lambda_.14} parent=19 // pred_check
        %p227 = pneg %p144
      $region34: #{_lambda_.14} parent=19 // pred_check_branch
        %229 = sbr.rel (%p227) target = $region36
      $region35: #{_lambda_.14} parent=19 // pred_region
        %p230 = scmp.lt.s32.totalorder %s18, 1
        %s231 = scalar_select %p230, %s18, 1
        %s232 = scalar_lea.vmem %s4, %s231
      $region36: #{_lambda_.14} parent=19 // pred_fallthru
        _
    $region20: #{_lambda_.14} parent=5 // pred_fallthru
      _
    %p233 = scmp.le.s32.totalorder 1, %s11
    %p234 = scmp.lt.s32.totalorder %s11, 5
    %p235 = pnand %p233, %p234
    %p236 = pneg %p235
    // Predicated region
    $region37: #{_lambda_.14} parent=5 // pred_check
      _
    $region38: #{_lambda_.14} parent=5 // pred_check_branch
      %238 = sbr.rel (%p235) target = $region40
    $region39: #{_lambda_.14} parent=5 // pred_region
      %s239 = ssub.s32 %s11, 1
      %p240 = scmp.lt.s32.totalorder %s20, 1
      %s241 = scalar_select %p240, %s20, 1
      %p242 = scmp.lt.s32.totalorder %s21, 1
      %s243 = scalar_select %p242, %s21, 1
      %s244 = smul.addr %s243, 2
      %s245 = smul.addr %s241, 4
      %s246 = sadd.s32 %s244, %s245
      %s247 = smul.addr %s246, 4
      %s248 = scalar_lea.vmem %s0, %s247
      %p249 = pneg %p51
      %p250 = pneg %p48
      %s251 = smul.u32 4, %s21
      %p252 = scmp.lt.s32.totalorder %s251, 7
      %s253 = scalar_select %p252, %s251, 7
      %s254 = smul.addr %s253, 4
      %s255 = scalar_lea.vmem %s1, %s254
      %p256 = pneg %p77
      %p257 = pneg %p74
      %p258 = pneg %p98
      %p259 = pneg %p95
      %p260 = scmp.lt.s32.totalorder %s20, 1
      %s261 = scalar_select %p260, %s20, 1
      %s262 = smul.addr %s261, 2
      %s263 = smul.addr %s262, 8
      %s264 = scalar_lea.vmem %s3, %s263
      %p265 = pneg %p124
      %p266 = pneg %p121
      %p267 = scmp.lt.s32.totalorder %s20, 1
      %s268 = scalar_select %p267, %s20, 1
      %s269 = scalar_lea.vmem %s4, %s268
      %p270 = pneg %p150
      %p271 = pneg %p147
      %p272 = pneg %p176
      %p273 = pneg %p173
      %p274 = scmp.lt.s32.totalorder %s20, 1
      %s275 = scalar_select %p274, %s20, 1
      %s276 = smul.addr %s275, 2
      %s277 = smul.addr %s276, 8
      %s278 = scalar_lea.vmem %s5, %s277
      %p279 = scmp.lt.s32.totalorder %s20, 1
      %s280 = scalar_select %p279, %s20, 1
      %p281 = scmp.lt.s32.totalorder %s21, 1
      %s282 = scalar_select %p281, %s21, 1
      %s283 = smul.addr %s282, 2
      %s284 = smul.addr %s280, 4
      %s285 = sadd.s32 %s283, %s284
      %s286 = smul.addr %s285, 4
      %s287 = scalar_lea.vmem %s0, %s286
      %s288 = smul.u32 4, %s21
      %p289 = scmp.lt.s32.totalorder %s288, 7
      %s290 = scalar_select %p289, %s288, 7
      %s291 = smul.addr %s290, 4
      %s292 = scalar_lea.vmem %s1, %s291
      %s293 = smul.u32 4, %s21
      %p294 = scmp.lt.s32.totalorder %s20, 1
      %s295 = scalar_select %p294, %s20, 1
      %s296 = smul.addr %s295, 2
      %s297 = smul.addr %s296, 8
      %s298 = scalar_lea.vmem %s3, %s297
      %p299 = scmp.lt.s32.totalorder %s20, 1
      %s300 = scalar_select %p299, %s20, 1
      %s301 = scalar_lea.vmem %s4, %s300
      %p302 = scmp.lt.s32.totalorder %s20, 1
      %s303 = scalar_select %p302, %s20, 1
      %s304 = smul.addr %s303, 2
      %s305 = smul.addr %s304, 8
      %s306 = scalar_lea.vmem %s5, %s305
      %p308 = scmp.eq.s32.totalorder %s21, 0
      // Predicated region
      $region41: #{_lambda_.14} parent=39 // pred_check
        %p309 = pneg %p308
      $region42: #{_lambda_.14} parent=39 // pred_check_branch
        %311 = sbr.rel (%p309) target = $region44
      $region43: #{_lambda_.14} parent=39 // pred_region
        %vm312 = vcmask 261120
        %313 = vst.msk [vmem:[#allocation2] sm:$0xff] %vm312, 0.0
        %314 = vst.msk [vmem:[#allocation2 + $0x8] sm:$0xff] %vm312, 0.0
      $region44: #{_lambda_.14} parent=39 // pred_fallthru
        _
      %v315 = vld [vmem:[%s287] sm:$0xf]
      %v316 = vld [vmem:[%s287 + $0x4] sm:$0xf]
      %v319 = vunpack.c.l.b16 %v315
      %v320 = vunpack.c.l.b16 %v316
      %v321 = vpack.c.b16 %v320, %v319
      %322 = vrot.lane.b32.xlu0 %v321, 96
      %v323 = vpop.permute.xlu0 %322
      %vm324 = vcmask 261120
      %v326 = vsel %vm324, %v321, 0
      %v329 = vsel %vm324, %v323, 0
      %331 = vmatpush.bf16.xpose.msra.mxu0 0
      %332 = vmatpush.bf16.xpose.msra.mxu0 0
      %333 = vmatpush.bf16.xpose.msra.mxu0 0
      %334 = vmatpush.bf16.xpose.msra.mxu0 0
      %335 = vmatpush.bf16.xpose.msra.mxu0 0
      %336 = vmatpush.bf16.xpose.msra.mxu0 0
      %337 = vmatpush.bf16.xpose.msra.mxu0 0
      %338 = vmatpush.bf16.xpose.msra.mxu0 %v329
      %339 = vmatmul.bf16.gmra.mxu0 %v326
      %v340 = vpop.f32.mrf.mxu0
      %v341 = vadd.f32 0.0, %v340
      %v342 = vpop.f32.mrf.mxu0
      %v343 = vadd.f32 0.0, %v342
      %344 = vdwg.mxu0
      %vm345 = vcmask 130048
      %v346 = vsel %vm345, %v341, -inf
      %347 = vmax.xlane.f32.xlu0 %v346
      %v348 = vpop.xlane.xlu0 %347
      %v349 = vsel %vm345, %v343, -inf
      %350 = vmax.xlane.f32.xlu0 %v349
      %v351 = vpop.xlane.xlu0 %350
      %v352 = vsub.f32 %v341, %v348
      %v353 = vsub.f32 %v343, %v351
      %v354 = vmul.f32 %v352, 1.442695
      %v355 = vpow.pop %v354
      %v356 = vmul.f32 %v353, 1.442695
      %v357 = vpow.pop %v356
      %v358 = vsel %vm345, %v355, 0.0
      %359 = vadd.xlane.f32.xlu0 %v358
      %v360 = vpop.xlane.xlu0 %359
      %v361 = vsel %vm345, %v357, 0.0
      %362 = vadd.xlane.f32.xlu0 %v361
      %v363 = vpop.xlane.xlu0 %362
      %v364 = vrcp.pop %v360
      %v365 = vrcp.pop %v363
      %v366 = vmul.f32 %v355, %v364
      %v367 = vmul.f32 %v357, %v365
      %v368 = vpack.c.bf16 %v367, %v366
      %369 = vrot.lane.b32.xlu0 %v321, 64
      %v370 = vpop.permute.xlu0 %369
      %v373 = vsel %vm345, %v368, 0
      %375 = vmatpush.bf16.msra.mxu0 0
      %376 = vmatpush.bf16.msra.mxu0 0
      %377 = vmatpush.bf16.msra.mxu0 0
      %378 = vmatpush.bf16.msra.mxu0 0
      %379 = vmatpush.bf16.msra.mxu0 0
      %380 = vmatpush.bf16.msra.mxu0 0
      %381 = vmatpush.bf16.msra.mxu0 0
      %382 = vmatpush.bf16.msra.mxu0 %v370
      %383 = vmatmul.bf16.gmra.mxu0 %v373
      %v384 = vpop.f32.mrf.mxu0
      %v385 = vadd.f32 0.0, %v384
      %v386 = vpop.f32.mrf.mxu0
      %v387 = vadd.f32 0.0, %v386
      %388 = vdwg.mxu0
      %v389 = vld [vmem:[#allocation2] sm:$0xff]
      %v390 = vld [vmem:[#allocation2 + $0x8] sm:$0xff]
      %v391 = vpack.c.bf16 %v387, %v385
      %v392 = vld [vmem:[%s292] sm:$0xf]
      %v393 = vld [vmem:[%s292 + $0x4] sm:$0xf]
      %v394 = vld [vmem:[%s292 + $0x8] sm:$0xf]
      %v395 = vld [vmem:[%s292 + $0xc] sm:$0xf]
      %v400 = vunpack.c.l.b16 %v392
      %v401 = vunpack.c.l.b16 %v393
      %v402 = vunpack.c.l.b16 %v394
      %v403 = vunpack.c.l.b16 %v395
      %v404 = vpack.c.b16 %v401, %v400
      %v405 = vpack.c.b16 %v403, %v402
      %v409 = vsel %vm324, %v391, 0
      %411 = vmatpush.bf16.msra.mxu0 0
      %412 = vmatpush.bf16.msra.mxu0 0
      %413 = vmatpush.bf16.msra.mxu0 0
      %414 = vmatpush.bf16.msra.mxu0 0
      %415 = vmatpush.bf16.msra.mxu0 0
      %416 = vmatpush.bf16.msra.mxu0 0
      %417 = vmatpush.bf16.msra.mxu0 %v405
      %418 = vmatpush.bf16.msra.mxu0 %v404
      %419 = vmatmul.bf16.gmra.mxu0 %v409
      %v420 = vpop.f32.mrf.mxu0
      %v421 = vadd.f32 0.0, %v420
      %v422 = vpop.f32.mrf.mxu0
      %v423 = vadd.f32 0.0, %v422
      %424 = vdwg.mxu0
      %v425 = vadd.f32 %v389, %v421
      %v426 = vadd.f32 %v390, %v423
      %427 = vst.msk [vmem:[#allocation2] sm:$0xff] %vm324, %v425
      %428 = vst.msk [vmem:[#allocation2 + $0x8] sm:$0xff] %vm324, %v426
      %p429 = scmp.eq.s32.totalorder %s21, 1
      // Predicated region
      $region45: #{_lambda_.14} parent=39 // pred_check
        %p430 = pneg %p429
      $region46: #{_lambda_.14} parent=39 // pred_check_branch
        %432 = sbr.rel (%p430) target = $region48
      $region47: #{_lambda_.14} parent=39 // pred_region
        %v433 = vld [vmem:[#allocation2] sm:$0xff]
        %v434 = vld [vmem:[#allocation2 + $0x8] sm:$0xff]
        %v435 = vld [vmem:[%s2] sm:$0x1]
        %v437 = vperm.slane %v435, 0
        %v439 = vadd.f32 %v433, %v437
        %v440 = vadd.f32 %v434, %v437
        %v441 = vld [vmem:[%s298] sm:$0xff]
        %v442 = vld [vmem:[%s298 + $0x8] sm:$0xff]
        %v443 = vld [vmem:[%s301] sm:$0x1]
        %v445 = vperm.slane %v443, 0
        %v447 = vmul.f32 %v439, %v445
        %v448 = vmul.f32 %v440, %v445
        %v449 = vadd.f32 %v441, %v447
        %v450 = vadd.f32 %v442, %v448
        %451 = vst.msk [vmem:[%s306] sm:$0xff] %vm324, %v449
        %452 = vst.msk [vmem:[%s306 + $0x8] sm:$0xff] %vm324, %v450
      $region48: #{_lambda_.14} parent=39 // pred_fallthru
        _
      %p453 = scmp.lt.s32.totalorder %s20, 1
      %s454 = scalar_select %p453, %s20, 1
      %s455 = smul.addr %s454, 2
      %s456 = smul.addr %s455, 8
      %s457 = scalar_lea.vmem %s5, %s456
      // Predicated region
      $region49: #{_lambda_.14} parent=39 // pred_check
        %p458 = pneg %p173
      $region50: #{_lambda_.14} parent=39 // pred_check_branch
        %460 = sbr.rel (%p458) target = $region52
      $region51: #{_lambda_.14} parent=39 // pred_region
        _
      $region52: #{_lambda_.14} parent=39 // pred_fallthru
        _
    $region40: #{_lambda_.14} parent=5 // pred_fallthru
      _
    %p461 = scmp.le.s32.totalorder 2, %s11
    // Predicated region
    $region53: #{_lambda_.14} parent=5 // pred_check
      %p462 = pneg %p461
    $region54: #{_lambda_.14} parent=5 // pred_check_branch
      %464 = sbr.rel (%p462) target = $region56
    $region55: #{_lambda_.14} parent=5 // pred_region
      %s465 = ssub.s32 %s11, 2
      // Predicated region
      $region57: #{_lambda_.14} parent=55 // pred_check
        %p466 = pneg %p179
      $region58: #{_lambda_.14} parent=55 // pred_check_branch
        %468 = sbr.rel (%p466) target = $region60
      $region59: #{_lambda_.14} parent=55 // pred_region
        %p469 = scmp.lt.s32.totalorder %s22, 1
        %s470 = scalar_select %p469, %s22, 1
        %s471 = smul.addr %s470, 2
        %s472 = smul.addr %s471, 8
        %s473 = scalar_lea.vmem %s5, %s472
      $region60: #{_lambda_.14} parent=55 // pred_fallthru
        _
    $region56: #{_lambda_.14} parent=5 // pred_fallthru
      _
  $region6: #{_lambda_.14} parent=0 // loop_footer
    %s15 = sadd.s32 1, %s11
  $region7: #{_lambda_.14} parent=0 // loop_footer_branch
    %10 = sbr.rel target = $region3
  $region8: #{_lambda_.14} parent=0 // loop_exit
    _

// kernel: _lambda_.16
$region0: #{_lambda_.16}
  #allocation0 [shape = 'u32[]', space=smem, size = 0x4, offset = 0x4, fixed_abs, tag = 'smem constant byte address 0x4 - core index']
  #allocation1 [shape = 'u32[72,128]{1,0:T(1,128)}', space=vmem, size = 0x9000, scoped, tag = 'internal scratch']
  #allocation2 [shape = 'f32[16,32]{1,0:T(8,128)}', space=vmem, size = 0x2000, scoped, tag = 'scratch operand']
  %s0 = inlined_call_operand.vmem [shape: bf16[2,16,128], index: 0, kind: input, shape index: {}]
  %s1 = inlined_call_operand.vmem [shape: bf16[128,32], index: 1, kind: input, shape index: {}]
  %s2 = inlined_call_operand.vmem [shape: f32[1,32], index: 2, kind: input, shape index: {}]
  %s3 = inlined_call_operand.vmem [shape: f32[2,16,32], index: 3, kind: input, shape index: {}]
  %s4 = inlined_call_operand.vmem [shape: f32[2,1,32], index: 4, kind: input, shape index: {}]
  %s5 = inlined_call_operand.vmem [shape: f32[2,16,32], index: 5, kind: output, shape index: {}]
  %s6 = sld [smem:[#allocation0]]
  $region61: #{_lambda_.16} parent=0
    _
  %s8 = ssub.s32 1, %s6
  %s9 = scalar_select 0, %s8, %s6
  loop: start=0, step=1, limit=4
  $region2: #{_lambda_.16} parent=0 // loop_pre_header
    _
  $region3: #{_lambda_.16} parent=0 // loop_header
    %s11 = sphi 0, %s15
    %p12 = scmp.ge.s32.totalorder %s11, 4
    %s18 = sphi 0, %s37
    %s19 = sphi 0, %s33
    %s20 = sphi 0, %s29
    %s21 = sphi 0, %s18
    %s22 = sphi 0, %s19
    %s23 = sphi 0, %s20
    %s24 = sphi 0, %s21
    %s25 = sphi 0, %s22
    %s26 = sphi 0, %s23
    %s44 = sphi 0, %s46
    %s47 = sphi 0, %s44
    %s48 = sphi 0, %s47
    %s64 = sphi 0, %s48
    %s70 = sphi 0, %s72
    %s73 = sphi 0, %s70
    %s74 = sphi 0, %s73
    %s90 = sphi 0, %s74
    %s94 = sphi 0, %s94
    %s96 = sphi 0, %s94
    %s97 = sphi 0, %s96
    %s111 = sphi 0, %s97
    %s119 = sphi 0, %s121
    %s122 = sphi 0, %s119
    %s123 = sphi 0, %s122
    %s139 = sphi 0, %s123
    %s145 = sphi 0, %s147
    %s148 = sphi 0, %s145
    %s149 = sphi 0, %s148
    %s165 = sphi 0, %s149
    %s173 = sphi 0, %s175
    %s176 = sphi 0, %s173
    %s177 = sphi 0, %s176
    %s193 = sphi 0, %s177
  $region4: #{_lambda_.16} parent=0 // loop_header_branch
    %14 = sbr.rel (%p12) target = $region8
  $region5: #{_lambda_.16} parent=0 // loop_body
    %s16 = ssub.s32 %s11, 1
    %s17 = ssub.s32 %s11, 2
    %s27 = sadd.s32 1, %s20
    %p28 = scmp.ge.s32.totalorder %s27, 1
    %s29 = scalar_select %p28, 0, %s27
    %s30 = sadd.s32 1, %s19
    %s31 = scalar_select %p28, %s30, %s19
    %p32 = scmp.ge.s32.totalorder %s31, 1
    %s33 = scalar_select %p32, 0, %s31
    %s34 = sadd.s32 1, %s18
    %s35 = scalar_select %p32, %s34, %s18
    %p36 = scmp.ge.s32.totalorder %s35, 2
    %s37 = scalar_select %p36, 0, %s35
    %s38 = ssub.s32 %s18, %s37
    %s39 = ssub.s32 %s19, %s33
    %s40 = sor.u32 %s38, %s39
    %s41 = ssub.s32 %s20, %s29
    %s42 = sor.u32 %s40, %s41
    %p43 = scmp.eq.s32.totalorder %s42, 0
    %s45 = sadd.s32 %s44, 1
    %s46 = scalar_select %p43, %s44, %s45
    %p49 = pneg %p43
    %p50 = scmp.eq.s32.totalorder %s11, 1
    %p51 = por %p49, %p50
    %p52 = scmp.ne.s32.totalorder %s44, %s47
    %p53 = scmp.eq.s32.totalorder %s11, 0
    %p54 = por %p52, %p53
    %p55 = scmp.ne.s32.totalorder %s44, %s47
    %p56 = scmp.eq.s32.totalorder %s16, 1
    %p57 = por %p55, %p56
    %p58 = scmp.ne.s32.totalorder %s47, %s48
    %p59 = scmp.eq.s32.totalorder %s16, 0
    %p60 = por %p58, %p59
    %p61 = scmp.ne.s32.totalorder %s47, %s48
    %p62 = scmp.eq.s32.totalorder %s17, 1
    %p63 = por %p61, %p62
    %p65 = scmp.ne.s32.totalorder %s48, %s64
    %p66 = scmp.eq.s32.totalorder %s17, 0
    %p67 = por %p65, %p66
    %s68 = ssub.s32 %s20, %s29
    %p69 = scmp.eq.s32.totalorder %s68, 0
    %s71 = sadd.s32 %s70, 1
    %s72 = scalar_select %p69, %s70, %s71
    %p75 = pneg %p69
    %p76 = scmp.eq.s32.totalorder %s11, 1
    %p77 = por %p75, %p76
    %p78 = scmp.ne.s32.totalorder %s70, %s73
    %p79 = scmp.eq.s32.totalorder %s11, 0
    %p80 = por %p78, %p79
    %p81 = scmp.ne.s32.totalorder %s70, %s73
    %p82 = scmp.eq.s32.totalorder %s16, 1
    %p83 = por %p81, %p82
    %p84 = scmp.ne.s32.totalorder %s73, %s74
    %p85 = scmp.eq.s32.totalorder %s16, 0
    %p86 = por %p84, %p85
    %p87 = scmp.ne.s32.totalorder %s73, %s74
    %p88 = scmp.eq.s32.totalorder %s17, 1
    %p89 = por %p87, %p88
    %p91 = scmp.ne.s32.totalorder %s74, %s90
    %p92 = scmp.eq.s32.totalorder %s17, 0
    %p93 = por %p91, %p92
    %s95 = sadd.s32 %s94, 1
    %p98 = scmp.eq.s32.totalorder %s11, 1
    %p99 = scmp.ne.s32.totalorder %s94, %s96
    %p100 = scmp.eq.s32.totalorder %s11, 0
    %p101 = por %p99, %p100
    %p102 = scmp.ne.s32.totalorder %s94, %s96
    %p103 = scmp.eq.s32.totalorder %s16, 1
    %p104 = por %p102, %p103
    %p105 = scmp.ne.s32.totalorder %s96, %s97
    %p106 = scmp.eq.s32.totalorder %s16, 0
    %p107 = por %p105, %p106
    %p108 = scmp.ne.s32.totalorder %s96, %s97
    %p109 = scmp.eq.s32.totalorder %s17, 1
    %p110 = por %p108, %p109
    %p112 = scmp.ne.s32.totalorder %s97, %s111
    %p113 = scmp.eq.s32.totalorder %s17, 0
    %p114 = por %p112, %p113
    %s115 = ssub.s32 %s18, %s37
    %s116 = ssub.s32 %s19, %s33
    %s117 = sor.u32 %s115, %s116
    %p118 = scmp.eq.s32.totalorder %s117, 0
    %s120 = sadd.s32 %s119, 1
    %s121 = scalar_select %p118, %s119, %s120
    %p124 = pneg %p118
    %p125 = scmp.eq.s32.totalorder %s11, 1
    %p126 = por %p124, %p125
    %p127 = scmp.ne.s32.totalorder %s119, %s122
    %p128 = scmp.eq.s32.totalorder %s11, 0
    %p129 = por %p127, %p128
    %p130 = scmp.ne.s32.totalorder %s119, %s122
    %p131 = scmp.eq.s32.totalorder %s16, 1
    %p132 = por %p130, %p131
    %p133 = scmp.ne.s32.totalorder %s122, %s123
    %p134 = scmp.eq.s32.totalorder %s16, 0
    %p135 = por %p133, %p134
    %p136 = scmp.ne.s32.totalorder %s122, %s123
    %p137 = scmp.eq.s32.totalorder %s17, 1
    %p138 = por %p136, %p137
    %p140 = scmp.ne.s32.totalorder %s123, %s139
    %p141 = scmp.eq.s32.totalorder %s17, 0
    %p142 = por %p140, %p141
    %s143 = ssub.s32 %s18, %s37
    %p144 = scmp.eq.s32.totalorder %s143, 0
    %s146 = sadd.s32 %s145, 1
    %s147 = scalar_select %p144, %s145, %s146
    %p150 = pneg %p144
    %p151 = scmp.eq.s32.totalorder %s11, 1
    %p152 = por %p150, %p151
    %p153 = scmp.ne.s32.totalorder %s145, %s148
    %p154 = scmp.eq.s32.totalorder %s11, 0
    %p155 = por %p153, %p154
    %p156 = scmp.ne.s32.totalorder %s145, %s148
    %p157 = scmp.eq.s32.totalorder %s16, 1
    %p158 = por %p156, %p157
    %p159 = scmp.ne.s32.totalorder %s148, %s149
    %p160 = scmp.eq.s32.totalorder %s16, 0
    %p161 = por %p159, %p160
    %p162 = scmp.ne.s32.totalorder %s148, %s149
    %p163 = scmp.eq.s32.totalorder %s17, 1
    %p164 = por %p162, %p163
    %p166 = scmp.ne.s32.totalorder %s149, %s165
    %p167 = scmp.eq.s32.totalorder %s17, 0
    %p168 = por %p166, %p167
    %s169 = ssub.s32 %s18, %s37
    %s170 = ssub.s32 %s19, %s33
    %s171 = sor.u32 %s169, %s170
    %p172 = scmp.eq.s32.totalorder %s171, 0
    %s174 = sadd.s32 %s173, 1
    %s175 = scalar_select %p172, %s173, %s174
    %p178 = pneg %p172
    %p179 = scmp.eq.s32.totalorder %s11, 1
    %p180 = por %p178, %p179
    %p181 = scmp.ne.s32.totalorder %s173, %s176
    %p182 = scmp.eq.s32.totalorder %s11, 0
    %p183 = por %p181, %p182
    %p184 = scmp.ne.s32.totalorder %s173, %s176
    %p185 = scmp.eq.s32.totalorder %s16, 1
    %p186 = por %p184, %p185
    %p187 = scmp.ne.s32.totalorder %s176, %s177
    %p188 = scmp.eq.s32.totalorder %s16, 0
    %p189 = por %p187, %p188
    %p190 = scmp.ne.s32.totalorder %s176, %s177
    %p191 = scmp.eq.s32.totalorder %s17, 1
    %p192 = por %p190, %p191
    %p194 = scmp.ne.s32.totalorder %s177, %s193
    %p195 = scmp.eq.s32.totalorder %s17, 0
    %p196 = por %p194, %p195
    %p197 = scmp.le.s32.totalorder 1, %s11
    %p198 = scmp.lt.s32.totalorder %s11, 3
    %p199 = pnand %p197, %p198
    %p200 = pneg %p199
    // Predicated region
    $region9: #{_lambda_.16} parent=5 // pred_check
      _
    $region10: #{_lambda_.16} parent=5 // pred_check_branch
      %202 = sbr.rel (%p199) target = $region12
    $region11: #{_lambda_.16} parent=5 // pred_region
      %s203 = ssub.s32 %s11, 1
      // Predicated region
      $region13: #{_lambda_.16} parent=11 // pred_check
        %p204 = pneg %p86
      $region14: #{_lambda_.16} parent=11 // pred_check_branch
        %206 = sbr.rel (%p204) target = $region16
      $region15: #{_lambda_.16} parent=11 // pred_region
        %s207 = smul.u32 16, %s23
        %p208 = scmp.lt.s32.totalorder %s207, 15
        %s209 = scalar_select %p208, %s207, 15
        %s210 = smul.addr %s209, 4
        %s211 = scalar_lea.vmem %s1, %s210
        %s212 = smul.u32 16, %s23
      $region16: #{_lambda_.16} parent=11 // pred_fallthru
        _
      // Predicated region
      $region17: #{_lambda_.16} parent=11 // pred_check
        %p213 = pneg %p107
      $region18: #{_lambda_.16} parent=11 // pred_check_branch
        %215 = sbr.rel (%p213) target = $region20
      $region19: #{_lambda_.16} parent=11 // pred_region
        _
      $region20: #{_lambda_.16} parent=11 // pred_fallthru
        _
    $region12: #{_lambda_.16} parent=5 // pred_fallthru
      _
    %p216 = scmp.lt.s32.totalorder %s11, 2
    // Predicated region
    $region21: #{_lambda_.16} parent=5 // pred_check
      %p217 = pneg %p216
    $region22: #{_lambda_.16} parent=5 // pred_check_branch
      %219 = sbr.rel (%p217) target = $region24
    $region23: #{_lambda_.16} parent=5 // pred_region
      // Predicated region
      $region25: #{_lambda_.16} parent=23 // pred_check
        %p220 = pneg %p54
      $region26: #{_lambda_.16} parent=23 // pred_check_branch
        %222 = sbr.rel (%p220) target = $region28
      $region27: #{_lambda_.16} parent=23 // pred_region
        %s223 = smul.u32 2, %s19
        %p224 = scmp.lt.s32.totalorder %s18, 1
        %s225 = scalar_select %p224, %s18, 1
        %p226 = scmp.lt.s32.totalorder %s223, 1
        %s227 = scalar_select %p226, %s223, 1
        %p228 = scmp.lt.s32.totalorder %s20, 0
        %s229 = scalar_select %p228, %s20, 0
        %s230 = sadd.s32 %s229, %s227
        %s231 = smul.addr %s225, 2
        %s232 = sadd.s32 %s230, %s231
        %s233 = smul.addr %s232, 4
        %s234 = scalar_lea.vmem %s0, %s233
        %s235 = smul.u32 2, %s19
      $region28: #{_lambda_.16} parent=23 // pred_fallthru
        _
      // Predicated region
      $region29: #{_lambda_.16} parent=23 // pred_check
        %p236 = pneg %p129
      $region30: #{_lambda_.16} parent=23 // pred_check_branch
        %238 = sbr.rel (%p236) target = $region32
      $region31: #{_lambda_.16} parent=23 // pred_region
        %s239 = smul.u32 2, %s19
        %p240 = scmp.lt.s32.totalorder %s18, 1
        %s241 = scalar_select %p240, %s18, 1
        %p242 = scmp.lt.s32.totalorder %s239, 1
        %s243 = scalar_select %p242, %s239, 1
        %s244 = smul.addr %s241, 2
        %s245 = sadd.s32 %s243, %s244
        %s246 = smul.addr %s245, 8
        %s247 = scalar_lea.vmem %s3, %s246
        %s248 = smul.u32 2, %s19
      $region32: #{_lambda_.16} parent=23 // pred_fallthru
        _
      // Predicated region
      $region33: #{_lambda_.16} parent=23 // pred_check
        %p249 = pneg %p155
      $region34: #{_lambda_.16} parent=23 // pred_check_branch
        %251 = sbr.rel (%p249) target = $region36
      $region35: #{_lambda_.16} parent=23 // pred_region
        %p252 = scmp.lt.s32.totalorder %s18, 1
        %s253 = scalar_select %p252, %s18, 1
        %s254 = scalar_lea.vmem %s4, %s253
      $region36: #{_lambda_.16} parent=23 // pred_fallthru
        _
    $region24: #{_lambda_.16} parent=5 // pred_fallthru
      _
    %p255 = scmp.le.s32.totalorder 1, %s11
    %p256 = scmp.lt.s32.totalorder %s11, 3
    %p257 = pnand %p255, %p256
    %p258 = pneg %p257
    // Predicated region
    $region37: #{_lambda_.16} parent=5 // pred_check
      _
    $region38: #{_lambda_.16} parent=5 // pred_check_branch
      %260 = sbr.rel (%p257) target = $region40
    $region39: #{_lambda_.16} parent=5 // pred_region
      %s261 = ssub.s32 %s11, 1
      %s262 = smul.u32 2, %s22
      %p263 = scmp.lt.s32.totalorder %s21, 1
      %s264 = scalar_select %p263, %s21, 1
      %p265 = scmp.lt.s32.totalorder %s262, 1
      %s266 = scalar_select %p265, %s262, 1
      %p267 = scmp.lt.s32.totalorder %s23, 0
      %s268 = scalar_select %p267, %s23, 0
      %s269 = sadd.s32 %s268, %s266
      %s270 = smul.addr %s264, 2
      %s271 = sadd.s32 %s269, %s270
      %s272 = smul.addr %s271, 4
      %s273 = scalar_lea.vmem %s0, %s272
      %p274 = pneg %p60
      %p275 = pneg %p57
      %s276 = smul.u32 16, %s23
      %p277 = scmp.lt.s32.totalorder %s276, 15
      %s278 = scalar_select %p277, %s276, 15
      %s279 = smul.addr %s278, 4
      %s280 = scalar_lea.vmem %s1, %s279
      %p281 = pneg %p86
      %p282 = pneg %p83
      %p283 = pneg %p107
      %p284 = pneg %p104
      %s285 = smul.u32 2, %s22
      %p286 = scmp.lt.s32.totalorder %s21, 1
      %s287 = scalar_select %p286, %s21, 1
      %p288 = scmp.lt.s32.totalorder %s285, 1
      %s289 = scalar_select %p288, %s285, 1
      %s290 = smul.addr %s287, 2
      %s291 = sadd.s32 %s289, %s290
      %s292 = smul.addr %s291, 8
      %s293 = scalar_lea.vmem %s3, %s292
      %p294 = pneg %p135
      %p295 = pneg %p132
      %p296 = scmp.lt.s32.totalorder %s21, 1
      %s297 = scalar_select %p296, %s21, 1
      %s298 = scalar_lea.vmem %s4, %s297
      %p299 = pneg %p161
      %p300 = pneg %p158
      %p301 = pneg %p189
      %p302 = pneg %p186
      %s303 = smul.u32 2, %s22
      %p304 = scmp.lt.s32.totalorder %s21, 1
      %s305 = scalar_select %p304, %s21, 1
      %p306 = scmp.lt.s32.totalorder %s303, 1
      %s307 = scalar_select %p306, %s303, 1
      %s308 = smul.addr %s305, 2
      %s309 = sadd.s32 %s307, %s308
      %s310 = smul.addr %s309, 8
      %s311 = scalar_lea.vmem %s5, %s310
      %s312 = smul.u32 2, %s22
      %p313 = scmp.lt.s32.totalorder %s21, 1
      %s314 = scalar_select %p313, %s21, 1
      %p315 = scmp.lt.s32.totalorder %s312, 1
      %s316 = scalar_select %p315, %s312, 1
      %p317 = scmp.lt.s32.totalorder %s23, 0
      %s318 = scalar_select %p317, %s23, 0
      %s319 = sadd.s32 %s318, %s316
      %s320 = smul.addr %s314, 2
      %s321 = sadd.s32 %s319, %s320
      %s322 = smul.addr %s321, 4
      %s323 = scalar_lea.vmem %s0, %s322
      %s324 = smul.u32 2, %s22
      %s325 = smul.u32 16, %s23
      %p326 = scmp.lt.s32.totalorder %s325, 15
      %s327 = scalar_select %p326, %s325, 15
      %s328 = smul.addr %s327, 4
      %s329 = scalar_lea.vmem %s1, %s328
      %s330 = smul.u32 16, %s23
      %s331 = smul.u32 2, %s22
      %p332 = scmp.lt.s32.totalorder %s21, 1
      %s333 = scalar_select %p332, %s21, 1
      %p334 = scmp.lt.s32.totalorder %s331, 1
      %s335 = scalar_select %p334, %s331, 1
      %s336 = smul.addr %s333, 2
      %s337 = sadd.s32 %s335, %s336
      %s338 = smul.addr %s337, 8
      %s339 = scalar_lea.vmem %s3, %s338
      %s340 = smul.u32 2, %s22
      %p341 = scmp.lt.s32.totalorder %s21, 1
      %s342 = scalar_select %p341, %s21, 1
      %s343 = scalar_lea.vmem %s4, %s342
      %s344 = smul.u32 2, %s22
      %p345 = scmp.lt.s32.totalorder %s21, 1
      %s346 = scalar_select %p345, %s21, 1
      %p347 = scmp.lt.s32.totalorder %s344, 1
      %s348 = scalar_select %p347, %s344, 1
      %s349 = smul.addr %s346, 2
      %s350 = sadd.s32 %s348, %s349
      %s351 = smul.addr %s350, 8
      %s352 = scalar_lea.vmem %s5, %s351
      %s353 = smul.u32 2, %s22
      %p354 = scmp.eq.s32.totalorder %s23, 0
      // Predicated region
      $region41: #{_lambda_.16} parent=39 // pred_check
        %p355 = pneg %p354
      $region42: #{_lambda_.16} parent=39 // pred_check_branch
        %357 = sbr.rel (%p355) target = $region44
      $region43: #{_lambda_.16} parent=39 // pred_region
        %vm358 = vcmask 261120
        %359 = vst.msk [vmem:[#allocation2] sm:$0xff] %vm358, 0.0
        %360 = vst.msk [vmem:[#allocation2 + $0x8] sm:$0xff] %vm358, 0.0
      $region44: #{_lambda_.16} parent=39 // pred_fallthru
        _
      %v361 = vld [vmem:[#allocation2] sm:$0xff]
      %v362 = vld [vmem:[#allocation2 + $0x8] sm:$0xff]
      %v363 = vld [vmem:[%s323] sm:$0xf]
      %v364 = vld [vmem:[%s323 + $0x4] sm:$0xf]
      %v365 = vld [vmem:[%s329] sm:$0xf]
      %v366 = vld [vmem:[%s329 + $0x4] sm:$0xf]
      %v367 = vld [vmem:[%s329 + $0x8] sm:$0xf]
      %v368 = vld [vmem:[%s329 + $0xc] sm:$0xf]
      %v369 = vld [vmem:[%s329 + $0x10] sm:$0xf]
      %v370 = vld [vmem:[%s329 + $0x14] sm:$0xf]
      %v371 = vld [vmem:[%s329 + $0x18] sm:$0xf]
      %v372 = vld [vmem:[%s329 + $0x1c] sm:$0xf]
      %v373 = vld [vmem:[%s329 + $0x20] sm:$0xf]
      %v374 = vld [vmem:[%s329 + $0x24] sm:$0xf]
      %v375 = vld [vmem:[%s329 + $0x28] sm:$0xf]
      %v376 = vld [vmem:[%s329 + $0x2c] sm:$0xf]
      %v377 = vld [vmem:[%s329 + $0x30] sm:$0xf]
      %v378 = vld [vmem:[%s329 + $0x34] sm:$0xf]
      %v379 = vld [vmem:[%s329 + $0x38] sm:$0xf]
      %v380 = vld [vmem:[%s329 + $0x3c] sm:$0xf]
      %v383 = vunpack.c.l.b16 %v363
      %v384 = vunpack.c.l.b16 %v364
      %v385 = vpack.c.b16 %v384, %v383
      %v403 = vunpack.c.l.b16 %v365
      %v404 = vunpack.c.l.b16 %v366
      %v405 = vunpack.c.l.b16 %v367
      %v406 = vunpack.c.l.b16 %v368
      %v407 = vunpack.c.l.b16 %v369
      %v408 = vunpack.c.l.b16 %v370
      %v409 = vunpack.c.l.b16 %v371
      %v410 = vunpack.c.l.b16 %v372
      %v411 = vunpack.c.l.b16 %v373
      %v412 = vunpack.c.l.b16 %v374
      %v413 = vunpack.c.l.b16 %v375
      %v414 = vunpack.c.l.b16 %v376
      %v415 = vunpack.c.l.b16 %v377
      %v416 = vunpack.c.l.b16 %v378
      %v417 = vunpack.c.l.b16 %v379
      %v418 = vunpack.c.l.b16 %v380
      %v419 = vpack.c.b16 %v404, %v403
      %v420 = vpack.c.b16 %v406, %v405
      %v421 = vpack.c.b16 %v408, %v407
      %v422 = vpack.c.b16 %v410, %v409
      %v423 = vpack.c.b16 %v412, %v411
      %v424 = vpack.c.b16 %v414, %v413
      %v425 = vpack.c.b16 %v416, %v415
      %v426 = vpack.c.b16 %v418, %v417
      %435 = vmatpush.bf16.msra.mxu0 %v426
      %436 = vmatpush.bf16.msra.mxu0 %v425
      %437 = vmatpush.bf16.msra.mxu0 %v424
      %438 = vmatpush.bf16.msra.mxu0 %v423
      %439 = vmatpush.bf16.msra.mxu0 %v422
      %440 = vmatpush.bf16.msra.mxu0 %v421
      %441 = vmatpush.bf16.msra.mxu0 %v420
      %442 = vmatpush.bf16.msra.mxu0 %v419
      %443 = vmatmul.bf16.gmra.mxu0 %v385
      %v444 = vpop.f32.mrf.mxu0
      %v445 = vadd.f32 0.0, %v444
      %v446 = vpop.f32.mrf.mxu0
      %v447 = vadd.f32 0.0, %v446
      %448 = vdwg.mxu0
      %v449 = vadd.f32 %v361, %v445
      %v450 = vadd.f32 %v362, %v447
      %vm451 = vcmask 261120
      %452 = vst.msk [vmem:[#allocation2] sm:$0xff] %vm451, %v449
      %453 = vst.msk [vmem:[#allocation2 + $0x8] sm:$0xff] %vm451, %v450
      // Predicated region
      $region45: #{_lambda_.16} parent=39 // pred_check
        %p454 = pneg %p354
      $region46: #{_lambda_.16} parent=39 // pred_check_branch
        %456 = sbr.rel (%p454) target = $region48
      $region47: #{_lambda_.16} parent=39 // pred_region
        %v457 = vld [vmem:[#allocation2] sm:$0xff]
        %v458 = vld [vmem:[#allocation2 + $0x8] sm:$0xff]
        %v459 = vld [vmem:[%s2] sm:$0x1]
        %v461 = vperm.slane %v459, 0
        %v463 = vadd.f32 %v457, %v461
        %v464 = vadd.f32 %v458, %v461
        %v465 = vld [vmem:[%s339] sm:$0xff]
        %v466 = vld [vmem:[%s339 + $0x8] sm:$0xff]
        %v467 = vld [vmem:[%s343] sm:$0x1]
        %v469 = vperm.slane %v467, 0
        %v471 = vmul.f32 %v463, %v469
        %v472 = vmul.f32 %v464, %v469
        %v473 = vadd.f32 %v465, %v471
        %v474 = vadd.f32 %v466, %v472
        %475 = vst.msk [vmem:[%s352] sm:$0xff] %vm451, %v473
        %476 = vst.msk [vmem:[%s352 + $0x8] sm:$0xff] %vm451, %v474
      $region48: #{_lambda_.16} parent=39 // pred_fallthru
        _
      %s477 = smul.u32 2, %s22
      %p478 = scmp.lt.s32.totalorder %s21, 1
      %s479 = scalar_select %p478, %s21, 1
      %p480 = scmp.lt.s32.totalorder %s477, 1
      %s481 = scalar_select %p480, %s477, 1
      %s482 = smul.addr %s479, 2
      %s483 = sadd.s32 %s481, %s482
      %s484 = smul.addr %s483, 8
      %s485 = scalar_lea.vmem %s5, %s484
      // Predicated region
      $region49: #{_lambda_.16} parent=39 // pred_check
        %p486 = pneg %p186
      $region50: #{_lambda_.16} parent=39 // pred_check_branch
        %488 = sbr.rel (%p486) target = $region52
      $region51: #{_lambda_.16} parent=39 // pred_region
        %s489 = smul.u32 2, %s22
      $region52: #{_lambda_.16} parent=39 // pred_fallthru
        _
    $region40: #{_lambda_.16} parent=5 // pred_fallthru
      _
    %p490 = scmp.le.s32.totalorder 2, %s11
    // Predicated region
    $region53: #{_lambda_.16} parent=5 // pred_check
      %p491 = pneg %p490
    $region54: #{_lambda_.16} parent=5 // pred_check_branch
      %493 = sbr.rel (%p491) target = $region56
    $region55: #{_lambda_.16} parent=5 // pred_region
      %s494 = ssub.s32 %s11, 2
      // Predicated region
      $region57: #{_lambda_.16} parent=55 // pred_check
        %p495 = pneg %p192
      $region58: #{_lambda_.16} parent=55 // pred_check_branch
        %497 = sbr.rel (%p495) target = $region60
      $region59: #{_lambda_.16} parent=55 // pred_region
        %s498 = smul.u32 2, %s25
        %p499 = scmp.lt.s32.totalorder %s24, 1
        %s500 = scalar_select %p499, %s24, 1
        %p501 = scmp.lt.s32.totalorder %s498, 1
        %s502 = scalar_select %p501, %s498, 1
        %s503 = smul.addr %s500, 2
        %s504 = sadd.s32 %s502, %s503
        %s505 = smul.addr %s504, 8
        %s506 = scalar_lea.vmem %s5, %s505
      $region60: #{_lambda_.16} parent=55 // pred_fallthru
        _
    $region56: #{_lambda_.16} parent=5 // pred_fallthru
      _
  $region6: #{_lambda_.16} parent=0 // loop_footer
    %s15 = sadd.s32 1, %s11
  $region7: #{_lambda_.16} parent=0 // loop_footer_branch
    %10 = sbr.rel target = $region3
  $region8: #{_lambda_.16} parent=0 // loop_exit
    _

// kernel: _lambda_.21
$region0: #{_lambda_.21}
  #allocation0 [shape = 'u32[]', space=smem, size = 0x4, offset = 0x4, fixed_abs, tag = 'smem constant byte address 0x4 - core index']
  #allocation1 [shape = 'u32[72,128]{1,0:T(1,128)}', space=vmem, size = 0x9000, scoped, tag = 'internal scratch']
  #allocation2 [shape = 'bf16[16,32]{1,0:T(8,128)(2,1)}', space=vmem, size = 0x1000, scoped, tag = 'scratch operand']
  %s0 = inlined_call_operand.vmem [shape: f32[2,16,32], index: 0, kind: input, shape index: {}]
  %s1 = inlined_call_operand.vmem [shape: f32[1,1,32], index: 1, kind: input, shape index: {}]
  %s2 = inlined_call_operand.vmem [shape: f32[1,1,32], index: 2, kind: input, shape index: {}]
  %s3 = inlined_call_operand.vmem [shape: f32[2,1,32], index: 3, kind: input, shape index: {}, may-alias: {3,4}]
  %s4 = inlined_call_operand.vmem [shape: f32[2,1,32], index: 4, kind: input, shape index: {}, may-alias: {3,4}]
  %s5 = inlined_call_operand.vmem [shape: bf16[32,16], index: 5, kind: input, shape index: {}]
  %s6 = inlined_call_operand.vmem [shape: f32[1,16], index: 6, kind: input, shape index: {}]
  %s7 = inlined_call_operand.vmem [shape: f32[2,16,16], index: 7, kind: output, shape index: {}]
  %s8 = sld [smem:[#allocation0]]
  $region65: #{_lambda_.21} parent=0
    _
  %s10 = ssub.s32 1, %s8
  %s11 = scalar_select 0, %s10, %s8
  loop: start=0, step=1, limit=4
  $region2: #{_lambda_.21} parent=0 // loop_pre_header
    _
  $region3: #{_lambda_.21} parent=0 // loop_header
    %s13 = sphi 0, %s17
    %p14 = scmp.ge.s32.totalorder %s13, 4
    %s20 = sphi 0, %s39
    %s21 = sphi 0, %s35
    %s22 = sphi 0, %s31
    %s23 = sphi 0, %s20
    %s24 = sphi 0, %s21
    %s25 = sphi 0, %s22
    %s26 = sphi 0, %s23
    %s27 = sphi 0, %s24
    %s28 = sphi 0, %s25
    %s44 = sphi 0, %s46
    %s47 = sphi 0, %s44
    %s48 = sphi 0, %s47
    %s64 = sphi 0, %s48
    %s68 = sphi 0, %s68
    %s70 = sphi 0, %s68
    %s71 = sphi 0, %s70
    %s85 = sphi 0, %s71
    %s89 = sphi 0, %s89
    %s91 = sphi 0, %s89
    %s92 = sphi 0, %s91
    %s106 = sphi 0, %s92
    %s112 = sphi 0, %s114
    %s115 = sphi 0, %s112
    %s116 = sphi 0, %s115
    %s132 = sphi 0, %s116
    %s138 = sphi 0, %s140
    %s141 = sphi 0, %s138
    %s142 = sphi 0, %s141
    %s158 = sphi 0, %s142
    %s164 = sphi 0, %s166
    %s167 = sphi 0, %s164
    %s168 = sphi 0, %s167
    %s184 = sphi 0, %s168
    %s190 = sphi 0, %s192
    %s193 = sphi 0, %s190
    %s194 = sphi 0, %s193
    %s210 = sphi 0, %s194
    %s220 = sphi 0, %s222
    %s223 = sphi 0, %s220
    %s224 = sphi 0, %s223
    %s240 = sphi 0, %s224
  $region4: #{_lambda_.21} parent=0 // loop_header_branch
    %16 = sbr.rel (%p14) target = $region8
  $region5: #{_lambda_.21} parent=0 // loop_body
    %s18 = ssub.s32 %s13, 1
    %s19 = ssub.s32 %s13, 2
    %s29 = sadd.s32 1, %s22
    %p30 = scmp.ge.s32.totalorder %s29, 1
    %s31 = scalar_select %p30, 0, %s29
    %s32 = sadd.s32 1, %s21
    %s33 = scalar_select %p30, %s32, %s21
    %p34 = scmp.ge.s32.totalorder %s33, 1
    %s35 = scalar_select %p34, 0, %s33
    %s36 = sadd.s32 1, %s20
    %s37 = scalar_select %p34, %s36, %s20
    %p38 = scmp.ge.s32.totalorder %s37, 2
    %s39 = scalar_select %p38, 0, %s37
    %s40 = ssub.s32 %s20, %s39
    %s41 = ssub.s32 %s21, %s35
    %s42 = sor.u32 %s40, %s41
    %p43 = scmp.eq.s32.totalorder %s42, 0
    %s45 = sadd.s32 %s44, 1
    %s46 = scalar_select %p43, %s44, %s45
    %p49 = pneg %p43
    %p50 = scmp.eq.s32.totalorder %s13, 1
    %p51 = por %p49, %p50
    %p52 = scmp.ne.s32.totalorder %s44, %s47
    %p53 = scmp.eq.s32.totalorder %s13, 0
    %p54 = por %p52, %p53
    %p55 = scmp.ne.s32.totalorder %s44, %s47
    %p56 = scmp.eq.s32.totalorder %s18, 1
    %p57 = por %p55, %p56
    %p58 = scmp.ne.s32.totalorder %s47, %s48
    %p59 = scmp.eq.s32.totalorder %s18, 0
    %p60 = por %p58, %p59
    %p61 = scmp.ne.s32.totalorder %s47, %s48
    %p62 = scmp.eq.s32.totalorder %s19, 1
    %p63 = por %p61, %p62
    %p65 = scmp.ne.s32.totalorder %s48, %s64
    %p66 = scmp.eq.s32.totalorder %s19, 0
    %p67 = por %p65, %p66
    %s69 = sadd.s32 %s68, 1
    %p72 = scmp.eq.s32.totalorder %s13, 1
    %p73 = scmp.ne.s32.totalorder %s68, %s70
    %p74 = scmp.eq.s32.totalorder %s13, 0
    %p75 = por %p73, %p74
    %p76 = scmp.ne.s32.totalorder %s68, %s70
    %p77 = scmp.eq.s32.totalorder %s18, 1
    %p78 = por %p76, %p77
    %p79 = scmp.ne.s32.totalorder %s70, %s71
    %p80 = scmp.eq.s32.totalorder %s18, 0
    %p81 = por %p79, %p80
    %p82 = scmp.ne.s32.totalorder %s70, %s71
    %p83 = scmp.eq.s32.totalorder %s19, 1
    %p84 = por %p82, %p83
    %p86 = scmp.ne.s32.totalorder %s71, %s85
    %p87 = scmp.eq.s32.totalorder %s19, 0
    %p88 = por %p86, %p87
    %s90 = sadd.s32 %s89, 1
    %p93 = scmp.eq.s32.totalorder %s13, 1
    %p94 = scmp.ne.s32.totalorder %s89, %s91
    %p95 = scmp.eq.s32.totalorder %s13, 0
    %p96 = por %p94, %p95
    %p97 = scmp.ne.s32.totalorder %s89, %s91
    %p98 = scmp.eq.s32.totalorder %s18, 1
    %p99 = por %p97, %p98
    %p100 = scmp.ne.s32.totalorder %s91, %s92
    %p101 = scmp.eq.s32.totalorder %s18, 0
    %p102 = por %p100, %p101
    %p103 = scmp.ne.s32.totalorder %s91, %s92
    %p104 = scmp.eq.s32.totalorder %s19, 1
    %p105 = por %p103, %p104
    %p107 = scmp.ne.s32.totalorder %s92, %s106
    %p108 = scmp.eq.s32.totalorder %s19, 0
    %p109 = por %p107, %p108
    %s110 = ssub.s32 %s20, %s39
    %p111 = scmp.eq.s32.totalorder %s110, 0
    %s113 = sadd.s32 %s112, 1
    %s114 = scalar_select %p111, %s112, %s113
    %p117 = pneg %p111
    %p118 = scmp.eq.s32.totalorder %s13, 1
    %p119 = por %p117, %p118
    %p120 = scmp.ne.s32.totalorder %s112, %s115
    %p121 = scmp.eq.s32.totalorder %s13, 0
    %p122 = por %p120, %p121
    %p123 = scmp.ne.s32.totalorder %s112, %s115
    %p124 = scmp.eq.s32.totalorder %s18, 1
    %p125 = por %p123, %p124
    %p126 = scmp.ne.s32.totalorder %s115, %s116
    %p127 = scmp.eq.s32.totalorder %s18, 0
    %p128 = por %p126, %p127
    %p129 = scmp.ne.s32.totalorder %s115, %s116
    %p130 = scmp.eq.s32.totalorder %s19, 1
    %p131 = por %p129, %p130
    %p133 = scmp.ne.s32.totalorder %s116, %s132
    %p134 = scmp.eq.s32.totalorder %s19, 0
    %p135 = por %p133, %p134
    %s136 = ssub.s32 %s20, %s39
    %p137 = scmp.eq.s32.totalorder %s136, 0
    %s139 = sadd.s32 %s138, 1
    %s140 = scalar_select %p137, %s138, %s139
    %p143 = pneg %p137
    %p144 = scmp.eq.s32.totalorder %s13, 1
    %p145 = por %p143, %p144
    %p146 = scmp.ne.s32.totalorder %s138, %s141
    %p147 = scmp.eq.s32.totalorder %s13, 0
    %p148 = por %p146, %p147
    %p149 = scmp.ne.s32.totalorder %s138, %s141
    %p150 = scmp.eq.s32.totalorder %s18, 1
    %p151 = por %p149, %p150
    %p152 = scmp.ne.s32.totalorder %s141, %s142
    %p153 = scmp.eq.s32.totalorder %s18, 0
    %p154 = por %p152, %p153
    %p155 = scmp.ne.s32.totalorder %s141, %s142
    %p156 = scmp.eq.s32.totalorder %s19, 1
    %p157 = por %p155, %p156
    %p159 = scmp.ne.s32.totalorder %s142, %s158
    %p160 = scmp.eq.s32.totalorder %s19, 0
    %p161 = por %p159, %p160
    %s162 = ssub.s32 %s22, %s31
    %p163 = scmp.eq.s32.totalorder %s162, 0
    %s165 = sadd.s32 %s164, 1
    %s166 = scalar_select %p163, %s164, %s165
    %p169 = pneg %p163
    %p170 = scmp.eq.s32.totalorder %s13, 1
    %p171 = por %p169, %p170
    %p172 = scmp.ne.s32.totalorder %s164, %s167
    %p173 = scmp.eq.s32.totalorder %s13, 0
    %p174 = por %p172, %p173
    %p175 = scmp.ne.s32.totalorder %s164, %s167
    %p176 = scmp.eq.s32.totalorder %s18, 1
    %p177 = por %p175, %p176
    %p178 = scmp.ne.s32.totalorder %s167, %s168
    %p179 = scmp.eq.s32.totalorder %s18, 0
    %p180 = por %p178, %p179
    %p181 = scmp.ne.s32.totalorder %s167, %s168
    %p182 = scmp.eq.s32.totalorder %s19, 1
    %p183 = por %p181, %p182
    %p185 = scmp.ne.s32.totalorder %s168, %s184
    %p186 = scmp.eq.s32.totalorder %s19, 0
    %p187 = por %p185, %p186
    %s188 = ssub.s32 %s22, %s31
    %p189 = scmp.eq.s32.totalorder %s188, 0
    %s191 = sadd.s32 %s190, 1
    %s192 = scalar_select %p189, %s190, %s191
    %p195 = pneg %p189
    %p196 = scmp.eq.s32.totalorder %s13, 1
    %p197 = por %p195, %p196
    %p198 = scmp.ne.s32.totalorder %s190, %s193
    %p199 = scmp.eq.s32.totalorder %s13, 0
    %p200 = por %p198, %p199
    %p201 = scmp.ne.s32.totalorder %s190, %s193
    %p202 = scmp.eq.s32.totalorder %s18, 1
    %p203 = por %p201, %p202
    %p204 = scmp.ne.s32.totalorder %s193, %s194
    %p205 = scmp.eq.s32.totalorder %s18, 0
    %p206 = por %p204, %p205
    %p207 = scmp.ne.s32.totalorder %s193, %s194
    %p208 = scmp.eq.s32.totalorder %s19, 1
    %p209 = por %p207, %p208
    %p211 = scmp.ne.s32.totalorder %s194, %s210
    %p212 = scmp.eq.s32.totalorder %s19, 0
    %p213 = por %p211, %p212
    %s214 = ssub.s32 %s20, %s39
    %s215 = ssub.s32 %s21, %s35
    %s216 = sor.u32 %s214, %s215
    %s217 = ssub.s32 %s22, %s31
    %s218 = sor.u32 %s216, %s217
    %p219 = scmp.eq.s32.totalorder %s218, 0
    %s221 = sadd.s32 %s220, 1
    %s222 = scalar_select %p219, %s220, %s221
    %p225 = pneg %p219
    %p226 = scmp.eq.s32.totalorder %s13, 1
    %p227 = por %p225, %p226
    %p228 = scmp.ne.s32.totalorder %s220, %s223
    %p229 = scmp.eq.s32.totalorder %s13, 0
    %p230 = por %p228, %p229
    %p231 = scmp.ne.s32.totalorder %s220, %s223
    %p232 = scmp.eq.s32.totalorder %s18, 1
    %p233 = por %p231, %p232
    %p234 = scmp.ne.s32.totalorder %s223, %s224
    %p235 = scmp.eq.s32.totalorder %s18, 0
    %p236 = por %p234, %p235
    %p237 = scmp.ne.s32.totalorder %s223, %s224
    %p238 = scmp.eq.s32.totalorder %s19, 1
    %p239 = por %p237, %p238
    %p241 = scmp.ne.s32.totalorder %s224, %s240
    %p242 = scmp.eq.s32.totalorder %s19, 0
    %p243 = por %p241, %p242
    %p244 = scmp.le.s32.totalorder 1, %s13
    %p245 = scmp.lt.s32.totalorder %s13, 3
    %p246 = pnand %p244, %p245
    %p247 = pneg %p246
    // Predicated region
    $region9: #{_lambda_.21} parent=5 // pred_check
      _
    $region10: #{_lambda_.21} parent=5 // pred_check_branch
      %249 = sbr.rel (%p246) target = $region12
    $region11: #{_lambda_.21} parent=5 // pred_region
      %s250 = ssub.s32 %s13, 1
      // Predicated region
      $region13: #{_lambda_.21} parent=11 // pred_check
        %p251 = pneg %p81
      $region14: #{_lambda_.21} parent=11 // pred_check_branch
        %253 = sbr.rel (%p251) target = $region16
      $region15: #{_lambda_.21} parent=11 // pred_region
        _
      $region16: #{_lambda_.21} parent=11 // pred_fallthru
        _
      // Predicated region
      $region17: #{_lambda_.21} parent=11 // pred_check
        %p254 = pneg %p102
      $region18: #{_lambda_.21} parent=11 // pred_check_branch
        %256 = sbr.rel (%p254) target = $region20
      $region19: #{_lambda_.21} parent=11 // pred_region
        _
      $region20: #{_lambda_.21} parent=11 // pred_fallthru
        _
      // Predicated region
      $region21: #{_lambda_.21} parent=11 // pred_check
        %p257 = pneg %p180
      $region22: #{_lambda_.21} parent=11 // pred_check_branch
        %259 = sbr.rel (%p257) target = $region24
      $region23: #{_lambda_.21} parent=11 // pred_region
        %p260 = scmp.lt.s32.totalorder %s25, 0
        %s261 = scalar_select %p260, %s25, 0
        %s262 = smul.addr %s261, 4
        %s263 = scalar_lea.vmem %s5, %s262
      $region24: #{_lambda_.21} parent=11 // pred_fallthru
        _
      // Predicated region
      $region25: #{_lambda_.21} parent=11 // pred_check
        %p264 = pneg %p206
      $region26: #{_lambda_.21} parent=11 // pred_check_branch
        %266 = sbr.rel (%p264) target = $region28
      $region27: #{_lambda_.21} parent=11 // pred_region
        %p267 = scmp.lt.s32.totalorder %s25, 0
        %s268 = scalar_select %p267, %s25, 0
        %s269 = scalar_lea.vmem %s6, %s268
      $region28: #{_lambda_.21} parent=11 // pred_fallthru
        _
    $region12: #{_lambda_.21} parent=5 // pred_fallthru
      _
    %p270 = scmp.lt.s32.totalorder %s13, 2
    // Predicated region
    $region29: #{_lambda_.21} parent=5 // pred_check
      %p271 = pneg %p270
    $region30: #{_lambda_.21} parent=5 // pred_check_branch
      %273 = sbr.rel (%p271) target = $region32
    $region31: #{_lambda_.21} parent=5 // pred_region
      // Predicated region
      $region33: #{_lambda_.21} parent=31 // pred_check
        %p274 = pneg %p54
      $region34: #{_lambda_.21} parent=31 // pred_check_branch
        %276 = sbr.rel (%p274) target = $region36
      $region35: #{_lambda_.21} parent=31 // pred_region
        %s277 = smul.u32 2, %s21
        %p278 = scmp.lt.s32.totalorder %s20, 1
        %s279 = scalar_select %p278, %s20, 1
        %p280 = scmp.lt.s32.totalorder %s277, 1
        %s281 = scalar_select %p280, %s277, 1
        %s282 = smul.addr %s279, 2
        %s283 = sadd.s32 %s281, %s282
        %s284 = smul.addr %s283, 8
        %s285 = scalar_lea.vmem %s0, %s284
        %s286 = smul.u32 2, %s21
      $region36: #{_lambda_.21} parent=31 // pred_fallthru
        _
      // Predicated region
      $region37: #{_lambda_.21} parent=31 // pred_check
        %p287 = pneg %p122
      $region38: #{_lambda_.21} parent=31 // pred_check_branch
        %289 = sbr.rel (%p287) target = $region40
      $region39: #{_lambda_.21} parent=31 // pred_region
        %p290 = scmp.lt.s32.totalorder %s20, 1
        %s291 = scalar_select %p290, %s20, 1
        %s292 = scalar_lea.vmem %s3, %s291
      $region40: #{_lambda_.21} parent=31 // pred_fallthru
        _
      // Predicated region
      $region41: #{_lambda_.21} parent=31 // pred_check
        %p293 = pneg %p148
      $region42: #{_lambda_.21} parent=31 // pred_check_branch
        %295 = sbr.rel (%p293) target = $region44
      $region43: #{_lambda_.21} parent=31 // pred_region
        %p296 = scmp.lt.s32.totalorder %s20, 1
        %s297 = scalar_select %p296, %s20, 1
        %s298 = scalar_lea.vmem %s4, %s297
      $region44: #{_lambda_.21} parent=31 // pred_fallthru
        _
    $region32: #{_lambda_.21} parent=5 // pred_fallthru
      _
    %p299 = scmp.le.s32.totalorder 1, %s13
    %p300 = scmp.lt.s32.totalorder %s13, 3
    %p301 = pnand %p299, %p300
    %p302 = pneg %p301
    // Predicated region
    $region45: #{_lambda_.21} parent=5 // pred_check
      _
    $region46: #{_lambda_.21} parent=5 // pred_check_branch
      %304 = sbr.rel (%p301) target = $region48
    $region47: #{_lambda_.21} parent=5 // pred_region
      %s305 = ssub.s32 %s13, 1
      %s306 = smul.u32 2, %s24
      %p307 = scmp.lt.s32.totalorder %s23, 1
      %s308 = scalar_select %p307, %s23, 1
      %p309 = scmp.lt.s32.totalorder %s306, 1
      %s310 = scalar_select %p309, %s306, 1
      %s311 = smul.addr %s308, 2
      %s312 = sadd.s32 %s310, %s311
      %s313 = smul.addr %s312, 8
      %s314 = scalar_lea.vmem %s0, %s313
      %p315 = pneg %p60
      %p316 = pneg %p57
      %p317 = pneg %p81
      %p318 = pneg %p78
      %p319 = pneg %p102
      %p320 = pneg %p99
      %p321 = scmp.lt.s32.totalorder %s23, 1
      %s322 = scalar_select %p321, %s23, 1
      %s323 = scalar_lea.vmem %s3, %s322
      %p324 = pneg %p128
      %p325 = pneg %p125
      %p326 = scmp.lt.s32.totalorder %s23, 1
      %s327 = scalar_select %p326, %s23, 1
      %s328 = scalar_lea.vmem %s4, %s327
      %p329 = pneg %p154
      %p330 = pneg %p151
      %p331 = scmp.lt.s32.totalorder %s25, 0
      %s332 = scalar_select %p331, %s25, 0
      %s333 = smul.addr %s332, 4
      %s334 = scalar_lea.vmem %s5, %s333
      %p335 = pneg %p180
      %p336 = pneg %p177
      %p337 = scmp.lt.s32.totalorder %s25, 0
      %s338 = scalar_select %p337, %s25, 0
      %s339 = scalar_lea.vmem %s6, %s338
      %p340 = pneg %p206
      %p341 = pneg %p203
      %p342 = pneg %p236
      %p343 = pneg %p233
      %s344 = smul.u32 2, %s24
      %p345 = scmp.lt.s32.totalorder %s23, 1
      %s346 = scalar_select %p345, %s23, 1
      %p347 = scmp.lt.s32.totalorder %s344, 1
      %s348 = scalar_select %p347, %s344, 1
      %p349 = scmp.lt.s32.totalorder %s25, 0
      %s350 = scalar_select %p349, %s25, 0
      %s351 = sadd.s32 %s350, %s348
      %s352 = smul.addr %s346, 2
      %s353 = sadd.s32 %s351, %s352
      %s354 = smul.addr %s353, 8
      %s355 = scalar_lea.vmem %s7, %s354
      %s356 = smul.u32 2, %s24
      %p357 = scmp.lt.s32.totalorder %s23, 1
      %s358 = scalar_select %p357, %s23, 1
      %p359 = scmp.lt.s32.totalorder %s356, 1
      %s360 = scalar_select %p359, %s356, 1
      %s361 = smul.addr %s358, 2
      %s362 = sadd.s32 %s360, %s361
      %s363 = smul.addr %s362, 8
      %s364 = scalar_lea.vmem %s0, %s363
      %s365 = smul.u32 2, %s24
      %p366 = scmp.lt.s32.totalorder %s23, 1
      %s367 = scalar_select %p366, %s23, 1
      %s368 = scalar_lea.vmem %s3, %s367
      %p369 = scmp.lt.s32.totalorder %s23, 1
      %s370 = scalar_select %p369, %s23, 1
      %s371 = scalar_lea.vmem %s4, %s370
      %p372 = scmp.lt.s32.totalorder %s25, 0
      %s373 = scalar_select %p372, %s25, 0
      %s374 = smul.addr %s373, 4
      %s375 = scalar_lea.vmem %s5, %s374
      %p376 = scmp.lt.s32.totalorder %s25, 0
      %s377 = scalar_select %p376, %s25, 0
      %s378 = scalar_lea.vmem %s6, %s377
      %s379 = smul.u32 2, %s24
      %p380 = scmp.lt.s32.totalorder %s23, 1
      %s381 = scalar_select %p380, %s23, 1
      %p382 = scmp.lt.s32.totalorder %s379, 1
      %s383 = scalar_select %p382, %s379, 1
      %p384 = scmp.lt.s32.totalorder %s25, 0
      %s385 = scalar_select %p384, %s25, 0
      %s386 = sadd.s32 %s385, %s383
      %s387 = smul.addr %s381, 2
      %s388 = sadd.s32 %s386, %s387
      %s389 = smul.addr %s388, 8
      %s390 = scalar_lea.vmem %s7, %s389
      %s391 = smul.u32 2, %s24
      %p393 = scmp.eq.s32.totalorder %s25, 0
      // Predicated region
      $region49: #{_lambda_.21} parent=47 // pred_check
        %p394 = pneg %p393
      $region50: #{_lambda_.21} parent=47 // pred_check_branch
        %396 = sbr.rel (%p394) target = $region52
      $region51: #{_lambda_.21} parent=47 // pred_region
        %v397 = vld [vmem:[%s364] sm:$0xff]
        %v398 = vld [vmem:[%s364 + $0x8] sm:$0xff]
        %vm399 = vcmask 261120
        %v400 = vsel %vm399, %v397, 0.0
        %401 = vadd.xlane.f32.xlu0 %v400
        %v402 = vpop.xlane.xlu0 %401
        %v403 = vsel %vm399, %v398, 0.0
        %404 = vadd.xlane.f32.xlu0 %v403
        %v405 = vpop.xlane.xlu0 %404
        %v406 = vrcp.pop 32.0
        %v407 = vmul.f32 32.0, %v406
        %v408 = vsub.f32 1.0, %v407
        %v409 = vmul.f32 %v406, %v408
        %v410 = vadd.f32 %v406, %v409
        %vm411 = vweird.f32 %v406
        %v412 = vsel %vm411, %v406, %v410
        %v413 = vmul.f32 %v402, %v412
        %v414 = vmul.f32 %v405, %v412
        %v415 = vsub.f32 %v397, %v413
        %v416 = vsub.f32 %v398, %v414
        %v417 = vmul.f32 %v415, %v415
        %v418 = vmul.f32 %v416, %v416
        %v419 = vsel %vm399, %v417, 0.0
        %420 = vadd.xlane.f32.xlu0 %v419
        %v421 = vpop.xlane.xlu0 %420
        %v422 = vsel %vm399, %v418, 0.0
        %423 = vadd.xlane.f32.xlu0 %v422
        %v424 = vpop.xlane.xlu0 %423
        %v425 = vmul.f32 %v421, %v412
        %v426 = vmul.f32 %v424, %v412
        %v427 = vadd.f32 %v425, 1e-05
        %v428 = vadd.f32 %v426, 1e-05
        %v429 = vrsqrt.pop %v427
        %v430 = vmul.f32 %v429, %v427
        %v431 = vmul.f32 %v430, %v429
        %v432 = vmul.f32 0.5, %v431
        %v433 = vsub.f32 1.5, %v432
        %v434 = vmul.f32 %v429, %v433
        %vm435 = vweird.f32 %v427
        %vm436 = vweird.f32 %v429
        %vm437 = vmor %vm435, %vm436
        %v438 = vsel %vm437, %v429, %v434
        %v439 = vrsqrt.pop %v428
        %v440 = vmul.f32 %v439, %v428
        %v441 = vmul.f32 %v440, %v439
        %v442 = vmul.f32 0.5, %v441
        %v443 = vsub.f32 1.5, %v442
        %v444 = vmul.f32 %v439, %v443
        %vm445 = vweird.f32 %v428
        %vm446 = vweird.f32 %v439
        %vm447 = vmor %vm445, %vm446
        %v448 = vsel %vm447, %v439, %v444
        %v449 = vmul.f32 %v415, %v438
        %v450 = vmul.f32 %v416, %v448
        %v451 = vld [vmem:[%s1] sm:$0x1]
        %v453 = vperm.slane %v451, 0
        %v455 = vmul.f32 %v449, %v453
        %v456 = vmul.f32 %v450, %v453
        %v457 = vld [vmem:[%s2] sm:$0x1]
        %v459 = vperm.slane %v457, 0
        %v461 = vadd.f32 %v455, %v459
        %v462 = vadd.f32 %v456, %v459
        %v463 = vld [vmem:[%s368] sm:$0x1]
        %v464 = vadd.f32 %v463, 1.0
        %v466 = vperm.slane %v464, 0
        %v468 = vmul.f32 %v461, %v466
        %v469 = vmul.f32 %v462, %v466
        %v470 = vld [vmem:[%s371] sm:$0x1]
        %v472 = vperm.slane %v470, 0
        %v474 = vadd.f32 %v468, %v472
        %v475 = vadd.f32 %v469, %v472
        %v476 = vpack.c.bf16 %v474, %v474
        %v477 = vpack.c.bf16 %v475, %v475
        %vm478 = vcmask 257024
        %479 = vst.msk [vmem:[#allocation2] sm:$0xf] %vm478, %v476
        %480 = vst.msk [vmem:[#allocation2 + $0x4] sm:$0xf] %vm478, %v477
      $region52: #{_lambda_.21} parent=47 // pred_fallthru
        _
      %v481 = vld [vmem:[%s375] sm:$0xf]
      %v482 = vld [vmem:[%s375 + $0x4] sm:$0xf]
      %v483 = vld [vmem:[%s375 + $0x8] sm:$0xf]
      %v484 = vld [vmem:[%s375 + $0xc] sm:$0xf]
      %v485 = vld [vmem:[%s378] sm:$0x1]
      %v486 = vld [vmem:[#allocation2] sm:$0xf]
      %v487 = vld [vmem:[#allocation2 + $0x4] sm:$0xf]
      %v489 = vperm.slane %v485, 0
      %v493 = vunpack.c.l.b16 %v486
      %v494 = vunpack.c.l.b16 %v487
      %v495 = vpack.c.b16 %v494, %v493
      %v500 = vunpack.c.l.b16 %v481
      %v501 = vunpack.c.l.b16 %v482
      %v502 = vunpack.c.l.b16 %v483
      %v503 = vunpack.c.l.b16 %v484
      %v504 = vpack.c.b16 %v501, %v500
      %v505 = vpack.c.b16 %v503, %v502
      %vm508 = vcmask 261120
      %v510 = vsel %vm508, %v495, 0
      %512 = vmatpush.bf16.msra.mxu0 0
      %513 = vmatpush.bf16.msra.mxu0 0
      %514 = vmatpush.bf16.msra.mxu0 0
      %515 = vmatpush.bf16.msra.mxu0 0
      %516 = vmatpush.bf16.msra.mxu0 0
      %517 = vmatpush.bf16.msra.mxu0 0
      %518 = vmatpush.bf16.msra.mxu0 %v505
      %519 = vmatpush.bf16.msra.mxu0 %v504
      %520 = vmatmul.bf16.gmra.mxu0 %v510
      %v521 = vpop.f32.mrf.mxu0
      %v522 = vadd.f32 %v489, %v521
      %v523 = vpop.f32.mrf.mxu0
      %v524 = vadd.f32 %v489, %v523
      %525 = vdwg.mxu0
      %vm526 = vcmask 130048
      %527 = vst.msk [vmem:[%s390] sm:$0xff] %vm526, %v522
      %528 = vst.msk [vmem:[%s390 + $0x8] sm:$0xff] %vm526, %v524
      %s529 = smul.u32 2, %s24
      %p530 = scmp.lt.s32.totalorder %s23, 1
      %s531 = scalar_select %p530, %s23, 1
      %p532 = scmp.lt.s32.totalorder %s529, 1
      %s533 = scalar_select %p532, %s529, 1
      %p534 = scmp.lt.s32.totalorder %s25, 0
      %s535 = scalar_select %p534, %s25, 0
      %s536 = sadd.s32 %s535, %s533
      %s537 = smul.addr %s531, 2
      %s538 = sadd.s32 %s536, %s537
      %s539 = smul.addr %s538, 8
      %s540 = scalar_lea.vmem %s7, %s539
      // Predicated region
      $region53: #{_lambda_.21} parent=47 // pred_check
        %p541 = pneg %p233
      $region54: #{_lambda_.21} parent=47 // pred_check_branch
        %543 = sbr.rel (%p541) target = $region56
      $region55: #{_lambda_.21} parent=47 // pred_region
        %s544 = smul.u32 2, %s24
      $region56: #{_lambda_.21} parent=47 // pred_fallthru
        _
    $region48: #{_lambda_.21} parent=5 // pred_fallthru
      _
    %p545 = scmp.le.s32.totalorder 2, %s13
    // Predicated region
    $region57: #{_lambda_.21} parent=5 // pred_check
      %p546 = pneg %p545
    $region58: #{_lambda_.21} parent=5 // pred_check_branch
      %548 = sbr.rel (%p546) target = $region60
    $region59: #{_lambda_.21} parent=5 // pred_region
      %s549 = ssub.s32 %s13, 2
      // Predicated region
      $region61: #{_lambda_.21} parent=59 // pred_check
        %p550 = pneg %p239
      $region62: #{_lambda_.21} parent=59 // pred_check_branch
        %552 = sbr.rel (%p550) target = $region64
      $region63: #{_lambda_.21} parent=59 // pred_region
        %s553 = smul.u32 2, %s27
        %p554 = scmp.lt.s32.totalorder %s26, 1
        %s555 = scalar_select %p554, %s26, 1
        %p556 = scmp.lt.s32.totalorder %s553, 1
        %s557 = scalar_select %p556, %s553, 1
        %p558 = scmp.lt.s32.totalorder %s28, 0
        %s559 = scalar_select %p558, %s28, 0
        %s560 = sadd.s32 %s559, %s557
        %s561 = smul.addr %s555, 2
        %s562 = sadd.s32 %s560, %s561
        %s563 = smul.addr %s562, 8
        %s564 = scalar_lea.vmem %s7, %s563
      $region64: #{_lambda_.21} parent=59 // pred_fallthru
        _
    $region60: #{_lambda_.21} parent=5 // pred_fallthru
      _
  $region6: #{_lambda_.21} parent=0 // loop_footer
    %s17 = sadd.s32 1, %s13
  $region7: #{_lambda_.21} parent=0 // loop_footer_branch
    %12 = sbr.rel target = $region3
  $region8: #{_lambda_.21} parent=0 // loop_exit
    _

</llo_original>
